<compile_context>
chip_gen: v6e
topology: v6e:2x2x1
jax: 0.10.0
libtpu: 0.0.40
codegen_flags: <defaults>
</compile_context>

<pallas_src>
import math
import functools

import jax
import jax.numpy as jnp
from jax.experimental import pallas as pl
from jax.experimental.pallas import tpu as pltpu


# Keep f32 to exactly match PyTorch reference numerics.  Set to jnp.bfloat16
# on v6e/v7x for ~2x MXU throughput (f32 accumulation is kept either way).
_MXU_DTYPE = jnp.float32

_VMEM_LIMIT = 32 * 1024 * 1024  # explicit, safe on v5e/v6e/v7x


def _mm(a, b):
    """MXU matmul with f32 accumulation (operands optionally bf16)."""
    return jnp.dot(a.astype(_MXU_DTYPE), b.astype(_MXU_DTYPE),
                   preferred_element_type=jnp.float32)


def _mm_nt(a, b):
    """a @ b^T via dot_general contracting last dims (no explicit transpose)."""
    return jax.lax.dot_general(
        a.astype(_MXU_DTYPE), b.astype(_MXU_DTYPE),
        (((1,), (1,)), ((), ())),
        preferred_element_type=jnp.float32)


def _layer_norm(y, g, b, eps=1e-5):
    mean = jnp.mean(y, axis=-1, keepdims=True)
    var = jnp.mean(jnp.square(y - mean), axis=-1, keepdims=True)
    return (y - mean) * jax.lax.rsqrt(var + eps) * g + b


# ------------------------- The single fused kernel --------------------------

_LAYER_NARGS = 12  # wqkv, bqkv, wo, bo, ln1g, ln1b, w1, b1, w2, b2, ln2g, ln2b


def _encoder_fused_kernel(*refs, nhead, num_layers, seq_len):
    """Whole Encoder forward for the whole (tiny) batch, resident in VMEM.

    refs = [x2, in_w, in_b, pe, out_w, out_b] + num_layers*12 layer params
           + [o_ref]
    x2 is (B*S, input_dim); output is (B*S, d_model).
    """
    x_ref, in_w_ref, in_b_ref, pe_ref, out_w_ref, out_b_ref = refs[:6]
    layer_refs = refs[6:6 + _LAYER_NARGS * num_layers]
    o_ref = refs[6 + _LAYER_NARGS * num_layers]

    S = seq_len
    rows = x_ref.shape[0]
    B = rows // S
    d = in_w_ref.shape[1]
    dh = d // nhead

    x = x_ref[...].astype(jnp.float32)                        # (rows, in_dim)

    # --- input projection + positional encoding (pe tiled over batch) ---
    h = _mm(x, in_w_ref[...]) + in_b_ref[...]                 # (rows, d)
    pe = pe_ref[...]                                          # (S, d)
    h = h + jnp.concatenate([pe] * B, axis=0)                 # sublane concat

    # --- encoder layers (post-norm), fully fused ---
    for li in range(num_layers):
        (wqkv_ref, bqkv_ref, wo_ref, bo_ref,
         ln1g_ref, ln1b_ref, w1_ref, b1_ref, w2_ref, b2_ref,
         ln2g_ref, ln2b_ref) = layer_refs[_LAYER_NARGS * li:
                                          _LAYER_NARGS * (li + 1)]

        # fused QKV projection over all B*S rows.
        # NOTE: 1/sqrt(dh) was folded into the Q block of wqkv/bqkv at trace
        # time, so no score scaling is needed below.
        qkv = _mm(h, wqkv_ref[...]) + bqkv_ref[...]           # (rows, 3d)

        # attention: static per-batch + per-head loops (small S, tiny tiles).
        attn_rows = []
        for b in range(B):
            qkv_b = qkv[b * S:(b + 1) * S, :]                 # (S, 3d) static slice
            heads = []
            for hh in range(nhead):
                q = qkv_b[:, hh * dh:(hh + 1) * dh]           # (S, dh)
                k = qkv_b[:, d + hh * dh:d + (hh + 1) * dh]
                v = qkv_b[:, 2 * d + hh * dh:2 * d + (hh + 1) * dh]

                s = _mm_nt(q, k)                              # (S, S), pre-scaled
                m = jnp.max(s, axis=-1, keepdims=True)
                p = jnp.exp(s - m)
                p = p / jnp.sum(p, axis=-1, keepdims=True)    # exact softmax
                heads.append(_mm(p, v))                       # (S, dh)
            attn_rows.append(jnp.concatenate(heads, axis=-1))  # (S, d)
        attn = jnp.concatenate(attn_rows, axis=0)             # (rows, d)

        # single K=d out-projection matmul over all rows (heads merged above).
        attn = _mm(attn, wo_ref[...]) + bo_ref[...]

        # residual + LayerNorm 1
        y = _layer_norm(h + attn, ln1g_ref[...], ln1b_ref[...])

        # FFN (relu) over all rows
        hmid = jnp.maximum(_mm(y, w1_ref[...]) + b1_ref[...], 0.0)
        ffo = _mm(hmid, w2_ref[...]) + b2_ref[...]

        # residual + LayerNorm 2
        h = _layer_norm(y + ffo, ln2g_ref[...], ln2b_ref[...])

    # --- output linear ---
    o_ref[...] = (_mm(h, out_w_ref[...]) + out_b_ref[...]).astype(o_ref.dtype)


# ------------------------------ Pallas wrapper -------------------------------

def make_positional_encoding(max_len, d_model):
    pos = jnp.arange(max_len, dtype=jnp.float32)[:, None]
    div = jnp.exp(jnp.arange(0, d_model, 2, dtype=jnp.float32)
                  * (-math.log(10000.0) / d_model))
    pe = jnp.zeros((max_len, d_model), dtype=jnp.float32)
    pe = pe.at[:, 0::2].set(jnp.sin(pos * div))
    pe = pe.at[:, 1::2].set(jnp.cos(pos * div)[:, : d_model // 2])
    return pe  # (max_len, d_model)


def positional_encoding_slice(pe, seq_len):
    """Matches PositionalEncoding.forward (repeat if seq_len > max_len)."""
    max_len = pe.shape[0]
    if seq_len > max_len:
        reps = (seq_len + max_len - 1) // max_len
        pe = jnp.tile(pe, (reps, 1))
    return pe[:seq_len]


def init_params(key, input_dim, d_model, nhead, num_layers, dim_ff, max_len=64):
    # NOTE: PyTorch uses xavier_uniform for in_proj_weight and zero in_proj
    # bias; here weights are self-generated, so exact init parity is not
    # required (checkpoint import would just replace these arrays).
    def dense(k, fan_in, fan_out):
        kw, kb = jax.random.split(k)
        lim = 1.0 / math.sqrt(fan_in)
        w = jax.random.uniform(kw, (fan_in, fan_out), jnp.float32, -lim, lim)
        b = jax.random.uniform(kb, (1, fan_out), jnp.float32, -lim, lim)
        return w, b

    keys = jax.random.split(key, 3 + num_layers)
    params = {}
    params['pe'] = make_positional_encoding(max_len, d_model)
    params['in_w'], params['in_b'] = dense(keys[0], input_dim, d_model)
    params['out_w'], params['out_b'] = dense(keys[1], d_model, d_model)

    layers = []
    for li in range(num_layers):
        lk = jax.random.split(keys[3 + li], 4)
        in_proj_w, in_proj_b = dense(lk[0], d_model, 3 * d_model)
        out_proj_w, out_proj_b = dense(lk[1], d_model, d_model)
        ff_w1, ff_b1 = dense(lk[2], d_model, dim_ff)
        ff_w2, ff_b2 = dense(lk[3], dim_ff, d_model)
        layers.append(dict(
            in_proj_w=in_proj_w, in_proj_b=in_proj_b,
            out_proj_w=out_proj_w, out_proj_b=out_proj_b,
            ff_w1=ff_w1, ff_b1=ff_b1, ff_w2=ff_w2, ff_b2=ff_b2,
            ln1_g=jnp.ones((1, d_model), jnp.float32),
            ln1_b=jnp.zeros((1, d_model), jnp.float32),
            ln2_g=jnp.ones((1, d_model), jnp.float32),
            ln2_b=jnp.zeros((1, d_model), jnp.float32),
        ))
    params['layers'] = layers
    return params


@functools.partial(jax.jit, static_argnames=("nhead",))
def encoder_forward(x, params, *, nhead):
    """x: (B, S, input_dim) float32 -> (B, S, d_model). One fused pallas_call."""
    B, S, in_dim = x.shape
    d_model = params['in_w'].shape[1]
    num_layers = len(params['layers'])
    assert d_model % nhead == 0
    dh = d_model // nhead
    scale = 1.0 / math.sqrt(dh)

    pe = positional_encoding_slice(params['pe'], S)            # (S, d_model)

    # Flatten layer params; fold 1/sqrt(dh) into the Q block at trace time.
    layer_args = []
    for layer in params['layers']:
        wqkv = layer['in_proj_w'].at[:, :d_model].multiply(scale)
        bqkv = layer['in_proj_b'].at[:, :d_model].multiply(scale)
        layer_args += [wqkv, bqkv,
                       layer['out_proj_w'], layer['out_proj_b'],
                       layer['ln1_g'], layer['ln1_b'],
                       layer['ff_w1'], layer['ff_b1'],
                       layer['ff_w2'], layer['ff_b2'],
                       layer['ln2_g'], layer['ln2_b']]

    x2 = x.reshape(B * S, in_dim)                               # collapse (B,S)
    args = [x2, params['in_w'], params['in_b'], pe,
            params['out_w'], params['out_b']] + layer_args

    kernel = functools.partial(_encoder_fused_kernel,
                               nhead=nhead, num_layers=num_layers, seq_len=S)

    vmem_spec = pl.BlockSpec(memory_space=pltpu.MemorySpace.VMEM)
    out2 = pl.pallas_call(
        kernel,
        out_shape=jax.ShapeDtypeStruct((B * S, d_model), jnp.float32),
        in_specs=[vmem_spec] * len(args),
        out_specs=vmem_spec,
        compiler_params=pltpu.CompilerParams(vmem_limit_bytes=_VMEM_LIMIT),
    )(*args)
    return out2.reshape(B, S, d_model)


# ----------------------------------- main -----------------------------------

if __name__ == "__main__":
    INPUT_DIM = 16
    PARAMS = dict(
        d_model_encoder=32,
        nhead_encoder=4,
        num_layers_encoder=2,
        dim_feedforward_encoder=64,
        dropout_encoder=0.1,   # identity at inference
    )
    B, S = 2, 8

    key = jax.random.PRNGKey(0)
    k_in, k_par = jax.random.split(key)
    x = jax.random.normal(k_in, (B, S, INPUT_DIM), dtype=jnp.float32)

    params = init_params(
        k_par, INPUT_DIM,
        PARAMS['d_model_encoder'], PARAMS['nhead_encoder'],
        PARAMS['num_layers_encoder'], PARAMS['dim_feedforward_encoder'],
        max_len=64,
    )

    out = encoder_forward(x, params, nhead=PARAMS['nhead_encoder'])
    out = jax.block_until_ready(out)
    assert out.shape == (B, S, PARAMS['d_model_encoder'])
    assert bool(jnp.all(jnp.isfinite(out)))
    print("KERNEL_OK")
</pallas_src>

<mosaic_0001>
module attributes {stable_mosaic.version = 11 : i64} {
  func.func @_encoder_fused_kernel(%arg0: memref<16x16xf32, #tpu.memory_space<vmem>>, %arg1: memref<16x32xf32, #tpu.memory_space<vmem>>, %arg2: memref<1x32xf32, #tpu.memory_space<vmem>>, %arg3: memref<8x32xf32, #tpu.memory_space<vmem>>, %arg4: memref<32x32xf32, #tpu.memory_space<vmem>>, %arg5: memref<1x32xf32, #tpu.memory_space<vmem>>, %arg6: memref<32x96xf32, #tpu.memory_space<vmem>>, %arg7: memref<1x96xf32, #tpu.memory_space<vmem>>, %arg8: memref<32x32xf32, #tpu.memory_space<vmem>>, %arg9: memref<1x32xf32, #tpu.memory_space<vmem>>, %arg10: memref<1x32xf32, #tpu.memory_space<vmem>>, %arg11: memref<1x32xf32, #tpu.memory_space<vmem>>, %arg12: memref<32x64xf32, #tpu.memory_space<vmem>>, %arg13: memref<1x64xf32, #tpu.memory_space<vmem>>, %arg14: memref<64x32xf32, #tpu.memory_space<vmem>>, %arg15: memref<1x32xf32, #tpu.memory_space<vmem>>, %arg16: memref<1x32xf32, #tpu.memory_space<vmem>>, %arg17: memref<1x32xf32, #tpu.memory_space<vmem>>, %arg18: memref<32x96xf32, #tpu.memory_space<vmem>>, %arg19: memref<1x96xf32, #tpu.memory_space<vmem>>, %arg20: memref<32x32xf32, #tpu.memory_space<vmem>>, %arg21: memref<1x32xf32, #tpu.memory_space<vmem>>, %arg22: memref<1x32xf32, #tpu.memory_space<vmem>>, %arg23: memref<1x32xf32, #tpu.memory_space<vmem>>, %arg24: memref<32x64xf32, #tpu.memory_space<vmem>>, %arg25: memref<1x64xf32, #tpu.memory_space<vmem>>, %arg26: memref<64x32xf32, #tpu.memory_space<vmem>>, %arg27: memref<1x32xf32, #tpu.memory_space<vmem>>, %arg28: memref<1x32xf32, #tpu.memory_space<vmem>>, %arg29: memref<1x32xf32, #tpu.memory_space<vmem>>, %arg30: memref<16x32xf32, #tpu.memory_space<vmem>>) attributes {dimension_semantics = [], scalar_prefetch = 0 : i64, scratch_operands = 0 : i64, tpu.core_type = #tpu.core_type<tc>} {
    %c0 = arith.constant 0 : index
    %c0_0 = arith.constant 0 : index
    %0 = vector.load %arg0[%c0, %c0_0] : memref<16x16xf32, #tpu.memory_space<vmem>>, vector<16x16xf32>
    %c0_1 = arith.constant 0 : index
    %c0_2 = arith.constant 0 : index
    %1 = vector.load %arg1[%c0_1, %c0_2] : memref<16x32xf32, #tpu.memory_space<vmem>>, vector<16x32xf32>
    %cst = arith.constant dense<0.000000e+00> : vector<16x32xf32>
    %2 = tpu.matmul %0, %1, %cst {dimension_numbers = #tpu.dot_dimension_numbers<[1], [0], [0], [1], [0, 0, 1, 1], [], []>} : vector<16x16xf32>, vector<16x32xf32>, vector<16x32xf32> -> vector<16x32xf32>
    %c0_3 = arith.constant 0 : index
    %c0_4 = arith.constant 0 : index
    %3 = vector.load %arg2[%c0_3, %c0_4] : memref<1x32xf32, #tpu.memory_space<vmem>>, vector<1x32xf32>
    %4 = vector.broadcast %3 : vector<1x32xf32> to vector<16x32xf32>
    %5 = arith.addf %2, %4 : vector<16x32xf32>
    %c0_5 = arith.constant 0 : index
    %c0_6 = arith.constant 0 : index
    %6 = vector.load %arg3[%c0_5, %c0_6] : memref<8x32xf32, #tpu.memory_space<vmem>>, vector<8x32xf32>
    %7 = tpu.concatenate %6, %6 in 0 : vector<8x32xf32>, vector<8x32xf32> -> vector<16x32xf32>
    %8 = arith.addf %5, %7 : vector<16x32xf32>
    %c0_7 = arith.constant 0 : index
    %c0_8 = arith.constant 0 : index
    %9 = vector.load %arg6[%c0_7, %c0_8] : memref<32x96xf32, #tpu.memory_space<vmem>>, vector<32x96xf32>
    %cst_9 = arith.constant dense<0.000000e+00> : vector<16x96xf32>
    %10 = tpu.matmul %8, %9, %cst_9 {dimension_numbers = #tpu.dot_dimension_numbers<[1], [0], [0], [1], [0, 0, 1, 1], [], []>} : vector<16x32xf32>, vector<32x96xf32>, vector<16x96xf32> -> vector<16x96xf32>
    %c0_10 = arith.constant 0 : index
    %c0_11 = arith.constant 0 : index
    %11 = vector.load %arg7[%c0_10, %c0_11] : memref<1x96xf32, #tpu.memory_space<vmem>>, vector<1x96xf32>
    %12 = vector.broadcast %11 : vector<1x96xf32> to vector<16x96xf32>
    %13 = arith.addf %10, %12 : vector<16x96xf32>
    %14 = vector.extract_strided_slice %13 {offsets = [0, 0], sizes = [8, 96], strides = [1, 1]} : vector<16x96xf32> to vector<8x96xf32>
    %15 = vector.extract_strided_slice %14 {offsets = [0, 0], sizes = [8, 8], strides = [1, 1]} : vector<8x96xf32> to vector<8x8xf32>
    %16 = vector.extract_strided_slice %14 {offsets = [0, 32], sizes = [8, 8], strides = [1, 1]} : vector<8x96xf32> to vector<8x8xf32>
    %17 = vector.extract_strided_slice %14 {offsets = [0, 64], sizes = [8, 8], strides = [1, 1]} : vector<8x96xf32> to vector<8x8xf32>
    %cst_12 = arith.constant dense<0.000000e+00> : vector<8x8xf32>
    %18 = tpu.matmul %15, %16, %cst_12 {dimension_numbers = #tpu.dot_dimension_numbers<[1], [1], [0], [0], [0, 0, 1, 0], [], []>} : vector<8x8xf32>, vector<8x8xf32>, vector<8x8xf32> -> vector<8x8xf32>
    %cst_13 = arith.constant dense<0xFF800000> : vector<8xf32>
    %19 = vector.multi_reduction <maximumf>, %18, %cst_13 [1] : vector<8x8xf32> to vector<8xf32>
    %20 = vector.shape_cast %19 : vector<8xf32> to vector<8x1xf32>
    %21 = vector.broadcast %20 : vector<8x1xf32> to vector<8x8xf32>
    %22 = arith.subf %18, %21 : vector<8x8xf32>
    %23 = math.exp %22 : vector<8x8xf32>
    %cst_14 = arith.constant dense<0.000000e+00> : vector<8xf32>
    %24 = vector.multi_reduction <add>, %23, %cst_14 [1] : vector<8x8xf32> to vector<8xf32>
    %25 = vector.shape_cast %24 : vector<8xf32> to vector<8x1xf32>
    %26 = vector.broadcast %25 : vector<8x1xf32> to vector<8x8xf32>
    %27 = arith.divf %23, %26 : vector<8x8xf32>
    %cst_15 = arith.constant dense<0.000000e+00> : vector<8x8xf32>
    %28 = tpu.matmul %27, %17, %cst_15 {dimension_numbers = #tpu.dot_dimension_numbers<[1], [0], [0], [1], [0, 0, 1, 1], [], []>} : vector<8x8xf32>, vector<8x8xf32>, vector<8x8xf32> -> vector<8x8xf32>
    %29 = vector.extract_strided_slice %14 {offsets = [0, 8], sizes = [8, 8], strides = [1, 1]} : vector<8x96xf32> to vector<8x8xf32>
    %30 = vector.extract_strided_slice %14 {offsets = [0, 40], sizes = [8, 8], strides = [1, 1]} : vector<8x96xf32> to vector<8x8xf32>
    %31 = vector.extract_strided_slice %14 {offsets = [0, 72], sizes = [8, 8], strides = [1, 1]} : vector<8x96xf32> to vector<8x8xf32>
    %cst_16 = arith.constant dense<0.000000e+00> : vector<8x8xf32>
    %32 = tpu.matmul %29, %30, %cst_16 {dimension_numbers = #tpu.dot_dimension_numbers<[1], [1], [0], [0], [0, 0, 1, 0], [], []>} : vector<8x8xf32>, vector<8x8xf32>, vector<8x8xf32> -> vector<8x8xf32>
    %cst_17 = arith.constant dense<0xFF800000> : vector<8xf32>
    %33 = vector.multi_reduction <maximumf>, %32, %cst_17 [1] : vector<8x8xf32> to vector<8xf32>
    %34 = vector.shape_cast %33 : vector<8xf32> to vector<8x1xf32>
    %35 = vector.broadcast %34 : vector<8x1xf32> to vector<8x8xf32>
    %36 = arith.subf %32, %35 : vector<8x8xf32>
    %37 = math.exp %36 : vector<8x8xf32>
    %cst_18 = arith.constant dense<0.000000e+00> : vector<8xf32>
    %38 = vector.multi_reduction <add>, %37, %cst_18 [1] : vector<8x8xf32> to vector<8xf32>
    %39 = vector.shape_cast %38 : vector<8xf32> to vector<8x1xf32>
    %40 = vector.broadcast %39 : vector<8x1xf32> to vector<8x8xf32>
    %41 = arith.divf %37, %40 : vector<8x8xf32>
    %cst_19 = arith.constant dense<0.000000e+00> : vector<8x8xf32>
    %42 = tpu.matmul %41, %31, %cst_19 {dimension_numbers = #tpu.dot_dimension_numbers<[1], [0], [0], [1], [0, 0, 1, 1], [], []>} : vector<8x8xf32>, vector<8x8xf32>, vector<8x8xf32> -> vector<8x8xf32>
    %43 = vector.extract_strided_slice %14 {offsets = [0, 16], sizes = [8, 8], strides = [1, 1]} : vector<8x96xf32> to vector<8x8xf32>
    %44 = vector.extract_strided_slice %14 {offsets = [0, 48], sizes = [8, 8], strides = [1, 1]} : vector<8x96xf32> to vector<8x8xf32>
    %45 = vector.extract_strided_slice %14 {offsets = [0, 80], sizes = [8, 8], strides = [1, 1]} : vector<8x96xf32> to vector<8x8xf32>
    %cst_20 = arith.constant dense<0.000000e+00> : vector<8x8xf32>
    %46 = tpu.matmul %43, %44, %cst_20 {dimension_numbers = #tpu.dot_dimension_numbers<[1], [1], [0], [0], [0, 0, 1, 0], [], []>} : vector<8x8xf32>, vector<8x8xf32>, vector<8x8xf32> -> vector<8x8xf32>
    %cst_21 = arith.constant dense<0xFF800000> : vector<8xf32>
    %47 = vector.multi_reduction <maximumf>, %46, %cst_21 [1] : vector<8x8xf32> to vector<8xf32>
    %48 = vector.shape_cast %47 : vector<8xf32> to vector<8x1xf32>
    %49 = vector.broadcast %48 : vector<8x1xf32> to vector<8x8xf32>
    %50 = arith.subf %46, %49 : vector<8x8xf32>
    %51 = math.exp %50 : vector<8x8xf32>
    %cst_22 = arith.constant dense<0.000000e+00> : vector<8xf32>
    %52 = vector.multi_reduction <add>, %51, %cst_22 [1] : vector<8x8xf32> to vector<8xf32>
    %53 = vector.shape_cast %52 : vector<8xf32> to vector<8x1xf32>
    %54 = vector.broadcast %53 : vector<8x1xf32> to vector<8x8xf32>
    %55 = arith.divf %51, %54 : vector<8x8xf32>
    %cst_23 = arith.constant dense<0.000000e+00> : vector<8x8xf32>
    %56 = tpu.matmul %55, %45, %cst_23 {dimension_numbers = #tpu.dot_dimension_numbers<[1], [0], [0], [1], [0, 0, 1, 1], [], []>} : vector<8x8xf32>, vector<8x8xf32>, vector<8x8xf32> -> vector<8x8xf32>
    %57 = vector.extract_strided_slice %14 {offsets = [0, 24], sizes = [8, 8], strides = [1, 1]} : vector<8x96xf32> to vector<8x8xf32>
    %58 = vector.extract_strided_slice %14 {offsets = [0, 56], sizes = [8, 8], strides = [1, 1]} : vector<8x96xf32> to vector<8x8xf32>
    %59 = vector.extract_strided_slice %14 {offsets = [0, 88], sizes = [8, 8], strides = [1, 1]} : vector<8x96xf32> to vector<8x8xf32>
    %cst_24 = arith.constant dense<0.000000e+00> : vector<8x8xf32>
    %60 = tpu.matmul %57, %58, %cst_24 {dimension_numbers = #tpu.dot_dimension_numbers<[1], [1], [0], [0], [0, 0, 1, 0], [], []>} : vector<8x8xf32>, vector<8x8xf32>, vector<8x8xf32> -> vector<8x8xf32>
    %cst_25 = arith.constant dense<0xFF800000> : vector<8xf32>
    %61 = vector.multi_reduction <maximumf>, %60, %cst_25 [1] : vector<8x8xf32> to vector<8xf32>
    %62 = vector.shape_cast %61 : vector<8xf32> to vector<8x1xf32>
    %63 = vector.broadcast %62 : vector<8x1xf32> to vector<8x8xf32>
    %64 = arith.subf %60, %63 : vector<8x8xf32>
    %65 = math.exp %64 : vector<8x8xf32>
    %cst_26 = arith.constant dense<0.000000e+00> : vector<8xf32>
    %66 = vector.multi_reduction <add>, %65, %cst_26 [1] : vector<8x8xf32> to vector<8xf32>
    %67 = vector.shape_cast %66 : vector<8xf32> to vector<8x1xf32>
    %68 = vector.broadcast %67 : vector<8x1xf32> to vector<8x8xf32>
    %69 = arith.divf %65, %68 : vector<8x8xf32>
    %cst_27 = arith.constant dense<0.000000e+00> : vector<8x8xf32>
    %70 = tpu.matmul %69, %59, %cst_27 {dimension_numbers = #tpu.dot_dimension_numbers<[1], [0], [0], [1], [0, 0, 1, 1], [], []>} : vector<8x8xf32>, vector<8x8xf32>, vector<8x8xf32> -> vector<8x8xf32>
    %71 = tpu.concatenate %28, %42, %56, %70 in 1 : vector<8x8xf32>, vector<8x8xf32>, vector<8x8xf32>, vector<8x8xf32> -> vector<8x32xf32>
    %72 = vector.extract_strided_slice %13 {offsets = [8, 0], sizes = [8, 96], strides = [1, 1]} : vector<16x96xf32> to vector<8x96xf32>
    %73 = vector.extract_strided_slice %72 {offsets = [0, 0], sizes = [8, 8], strides = [1, 1]} : vector<8x96xf32> to vector<8x8xf32>
    %74 = vector.extract_strided_slice %72 {offsets = [0, 32], sizes = [8, 8], strides = [1, 1]} : vector<8x96xf32> to vector<8x8xf32>
    %75 = vector.extract_strided_slice %72 {offsets = [0, 64], sizes = [8, 8], strides = [1, 1]} : vector<8x96xf32> to vector<8x8xf32>
    %cst_28 = arith.constant dense<0.000000e+00> : vector<8x8xf32>
    %76 = tpu.matmul %73, %74, %cst_28 {dimension_numbers = #tpu.dot_dimension_numbers<[1], [1], [0], [0], [0, 0, 1, 0], [], []>} : vector<8x8xf32>, vector<8x8xf32>, vector<8x8xf32> -> vector<8x8xf32>
    %cst_29 = arith.constant dense<0xFF800000> : vector<8xf32>
    %77 = vector.multi_reduction <maximumf>, %76, %cst_29 [1] : vector<8x8xf32> to vector<8xf32>
    %78 = vector.shape_cast %77 : vector<8xf32> to vector<8x1xf32>
    %79 = vector.broadcast %78 : vector<8x1xf32> to vector<8x8xf32>
    %80 = arith.subf %76, %79 : vector<8x8xf32>
    %81 = math.exp %80 : vector<8x8xf32>
    %cst_30 = arith.constant dense<0.000000e+00> : vector<8xf32>
    %82 = vector.multi_reduction <add>, %81, %cst_30 [1] : vector<8x8xf32> to vector<8xf32>
    %83 = vector.shape_cast %82 : vector<8xf32> to vector<8x1xf32>
    %84 = vector.broadcast %83 : vector<8x1xf32> to vector<8x8xf32>
    %85 = arith.divf %81, %84 : vector<8x8xf32>
    %cst_31 = arith.constant dense<0.000000e+00> : vector<8x8xf32>
    %86 = tpu.matmul %85, %75, %cst_31 {dimension_numbers = #tpu.dot_dimension_numbers<[1], [0], [0], [1], [0, 0, 1, 1], [], []>} : vector<8x8xf32>, vector<8x8xf32>, vector<8x8xf32> -> vector<8x8xf32>
    %87 = vector.extract_strided_slice %72 {offsets = [0, 8], sizes = [8, 8], strides = [1, 1]} : vector<8x96xf32> to vector<8x8xf32>
    %88 = vector.extract_strided_slice %72 {offsets = [0, 40], sizes = [8, 8], strides = [1, 1]} : vector<8x96xf32> to vector<8x8xf32>
    %89 = vector.extract_strided_slice %72 {offsets = [0, 72], sizes = [8, 8], strides = [1, 1]} : vector<8x96xf32> to vector<8x8xf32>
    %cst_32 = arith.constant dense<0.000000e+00> : vector<8x8xf32>
    %90 = tpu.matmul %87, %88, %cst_32 {dimension_numbers = #tpu.dot_dimension_numbers<[1], [1], [0], [0], [0, 0, 1, 0], [], []>} : vector<8x8xf32>, vector<8x8xf32>, vector<8x8xf32> -> vector<8x8xf32>
    %cst_33 = arith.constant dense<0xFF800000> : vector<8xf32>
    %91 = vector.multi_reduction <maximumf>, %90, %cst_33 [1] : vector<8x8xf32> to vector<8xf32>
    %92 = vector.shape_cast %91 : vector<8xf32> to vector<8x1xf32>
    %93 = vector.broadcast %92 : vector<8x1xf32> to vector<8x8xf32>
    %94 = arith.subf %90, %93 : vector<8x8xf32>
    %95 = math.exp %94 : vector<8x8xf32>
    %cst_34 = arith.constant dense<0.000000e+00> : vector<8xf32>
    %96 = vector.multi_reduction <add>, %95, %cst_34 [1] : vector<8x8xf32> to vector<8xf32>
    %97 = vector.shape_cast %96 : vector<8xf32> to vector<8x1xf32>
    %98 = vector.broadcast %97 : vector<8x1xf32> to vector<8x8xf32>
    %99 = arith.divf %95, %98 : vector<8x8xf32>
    %cst_35 = arith.constant dense<0.000000e+00> : vector<8x8xf32>
    %100 = tpu.matmul %99, %89, %cst_35 {dimension_numbers = #tpu.dot_dimension_numbers<[1], [0], [0], [1], [0, 0, 1, 1], [], []>} : vector<8x8xf32>, vector<8x8xf32>, vector<8x8xf32> -> vector<8x8xf32>
    %101 = vector.extract_strided_slice %72 {offsets = [0, 16], sizes = [8, 8], strides = [1, 1]} : vector<8x96xf32> to vector<8x8xf32>
    %102 = vector.extract_strided_slice %72 {offsets = [0, 48], sizes = [8, 8], strides = [1, 1]} : vector<8x96xf32> to vector<8x8xf32>
    %103 = vector.extract_strided_slice %72 {offsets = [0, 80], sizes = [8, 8], strides = [1, 1]} : vector<8x96xf32> to vector<8x8xf32>
    %cst_36 = arith.constant dense<0.000000e+00> : vector<8x8xf32>
    %104 = tpu.matmul %101, %102, %cst_36 {dimension_numbers = #tpu.dot_dimension_numbers<[1], [1], [0], [0], [0, 0, 1, 0], [], []>} : vector<8x8xf32>, vector<8x8xf32>, vector<8x8xf32> -> vector<8x8xf32>
    %cst_37 = arith.constant dense<0xFF800000> : vector<8xf32>
    %105 = vector.multi_reduction <maximumf>, %104, %cst_37 [1] : vector<8x8xf32> to vector<8xf32>
    %106 = vector.shape_cast %105 : vector<8xf32> to vector<8x1xf32>
    %107 = vector.broadcast %106 : vector<8x1xf32> to vector<8x8xf32>
    %108 = arith.subf %104, %107 : vector<8x8xf32>
    %109 = math.exp %108 : vector<8x8xf32>
    %cst_38 = arith.constant dense<0.000000e+00> : vector<8xf32>
    %110 = vector.multi_reduction <add>, %109, %cst_38 [1] : vector<8x8xf32> to vector<8xf32>
    %111 = vector.shape_cast %110 : vector<8xf32> to vector<8x1xf32>
    %112 = vector.broadcast %111 : vector<8x1xf32> to vector<8x8xf32>
    %113 = arith.divf %109, %112 : vector<8x8xf32>
    %cst_39 = arith.constant dense<0.000000e+00> : vector<8x8xf32>
    %114 = tpu.matmul %113, %103, %cst_39 {dimension_numbers = #tpu.dot_dimension_numbers<[1], [0], [0], [1], [0, 0, 1, 1], [], []>} : vector<8x8xf32>, vector<8x8xf32>, vector<8x8xf32> -> vector<8x8xf32>
    %115 = vector.extract_strided_slice %72 {offsets = [0, 24], sizes = [8, 8], strides = [1, 1]} : vector<8x96xf32> to vector<8x8xf32>
    %116 = vector.extract_strided_slice %72 {offsets = [0, 56], sizes = [8, 8], strides = [1, 1]} : vector<8x96xf32> to vector<8x8xf32>
    %117 = vector.extract_strided_slice %72 {offsets = [0, 88], sizes = [8, 8], strides = [1, 1]} : vector<8x96xf32> to vector<8x8xf32>
    %cst_40 = arith.constant dense<0.000000e+00> : vector<8x8xf32>
    %118 = tpu.matmul %115, %116, %cst_40 {dimension_numbers = #tpu.dot_dimension_numbers<[1], [1], [0], [0], [0, 0, 1, 0], [], []>} : vector<8x8xf32>, vector<8x8xf32>, vector<8x8xf32> -> vector<8x8xf32>
    %cst_41 = arith.constant dense<0xFF800000> : vector<8xf32>
    %119 = vector.multi_reduction <maximumf>, %118, %cst_41 [1] : vector<8x8xf32> to vector<8xf32>
    %120 = vector.shape_cast %119 : vector<8xf32> to vector<8x1xf32>
    %121 = vector.broadcast %120 : vector<8x1xf32> to vector<8x8xf32>
    %122 = arith.subf %118, %121 : vector<8x8xf32>
    %123 = math.exp %122 : vector<8x8xf32>
    %cst_42 = arith.constant dense<0.000000e+00> : vector<8xf32>
    %124 = vector.multi_reduction <add>, %123, %cst_42 [1] : vector<8x8xf32> to vector<8xf32>
    %125 = vector.shape_cast %124 : vector<8xf32> to vector<8x1xf32>
    %126 = vector.broadcast %125 : vector<8x1xf32> to vector<8x8xf32>
    %127 = arith.divf %123, %126 : vector<8x8xf32>
    %cst_43 = arith.constant dense<0.000000e+00> : vector<8x8xf32>
    %128 = tpu.matmul %127, %117, %cst_43 {dimension_numbers = #tpu.dot_dimension_numbers<[1], [0], [0], [1], [0, 0, 1, 1], [], []>} : vector<8x8xf32>, vector<8x8xf32>, vector<8x8xf32> -> vector<8x8xf32>
    %129 = tpu.concatenate %86, %100, %114, %128 in 1 : vector<8x8xf32>, vector<8x8xf32>, vector<8x8xf32>, vector<8x8xf32> -> vector<8x32xf32>
    %130 = tpu.concatenate %71, %129 in 0 : vector<8x32xf32>, vector<8x32xf32> -> vector<16x32xf32>
    %c0_44 = arith.constant 0 : index
    %c0_45 = arith.constant 0 : index
    %131 = vector.load %arg8[%c0_44, %c0_45] : memref<32x32xf32, #tpu.memory_space<vmem>>, vector<32x32xf32>
    %cst_46 = arith.constant dense<0.000000e+00> : vector<16x32xf32>
    %132 = tpu.matmul %130, %131, %cst_46 {dimension_numbers = #tpu.dot_dimension_numbers<[1], [0], [0], [1], [0, 0, 1, 1], [], []>} : vector<16x32xf32>, vector<32x32xf32>, vector<16x32xf32> -> vector<16x32xf32>
    %c0_47 = arith.constant 0 : index
    %c0_48 = arith.constant 0 : index
    %133 = vector.load %arg9[%c0_47, %c0_48] : memref<1x32xf32, #tpu.memory_space<vmem>>, vector<1x32xf32>
    %134 = vector.broadcast %133 : vector<1x32xf32> to vector<16x32xf32>
    %135 = arith.addf %132, %134 : vector<16x32xf32>
    %136 = arith.addf %8, %135 : vector<16x32xf32>
    %c0_49 = arith.constant 0 : index
    %c0_50 = arith.constant 0 : index
    %137 = vector.load %arg10[%c0_49, %c0_50] : memref<1x32xf32, #tpu.memory_space<vmem>>, vector<1x32xf32>
    %c0_51 = arith.constant 0 : index
    %c0_52 = arith.constant 0 : index
    %138 = vector.load %arg11[%c0_51, %c0_52] : memref<1x32xf32, #tpu.memory_space<vmem>>, vector<1x32xf32>
    %cst_53 = arith.constant dense<0.000000e+00> : vector<16xf32>
    %139 = vector.multi_reduction <add>, %136, %cst_53 [1] : vector<16x32xf32> to vector<16xf32>
    %140 = vector.shape_cast %139 : vector<16xf32> to vector<16x1xf32>
    %cst_54 = arith.constant 3.200000e+01 : f32
    %141 = vector.broadcast %cst_54 : f32 to vector<16x1xf32>
    %142 = arith.divf %140, %141 : vector<16x1xf32>
    %143 = vector.broadcast %142 : vector<16x1xf32> to vector<16x32xf32>
    %144 = arith.subf %136, %143 : vector<16x32xf32>
    %145 = arith.mulf %144, %144 : vector<16x32xf32>
    %cst_55 = arith.constant dense<0.000000e+00> : vector<16xf32>
    %146 = vector.multi_reduction <add>, %145, %cst_55 [1] : vector<16x32xf32> to vector<16xf32>
    %147 = vector.shape_cast %146 : vector<16xf32> to vector<16x1xf32>
    %cst_56 = arith.constant 3.200000e+01 : f32
    %148 = vector.broadcast %cst_56 : f32 to vector<16x1xf32>
    %149 = arith.divf %147, %148 : vector<16x1xf32>
    %150 = vector.broadcast %142 : vector<16x1xf32> to vector<16x32xf32>
    %151 = arith.subf %136, %150 : vector<16x32xf32>
    %cst_57 = arith.constant 9.99999974E-6 : f32
    %152 = vector.broadcast %cst_57 : f32 to vector<16x1xf32>
    %153 = arith.addf %149, %152 : vector<16x1xf32>
    %154 = math.rsqrt %153 : vector<16x1xf32>
    %155 = vector.broadcast %154 : vector<16x1xf32> to vector<16x32xf32>
    %156 = arith.mulf %151, %155 : vector<16x32xf32>
    %157 = vector.broadcast %137 : vector<1x32xf32> to vector<16x32xf32>
    %158 = arith.mulf %156, %157 : vector<16x32xf32>
    %159 = vector.broadcast %138 : vector<1x32xf32> to vector<16x32xf32>
    %160 = arith.addf %158, %159 : vector<16x32xf32>
    %c0_58 = arith.constant 0 : index
    %c0_59 = arith.constant 0 : index
    %161 = vector.load %arg12[%c0_58, %c0_59] : memref<32x64xf32, #tpu.memory_space<vmem>>, vector<32x64xf32>
    %cst_60 = arith.constant dense<0.000000e+00> : vector<16x64xf32>
    %162 = tpu.matmul %160, %161, %cst_60 {dimension_numbers = #tpu.dot_dimension_numbers<[1], [0], [0], [1], [0, 0, 1, 1], [], []>} : vector<16x32xf32>, vector<32x64xf32>, vector<16x64xf32> -> vector<16x64xf32>
    %c0_61 = arith.constant 0 : index
    %c0_62 = arith.constant 0 : index
    %163 = vector.load %arg13[%c0_61, %c0_62] : memref<1x64xf32, #tpu.memory_space<vmem>>, vector<1x64xf32>
    %164 = vector.broadcast %163 : vector<1x64xf32> to vector<16x64xf32>
    %165 = arith.addf %162, %164 : vector<16x64xf32>
    %cst_63 = arith.constant 0.000000e+00 : f32
    %166 = vector.broadcast %cst_63 : f32 to vector<16x64xf32>
    %167 = arith.maximumf %165, %166 : vector<16x64xf32>
    %c0_64 = arith.constant 0 : index
    %c0_65 = arith.constant 0 : index
    %168 = vector.load %arg14[%c0_64, %c0_65] : memref<64x32xf32, #tpu.memory_space<vmem>>, vector<64x32xf32>
    %cst_66 = arith.constant dense<0.000000e+00> : vector<16x32xf32>
    %169 = tpu.matmul %167, %168, %cst_66 {dimension_numbers = #tpu.dot_dimension_numbers<[1], [0], [0], [1], [0, 0, 1, 1], [], []>} : vector<16x64xf32>, vector<64x32xf32>, vector<16x32xf32> -> vector<16x32xf32>
    %c0_67 = arith.constant 0 : index
    %c0_68 = arith.constant 0 : index
    %170 = vector.load %arg15[%c0_67, %c0_68] : memref<1x32xf32, #tpu.memory_space<vmem>>, vector<1x32xf32>
    %171 = vector.broadcast %170 : vector<1x32xf32> to vector<16x32xf32>
    %172 = arith.addf %169, %171 : vector<16x32xf32>
    %173 = arith.addf %160, %172 : vector<16x32xf32>
    %c0_69 = arith.constant 0 : index
    %c0_70 = arith.constant 0 : index
    %174 = vector.load %arg16[%c0_69, %c0_70] : memref<1x32xf32, #tpu.memory_space<vmem>>, vector<1x32xf32>
    %c0_71 = arith.constant 0 : index
    %c0_72 = arith.constant 0 : index
    %175 = vector.load %arg17[%c0_71, %c0_72] : memref<1x32xf32, #tpu.memory_space<vmem>>, vector<1x32xf32>
    %cst_73 = arith.constant dense<0.000000e+00> : vector<16xf32>
    %176 = vector.multi_reduction <add>, %173, %cst_73 [1] : vector<16x32xf32> to vector<16xf32>
    %177 = vector.shape_cast %176 : vector<16xf32> to vector<16x1xf32>
    %cst_74 = arith.constant 3.200000e+01 : f32
    %178 = vector.broadcast %cst_74 : f32 to vector<16x1xf32>
    %179 = arith.divf %177, %178 : vector<16x1xf32>
    %180 = vector.broadcast %179 : vector<16x1xf32> to vector<16x32xf32>
    %181 = arith.subf %173, %180 : vector<16x32xf32>
    %182 = arith.mulf %181, %181 : vector<16x32xf32>
    %cst_75 = arith.constant dense<0.000000e+00> : vector<16xf32>
    %183 = vector.multi_reduction <add>, %182, %cst_75 [1] : vector<16x32xf32> to vector<16xf32>
    %184 = vector.shape_cast %183 : vector<16xf32> to vector<16x1xf32>
    %cst_76 = arith.constant 3.200000e+01 : f32
    %185 = vector.broadcast %cst_76 : f32 to vector<16x1xf32>
    %186 = arith.divf %184, %185 : vector<16x1xf32>
    %187 = vector.broadcast %179 : vector<16x1xf32> to vector<16x32xf32>
    %188 = arith.subf %173, %187 : vector<16x32xf32>
    %cst_77 = arith.constant 9.99999974E-6 : f32
    %189 = vector.broadcast %cst_77 : f32 to vector<16x1xf32>
    %190 = arith.addf %186, %189 : vector<16x1xf32>
    %191 = math.rsqrt %190 : vector<16x1xf32>
    %192 = vector.broadcast %191 : vector<16x1xf32> to vector<16x32xf32>
    %193 = arith.mulf %188, %192 : vector<16x32xf32>
    %194 = vector.broadcast %174 : vector<1x32xf32> to vector<16x32xf32>
    %195 = arith.mulf %193, %194 : vector<16x32xf32>
    %196 = vector.broadcast %175 : vector<1x32xf32> to vector<16x32xf32>
    %197 = arith.addf %195, %196 : vector<16x32xf32>
    %c0_78 = arith.constant 0 : index
    %c0_79 = arith.constant 0 : index
    %198 = vector.load %arg18[%c0_78, %c0_79] : memref<32x96xf32, #tpu.memory_space<vmem>>, vector<32x96xf32>
    %cst_80 = arith.constant dense<0.000000e+00> : vector<16x96xf32>
    %199 = tpu.matmul %197, %198, %cst_80 {dimension_numbers = #tpu.dot_dimension_numbers<[1], [0], [0], [1], [0, 0, 1, 1], [], []>} : vector<16x32xf32>, vector<32x96xf32>, vector<16x96xf32> -> vector<16x96xf32>
    %c0_81 = arith.constant 0 : index
    %c0_82 = arith.constant 0 : index
    %200 = vector.load %arg19[%c0_81, %c0_82] : memref<1x96xf32, #tpu.memory_space<vmem>>, vector<1x96xf32>
    %201 = vector.broadcast %200 : vector<1x96xf32> to vector<16x96xf32>
    %202 = arith.addf %199, %201 : vector<16x96xf32>
    %203 = vector.extract_strided_slice %202 {offsets = [0, 0], sizes = [8, 96], strides = [1, 1]} : vector<16x96xf32> to vector<8x96xf32>
    %204 = vector.extract_strided_slice %203 {offsets = [0, 0], sizes = [8, 8], strides = [1, 1]} : vector<8x96xf32> to vector<8x8xf32>
    %205 = vector.extract_strided_slice %203 {offsets = [0, 32], sizes = [8, 8], strides = [1, 1]} : vector<8x96xf32> to vector<8x8xf32>
    %206 = vector.extract_strided_slice %203 {offsets = [0, 64], sizes = [8, 8], strides = [1, 1]} : vector<8x96xf32> to vector<8x8xf32>
    %cst_83 = arith.constant dense<0.000000e+00> : vector<8x8xf32>
    %207 = tpu.matmul %204, %205, %cst_83 {dimension_numbers = #tpu.dot_dimension_numbers<[1], [1], [0], [0], [0, 0, 1, 0], [], []>} : vector<8x8xf32>, vector<8x8xf32>, vector<8x8xf32> -> vector<8x8xf32>
    %cst_84 = arith.constant dense<0xFF800000> : vector<8xf32>
    %208 = vector.multi_reduction <maximumf>, %207, %cst_84 [1] : vector<8x8xf32> to vector<8xf32>
    %209 = vector.shape_cast %208 : vector<8xf32> to vector<8x1xf32>
    %210 = vector.broadcast %209 : vector<8x1xf32> to vector<8x8xf32>
    %211 = arith.subf %207, %210 : vector<8x8xf32>
    %212 = math.exp %211 : vector<8x8xf32>
    %cst_85 = arith.constant dense<0.000000e+00> : vector<8xf32>
    %213 = vector.multi_reduction <add>, %212, %cst_85 [1] : vector<8x8xf32> to vector<8xf32>
    %214 = vector.shape_cast %213 : vector<8xf32> to vector<8x1xf32>
    %215 = vector.broadcast %214 : vector<8x1xf32> to vector<8x8xf32>
    %216 = arith.divf %212, %215 : vector<8x8xf32>
    %cst_86 = arith.constant dense<0.000000e+00> : vector<8x8xf32>
    %217 = tpu.matmul %216, %206, %cst_86 {dimension_numbers = #tpu.dot_dimension_numbers<[1], [0], [0], [1], [0, 0, 1, 1], [], []>} : vector<8x8xf32>, vector<8x8xf32>, vector<8x8xf32> -> vector<8x8xf32>
    %218 = vector.extract_strided_slice %203 {offsets = [0, 8], sizes = [8, 8], strides = [1, 1]} : vector<8x96xf32> to vector<8x8xf32>
    %219 = vector.extract_strided_slice %203 {offsets = [0, 40], sizes = [8, 8], strides = [1, 1]} : vector<8x96xf32> to vector<8x8xf32>
    %220 = vector.extract_strided_slice %203 {offsets = [0, 72], sizes = [8, 8], strides = [1, 1]} : vector<8x96xf32> to vector<8x8xf32>
    %cst_87 = arith.constant dense<0.000000e+00> : vector<8x8xf32>
    %221 = tpu.matmul %218, %219, %cst_87 {dimension_numbers = #tpu.dot_dimension_numbers<[1], [1], [0], [0], [0, 0, 1, 0], [], []>} : vector<8x8xf32>, vector<8x8xf32>, vector<8x8xf32> -> vector<8x8xf32>
    %cst_88 = arith.constant dense<0xFF800000> : vector<8xf32>
    %222 = vector.multi_reduction <maximumf>, %221, %cst_88 [1] : vector<8x8xf32> to vector<8xf32>
    %223 = vector.shape_cast %222 : vector<8xf32> to vector<8x1xf32>
    %224 = vector.broadcast %223 : vector<8x1xf32> to vector<8x8xf32>
    %225 = arith.subf %221, %224 : vector<8x8xf32>
    %226 = math.exp %225 : vector<8x8xf32>
    %cst_89 = arith.constant dense<0.000000e+00> : vector<8xf32>
    %227 = vector.multi_reduction <add>, %226, %cst_89 [1] : vector<8x8xf32> to vector<8xf32>
    %228 = vector.shape_cast %227 : vector<8xf32> to vector<8x1xf32>
    %229 = vector.broadcast %228 : vector<8x1xf32> to vector<8x8xf32>
    %230 = arith.divf %226, %229 : vector<8x8xf32>
    %cst_90 = arith.constant dense<0.000000e+00> : vector<8x8xf32>
    %231 = tpu.matmul %230, %220, %cst_90 {dimension_numbers = #tpu.dot_dimension_numbers<[1], [0], [0], [1], [0, 0, 1, 1], [], []>} : vector<8x8xf32>, vector<8x8xf32>, vector<8x8xf32> -> vector<8x8xf32>
    %232 = vector.extract_strided_slice %203 {offsets = [0, 16], sizes = [8, 8], strides = [1, 1]} : vector<8x96xf32> to vector<8x8xf32>
    %233 = vector.extract_strided_slice %203 {offsets = [0, 48], sizes = [8, 8], strides = [1, 1]} : vector<8x96xf32> to vector<8x8xf32>
    %234 = vector.extract_strided_slice %203 {offsets = [0, 80], sizes = [8, 8], strides = [1, 1]} : vector<8x96xf32> to vector<8x8xf32>
    %cst_91 = arith.constant dense<0.000000e+00> : vector<8x8xf32>
    %235 = tpu.matmul %232, %233, %cst_91 {dimension_numbers = #tpu.dot_dimension_numbers<[1], [1], [0], [0], [0, 0, 1, 0], [], []>} : vector<8x8xf32>, vector<8x8xf32>, vector<8x8xf32> -> vector<8x8xf32>
    %cst_92 = arith.constant dense<0xFF800000> : vector<8xf32>
    %236 = vector.multi_reduction <maximumf>, %235, %cst_92 [1] : vector<8x8xf32> to vector<8xf32>
    %237 = vector.shape_cast %236 : vector<8xf32> to vector<8x1xf32>
    %238 = vector.broadcast %237 : vector<8x1xf32> to vector<8x8xf32>
    %239 = arith.subf %235, %238 : vector<8x8xf32>
    %240 = math.exp %239 : vector<8x8xf32>
    %cst_93 = arith.constant dense<0.000000e+00> : vector<8xf32>
    %241 = vector.multi_reduction <add>, %240, %cst_93 [1] : vector<8x8xf32> to vector<8xf32>
    %242 = vector.shape_cast %241 : vector<8xf32> to vector<8x1xf32>
    %243 = vector.broadcast %242 : vector<8x1xf32> to vector<8x8xf32>
    %244 = arith.divf %240, %243 : vector<8x8xf32>
    %cst_94 = arith.constant dense<0.000000e+00> : vector<8x8xf32>
    %245 = tpu.matmul %244, %234, %cst_94 {dimension_numbers = #tpu.dot_dimension_numbers<[1], [0], [0], [1], [0, 0, 1, 1], [], []>} : vector<8x8xf32>, vector<8x8xf32>, vector<8x8xf32> -> vector<8x8xf32>
    %246 = vector.extract_strided_slice %203 {offsets = [0, 24], sizes = [8, 8], strides = [1, 1]} : vector<8x96xf32> to vector<8x8xf32>
    %247 = vector.extract_strided_slice %203 {offsets = [0, 56], sizes = [8, 8], strides = [1, 1]} : vector<8x96xf32> to vector<8x8xf32>
    %248 = vector.extract_strided_slice %203 {offsets = [0, 88], sizes = [8, 8], strides = [1, 1]} : vector<8x96xf32> to vector<8x8xf32>
    %cst_95 = arith.constant dense<0.000000e+00> : vector<8x8xf32>
    %249 = tpu.matmul %246, %247, %cst_95 {dimension_numbers = #tpu.dot_dimension_numbers<[1], [1], [0], [0], [0, 0, 1, 0], [], []>} : vector<8x8xf32>, vector<8x8xf32>, vector<8x8xf32> -> vector<8x8xf32>
    %cst_96 = arith.constant dense<0xFF800000> : vector<8xf32>
    %250 = vector.multi_reduction <maximumf>, %249, %cst_96 [1] : vector<8x8xf32> to vector<8xf32>
    %251 = vector.shape_cast %250 : vector<8xf32> to vector<8x1xf32>
    %252 = vector.broadcast %251 : vector<8x1xf32> to vector<8x8xf32>
    %253 = arith.subf %249, %252 : vector<8x8xf32>
    %254 = math.exp %253 : vector<8x8xf32>
    %cst_97 = arith.constant dense<0.000000e+00> : vector<8xf32>
    %255 = vector.multi_reduction <add>, %254, %cst_97 [1] : vector<8x8xf32> to vector<8xf32>
    %256 = vector.shape_cast %255 : vector<8xf32> to vector<8x1xf32>
    %257 = vector.broadcast %256 : vector<8x1xf32> to vector<8x8xf32>
    %258 = arith.divf %254, %257 : vector<8x8xf32>
    %cst_98 = arith.constant dense<0.000000e+00> : vector<8x8xf32>
    %259 = tpu.matmul %258, %248, %cst_98 {dimension_numbers = #tpu.dot_dimension_numbers<[1], [0], [0], [1], [0, 0, 1, 1], [], []>} : vector<8x8xf32>, vector<8x8xf32>, vector<8x8xf32> -> vector<8x8xf32>
    %260 = tpu.concatenate %217, %231, %245, %259 in 1 : vector<8x8xf32>, vector<8x8xf32>, vector<8x8xf32>, vector<8x8xf32> -> vector<8x32xf32>
    %261 = vector.extract_strided_slice %202 {offsets = [8, 0], sizes = [8, 96], strides = [1, 1]} : vector<16x96xf32> to vector<8x96xf32>
    %262 = vector.extract_strided_slice %261 {offsets = [0, 0], sizes = [8, 8], strides = [1, 1]} : vector<8x96xf32> to vector<8x8xf32>
    %263 = vector.extract_strided_slice %261 {offsets = [0, 32], sizes = [8, 8], strides = [1, 1]} : vector<8x96xf32> to vector<8x8xf32>
    %264 = vector.extract_strided_slice %261 {offsets = [0, 64], sizes = [8, 8], strides = [1, 1]} : vector<8x96xf32> to vector<8x8xf32>
    %cst_99 = arith.constant dense<0.000000e+00> : vector<8x8xf32>
    %265 = tpu.matmul %262, %263, %cst_99 {dimension_numbers = #tpu.dot_dimension_numbers<[1], [1], [0], [0], [0, 0, 1, 0], [], []>} : vector<8x8xf32>, vector<8x8xf32>, vector<8x8xf32> -> vector<8x8xf32>
    %cst_100 = arith.constant dense<0xFF800000> : vector<8xf32>
    %266 = vector.multi_reduction <maximumf>, %265, %cst_100 [1] : vector<8x8xf32> to vector<8xf32>
    %267 = vector.shape_cast %266 : vector<8xf32> to vector<8x1xf32>
    %268 = vector.broadcast %267 : vector<8x1xf32> to vector<8x8xf32>
    %269 = arith.subf %265, %268 : vector<8x8xf32>
    %270 = math.exp %269 : vector<8x8xf32>
    %cst_101 = arith.constant dense<0.000000e+00> : vector<8xf32>
    %271 = vector.multi_reduction <add>, %270, %cst_101 [1] : vector<8x8xf32> to vector<8xf32>
    %272 = vector.shape_cast %271 : vector<8xf32> to vector<8x1xf32>
    %273 = vector.broadcast %272 : vector<8x1xf32> to vector<8x8xf32>
    %274 = arith.divf %270, %273 : vector<8x8xf32>
    %cst_102 = arith.constant dense<0.000000e+00> : vector<8x8xf32>
    %275 = tpu.matmul %274, %264, %cst_102 {dimension_numbers = #tpu.dot_dimension_numbers<[1], [0], [0], [1], [0, 0, 1, 1], [], []>} : vector<8x8xf32>, vector<8x8xf32>, vector<8x8xf32> -> vector<8x8xf32>
    %276 = vector.extract_strided_slice %261 {offsets = [0, 8], sizes = [8, 8], strides = [1, 1]} : vector<8x96xf32> to vector<8x8xf32>
    %277 = vector.extract_strided_slice %261 {offsets = [0, 40], sizes = [8, 8], strides = [1, 1]} : vector<8x96xf32> to vector<8x8xf32>
    %278 = vector.extract_strided_slice %261 {offsets = [0, 72], sizes = [8, 8], strides = [1, 1]} : vector<8x96xf32> to vector<8x8xf32>
    %cst_103 = arith.constant dense<0.000000e+00> : vector<8x8xf32>
    %279 = tpu.matmul %276, %277, %cst_103 {dimension_numbers = #tpu.dot_dimension_numbers<[1], [1], [0], [0], [0, 0, 1, 0], [], []>} : vector<8x8xf32>, vector<8x8xf32>, vector<8x8xf32> -> vector<8x8xf32>
    %cst_104 = arith.constant dense<0xFF800000> : vector<8xf32>
    %280 = vector.multi_reduction <maximumf>, %279, %cst_104 [1] : vector<8x8xf32> to vector<8xf32>
    %281 = vector.shape_cast %280 : vector<8xf32> to vector<8x1xf32>
    %282 = vector.broadcast %281 : vector<8x1xf32> to vector<8x8xf32>
    %283 = arith.subf %279, %282 : vector<8x8xf32>
    %284 = math.exp %283 : vector<8x8xf32>
    %cst_105 = arith.constant dense<0.000000e+00> : vector<8xf32>
    %285 = vector.multi_reduction <add>, %284, %cst_105 [1] : vector<8x8xf32> to vector<8xf32>
    %286 = vector.shape_cast %285 : vector<8xf32> to vector<8x1xf32>
    %287 = vector.broadcast %286 : vector<8x1xf32> to vector<8x8xf32>
    %288 = arith.divf %284, %287 : vector<8x8xf32>
    %cst_106 = arith.constant dense<0.000000e+00> : vector<8x8xf32>
    %289 = tpu.matmul %288, %278, %cst_106 {dimension_numbers = #tpu.dot_dimension_numbers<[1], [0], [0], [1], [0, 0, 1, 1], [], []>} : vector<8x8xf32>, vector<8x8xf32>, vector<8x8xf32> -> vector<8x8xf32>
    %290 = vector.extract_strided_slice %261 {offsets = [0, 16], sizes = [8, 8], strides = [1, 1]} : vector<8x96xf32> to vector<8x8xf32>
    %291 = vector.extract_strided_slice %261 {offsets = [0, 48], sizes = [8, 8], strides = [1, 1]} : vector<8x96xf32> to vector<8x8xf32>
    %292 = vector.extract_strided_slice %261 {offsets = [0, 80], sizes = [8, 8], strides = [1, 1]} : vector<8x96xf32> to vector<8x8xf32>
    %cst_107 = arith.constant dense<0.000000e+00> : vector<8x8xf32>
    %293 = tpu.matmul %290, %291, %cst_107 {dimension_numbers = #tpu.dot_dimension_numbers<[1], [1], [0], [0], [0, 0, 1, 0], [], []>} : vector<8x8xf32>, vector<8x8xf32>, vector<8x8xf32> -> vector<8x8xf32>
    %cst_108 = arith.constant dense<0xFF800000> : vector<8xf32>
    %294 = vector.multi_reduction <maximumf>, %293, %cst_108 [1] : vector<8x8xf32> to vector<8xf32>
    %295 = vector.shape_cast %294 : vector<8xf32> to vector<8x1xf32>
    %296 = vector.broadcast %295 : vector<8x1xf32> to vector<8x8xf32>
    %297 = arith.subf %293, %296 : vector<8x8xf32>
    %298 = math.exp %297 : vector<8x8xf32>
    %cst_109 = arith.constant dense<0.000000e+00> : vector<8xf32>
    %299 = vector.multi_reduction <add>, %298, %cst_109 [1] : vector<8x8xf32> to vector<8xf32>
    %300 = vector.shape_cast %299 : vector<8xf32> to vector<8x1xf32>
    %301 = vector.broadcast %300 : vector<8x1xf32> to vector<8x8xf32>
    %302 = arith.divf %298, %301 : vector<8x8xf32>
    %cst_110 = arith.constant dense<0.000000e+00> : vector<8x8xf32>
    %303 = tpu.matmul %302, %292, %cst_110 {dimension_numbers = #tpu.dot_dimension_numbers<[1], [0], [0], [1], [0, 0, 1, 1], [], []>} : vector<8x8xf32>, vector<8x8xf32>, vector<8x8xf32> -> vector<8x8xf32>
    %304 = vector.extract_strided_slice %261 {offsets = [0, 24], sizes = [8, 8], strides = [1, 1]} : vector<8x96xf32> to vector<8x8xf32>
    %305 = vector.extract_strided_slice %261 {offsets = [0, 56], sizes = [8, 8], strides = [1, 1]} : vector<8x96xf32> to vector<8x8xf32>
    %306 = vector.extract_strided_slice %261 {offsets = [0, 88], sizes = [8, 8], strides = [1, 1]} : vector<8x96xf32> to vector<8x8xf32>
    %cst_111 = arith.constant dense<0.000000e+00> : vector<8x8xf32>
    %307 = tpu.matmul %304, %305, %cst_111 {dimension_numbers = #tpu.dot_dimension_numbers<[1], [1], [0], [0], [0, 0, 1, 0], [], []>} : vector<8x8xf32>, vector<8x8xf32>, vector<8x8xf32> -> vector<8x8xf32>
    %cst_112 = arith.constant dense<0xFF800000> : vector<8xf32>
    %308 = vector.multi_reduction <maximumf>, %307, %cst_112 [1] : vector<8x8xf32> to vector<8xf32>
    %309 = vector.shape_cast %308 : vector<8xf32> to vector<8x1xf32>
    %310 = vector.broadcast %309 : vector<8x1xf32> to vector<8x8xf32>
    %311 = arith.subf %307, %310 : vector<8x8xf32>
    %312 = math.exp %311 : vector<8x8xf32>
    %cst_113 = arith.constant dense<0.000000e+00> : vector<8xf32>
    %313 = vector.multi_reduction <add>, %312, %cst_113 [1] : vector<8x8xf32> to vector<8xf32>
    %314 = vector.shape_cast %313 : vector<8xf32> to vector<8x1xf32>
    %315 = vector.broadcast %314 : vector<8x1xf32> to vector<8x8xf32>
    %316 = arith.divf %312, %315 : vector<8x8xf32>
    %cst_114 = arith.constant dense<0.000000e+00> : vector<8x8xf32>
    %317 = tpu.matmul %316, %306, %cst_114 {dimension_numbers = #tpu.dot_dimension_numbers<[1], [0], [0], [1], [0, 0, 1, 1], [], []>} : vector<8x8xf32>, vector<8x8xf32>, vector<8x8xf32> -> vector<8x8xf32>
    %318 = tpu.concatenate %275, %289, %303, %317 in 1 : vector<8x8xf32>, vector<8x8xf32>, vector<8x8xf32>, vector<8x8xf32> -> vector<8x32xf32>
    %319 = tpu.concatenate %260, %318 in 0 : vector<8x32xf32>, vector<8x32xf32> -> vector<16x32xf32>
    %c0_115 = arith.constant 0 : index
    %c0_116 = arith.constant 0 : index
    %320 = vector.load %arg20[%c0_115, %c0_116] : memref<32x32xf32, #tpu.memory_space<vmem>>, vector<32x32xf32>
    %cst_117 = arith.constant dense<0.000000e+00> : vector<16x32xf32>
    %321 = tpu.matmul %319, %320, %cst_117 {dimension_numbers = #tpu.dot_dimension_numbers<[1], [0], [0], [1], [0, 0, 1, 1], [], []>} : vector<16x32xf32>, vector<32x32xf32>, vector<16x32xf32> -> vector<16x32xf32>
    %c0_118 = arith.constant 0 : index
    %c0_119 = arith.constant 0 : index
    %322 = vector.load %arg21[%c0_118, %c0_119] : memref<1x32xf32, #tpu.memory_space<vmem>>, vector<1x32xf32>
    %323 = vector.broadcast %322 : vector<1x32xf32> to vector<16x32xf32>
    %324 = arith.addf %321, %323 : vector<16x32xf32>
    %325 = arith.addf %197, %324 : vector<16x32xf32>
    %c0_120 = arith.constant 0 : index
    %c0_121 = arith.constant 0 : index
    %326 = vector.load %arg22[%c0_120, %c0_121] : memref<1x32xf32, #tpu.memory_space<vmem>>, vector<1x32xf32>
    %c0_122 = arith.constant 0 : index
    %c0_123 = arith.constant 0 : index
    %327 = vector.load %arg23[%c0_122, %c0_123] : memref<1x32xf32, #tpu.memory_space<vmem>>, vector<1x32xf32>
    %cst_124 = arith.constant dense<0.000000e+00> : vector<16xf32>
    %328 = vector.multi_reduction <add>, %325, %cst_124 [1] : vector<16x32xf32> to vector<16xf32>
    %329 = vector.shape_cast %328 : vector<16xf32> to vector<16x1xf32>
    %cst_125 = arith.constant 3.200000e+01 : f32
    %330 = vector.broadcast %cst_125 : f32 to vector<16x1xf32>
    %331 = arith.divf %329, %330 : vector<16x1xf32>
    %332 = vector.broadcast %331 : vector<16x1xf32> to vector<16x32xf32>
    %333 = arith.subf %325, %332 : vector<16x32xf32>
    %334 = arith.mulf %333, %333 : vector<16x32xf32>
    %cst_126 = arith.constant dense<0.000000e+00> : vector<16xf32>
    %335 = vector.multi_reduction <add>, %334, %cst_126 [1] : vector<16x32xf32> to vector<16xf32>
    %336 = vector.shape_cast %335 : vector<16xf32> to vector<16x1xf32>
    %cst_127 = arith.constant 3.200000e+01 : f32
    %337 = vector.broadcast %cst_127 : f32 to vector<16x1xf32>
    %338 = arith.divf %336, %337 : vector<16x1xf32>
    %339 = vector.broadcast %331 : vector<16x1xf32> to vector<16x32xf32>
    %340 = arith.subf %325, %339 : vector<16x32xf32>
    %cst_128 = arith.constant 9.99999974E-6 : f32
    %341 = vector.broadcast %cst_128 : f32 to vector<16x1xf32>
    %342 = arith.addf %338, %341 : vector<16x1xf32>
    %343 = math.rsqrt %342 : vector<16x1xf32>
    %344 = vector.broadcast %343 : vector<16x1xf32> to vector<16x32xf32>
    %345 = arith.mulf %340, %344 : vector<16x32xf32>
    %346 = vector.broadcast %326 : vector<1x32xf32> to vector<16x32xf32>
    %347 = arith.mulf %345, %346 : vector<16x32xf32>
    %348 = vector.broadcast %327 : vector<1x32xf32> to vector<16x32xf32>
    %349 = arith.addf %347, %348 : vector<16x32xf32>
    %c0_129 = arith.constant 0 : index
    %c0_130 = arith.constant 0 : index
    %350 = vector.load %arg24[%c0_129, %c0_130] : memref<32x64xf32, #tpu.memory_space<vmem>>, vector<32x64xf32>
    %cst_131 = arith.constant dense<0.000000e+00> : vector<16x64xf32>
    %351 = tpu.matmul %349, %350, %cst_131 {dimension_numbers = #tpu.dot_dimension_numbers<[1], [0], [0], [1], [0, 0, 1, 1], [], []>} : vector<16x32xf32>, vector<32x64xf32>, vector<16x64xf32> -> vector<16x64xf32>
    %c0_132 = arith.constant 0 : index
    %c0_133 = arith.constant 0 : index
    %352 = vector.load %arg25[%c0_132, %c0_133] : memref<1x64xf32, #tpu.memory_space<vmem>>, vector<1x64xf32>
    %353 = vector.broadcast %352 : vector<1x64xf32> to vector<16x64xf32>
    %354 = arith.addf %351, %353 : vector<16x64xf32>
    %cst_134 = arith.constant 0.000000e+00 : f32
    %355 = vector.broadcast %cst_134 : f32 to vector<16x64xf32>
    %356 = arith.maximumf %354, %355 : vector<16x64xf32>
    %c0_135 = arith.constant 0 : index
    %c0_136 = arith.constant 0 : index
    %357 = vector.load %arg26[%c0_135, %c0_136] : memref<64x32xf32, #tpu.memory_space<vmem>>, vector<64x32xf32>
    %cst_137 = arith.constant dense<0.000000e+00> : vector<16x32xf32>
    %358 = tpu.matmul %356, %357, %cst_137 {dimension_numbers = #tpu.dot_dimension_numbers<[1], [0], [0], [1], [0, 0, 1, 1], [], []>} : vector<16x64xf32>, vector<64x32xf32>, vector<16x32xf32> -> vector<16x32xf32>
    %c0_138 = arith.constant 0 : index
    %c0_139 = arith.constant 0 : index
    %359 = vector.load %arg27[%c0_138, %c0_139] : memref<1x32xf32, #tpu.memory_space<vmem>>, vector<1x32xf32>
    %360 = vector.broadcast %359 : vector<1x32xf32> to vector<16x32xf32>
    %361 = arith.addf %358, %360 : vector<16x32xf32>
    %362 = arith.addf %349, %361 : vector<16x32xf32>
    %c0_140 = arith.constant 0 : index
    %c0_141 = arith.constant 0 : index
    %363 = vector.load %arg28[%c0_140, %c0_141] : memref<1x32xf32, #tpu.memory_space<vmem>>, vector<1x32xf32>
    %c0_142 = arith.constant 0 : index
    %c0_143 = arith.constant 0 : index
    %364 = vector.load %arg29[%c0_142, %c0_143] : memref<1x32xf32, #tpu.memory_space<vmem>>, vector<1x32xf32>
    %cst_144 = arith.constant dense<0.000000e+00> : vector<16xf32>
    %365 = vector.multi_reduction <add>, %362, %cst_144 [1] : vector<16x32xf32> to vector<16xf32>
    %366 = vector.shape_cast %365 : vector<16xf32> to vector<16x1xf32>
    %cst_145 = arith.constant 3.200000e+01 : f32
    %367 = vector.broadcast %cst_145 : f32 to vector<16x1xf32>
    %368 = arith.divf %366, %367 : vector<16x1xf32>
    %369 = vector.broadcast %368 : vector<16x1xf32> to vector<16x32xf32>
    %370 = arith.subf %362, %369 : vector<16x32xf32>
    %371 = arith.mulf %370, %370 : vector<16x32xf32>
    %cst_146 = arith.constant dense<0.000000e+00> : vector<16xf32>
    %372 = vector.multi_reduction <add>, %371, %cst_146 [1] : vector<16x32xf32> to vector<16xf32>
    %373 = vector.shape_cast %372 : vector<16xf32> to vector<16x1xf32>
    %cst_147 = arith.constant 3.200000e+01 : f32
    %374 = vector.broadcast %cst_147 : f32 to vector<16x1xf32>
    %375 = arith.divf %373, %374 : vector<16x1xf32>
    %376 = vector.broadcast %368 : vector<16x1xf32> to vector<16x32xf32>
    %377 = arith.subf %362, %376 : vector<16x32xf32>
    %cst_148 = arith.constant 9.99999974E-6 : f32
    %378 = vector.broadcast %cst_148 : f32 to vector<16x1xf32>
    %379 = arith.addf %375, %378 : vector<16x1xf32>
    %380 = math.rsqrt %379 : vector<16x1xf32>
    %381 = vector.broadcast %380 : vector<16x1xf32> to vector<16x32xf32>
    %382 = arith.mulf %377, %381 : vector<16x32xf32>
    %383 = vector.broadcast %363 : vector<1x32xf32> to vector<16x32xf32>
    %384 = arith.mulf %382, %383 : vector<16x32xf32>
    %385 = vector.broadcast %364 : vector<1x32xf32> to vector<16x32xf32>
    %386 = arith.addf %384, %385 : vector<16x32xf32>
    %c0_149 = arith.constant 0 : index
    %c0_150 = arith.constant 0 : index
    %387 = vector.load %arg4[%c0_149, %c0_150] : memref<32x32xf32, #tpu.memory_space<vmem>>, vector<32x32xf32>
    %cst_151 = arith.constant dense<0.000000e+00> : vector<16x32xf32>
    %388 = tpu.matmul %386, %387, %cst_151 {dimension_numbers = #tpu.dot_dimension_numbers<[1], [0], [0], [1], [0, 0, 1, 1], [], []>} : vector<16x32xf32>, vector<32x32xf32>, vector<16x32xf32> -> vector<16x32xf32>
    %c0_152 = arith.constant 0 : index
    %c0_153 = arith.constant 0 : index
    %389 = vector.load %arg5[%c0_152, %c0_153] : memref<1x32xf32, #tpu.memory_space<vmem>>, vector<1x32xf32>
    %390 = vector.broadcast %389 : vector<1x32xf32> to vector<16x32xf32>
    %391 = arith.addf %388, %390 : vector<16x32xf32>
    %c0_154 = arith.constant 0 : index
    %c0_155 = arith.constant 0 : index
    %392 = vector.load %arg30[%c0_154, %c0_155] : memref<16x32xf32, #tpu.memory_space<vmem>>, vector<16x32xf32>
    tpu.vector_store %arg30[%c0_154, %c0_155], %391 {strides = array<i32>} : memref<16x32xf32, #tpu.memory_space<vmem>>, vector<16x32xf32>,
    return
  }
}

</mosaic_0001>

<llo_original>
// kernel: encoder_forward.1
$region0: #{encoder_forward.1}
  #allocation0 [shape = 'u32[]', space=smem, size = 0x4, offset = 0x4, fixed_abs, tag = 'smem constant byte address 0x4 - core index']
  #allocation1 [shape = 'u32[144,128]{1,0:T(1,128)}', space=vmem, size = 0x12000, scoped, tag = 'internal scratch']
  %s0 = inlined_call_operand.smem [shape: u32[31], index: -1, kind: input, shape index: {}]
  %s1 = sld [smem:[%s0]]
  %s2 = scalar_lea.smem %s0, 1
  %s3 = sld [smem:[%s2]]
  %s4 = scalar_lea.smem %s0, 2
  %s5 = sld [smem:[%s4]]
  %s6 = scalar_lea.smem %s0, 3
  %s7 = sld [smem:[%s6]]
  %s8 = scalar_lea.smem %s0, 4
  %s9 = sld [smem:[%s8]]
  %s10 = scalar_lea.smem %s0, 5
  %s11 = sld [smem:[%s10]]
  %s12 = scalar_lea.smem %s0, 6
  %s13 = sld [smem:[%s12]]
  %s14 = scalar_lea.smem %s0, 7
  %s15 = sld [smem:[%s14]]
  %s16 = scalar_lea.smem %s0, 8
  %s17 = sld [smem:[%s16]]
  %s18 = scalar_lea.smem %s0, 9
  %s19 = sld [smem:[%s18]]
  %s20 = scalar_lea.smem %s0, 10
  %s21 = sld [smem:[%s20]]
  %s22 = scalar_lea.smem %s0, 11
  %s23 = sld [smem:[%s22]]
  %s24 = scalar_lea.smem %s0, 12
  %s25 = sld [smem:[%s24]]
  %s26 = scalar_lea.smem %s0, 13
  %s27 = sld [smem:[%s26]]
  %s28 = scalar_lea.smem %s0, 14
  %s29 = sld [smem:[%s28]]
  %s30 = scalar_lea.smem %s0, 15
  %s31 = sld [smem:[%s30]]
  %s32 = scalar_lea.smem %s0, 16
  %s33 = sld [smem:[%s32]]
  %s34 = scalar_lea.smem %s0, 17
  %s35 = sld [smem:[%s34]]
  %s36 = scalar_lea.smem %s0, 18
  %s37 = sld [smem:[%s36]]
  %s38 = scalar_lea.smem %s0, 19
  %s39 = sld [smem:[%s38]]
  %s40 = scalar_lea.smem %s0, 20
  %s41 = sld [smem:[%s40]]
  %s42 = scalar_lea.smem %s0, 21
  %s43 = sld [smem:[%s42]]
  %s44 = scalar_lea.smem %s0, 22
  %s45 = sld [smem:[%s44]]
  %s46 = scalar_lea.smem %s0, 23
  %s47 = sld [smem:[%s46]]
  %s48 = scalar_lea.smem %s0, 24
  %s49 = sld [smem:[%s48]]
  %s50 = scalar_lea.smem %s0, 25
  %s51 = sld [smem:[%s50]]
  %s52 = scalar_lea.smem %s0, 26
  %s53 = sld [smem:[%s52]]
  %s54 = scalar_lea.smem %s0, 27
  %s55 = sld [smem:[%s54]]
  %s56 = scalar_lea.smem %s0, 28
  %s57 = sld [smem:[%s56]]
  %s58 = scalar_lea.smem %s0, 29
  %s59 = sld [smem:[%s58]]
  %s60 = scalar_lea.smem %s0, 30
  %s61 = sld [smem:[%s60]]
  %s62 = sld [smem:[#allocation0]]
  $region130: #{encoder_forward.1} parent=0
    _
  %s64 = ssub.s32 1, %s62
  %s65 = scalar_select 0, %s64, %s62
  $region1: #{encoder_forward.1} parent=0
    #allocation2 [shape = 'u8[8192]{0}', space=vmem, size = 0x2000, scoped, tag = 'output window, operand 0, single buffered']
    #allocation3 [shape = 's32[1]{0}', space=sflag, size = 0x4, scoped, tag = 'scoped memory for encoder_forward.1']
    %66 = vsyncpa [#allocation3], 0
    // Predicated region
    $region2: #{encoder_forward.1} parent=1 // pred_check
      _
    $region3: #{encoder_forward.1} parent=1 // pred_check_branch
      %68 = sbr.rel (0) target = $region5
    $region4: #{encoder_forward.1} parent=1 // pred_region
      _
    $region5: #{encoder_forward.1} parent=1 // pred_fallthru
      _
    // Predicated region
    $region6: #{encoder_forward.1} parent=1 // pred_check
      _
    $region7: #{encoder_forward.1} parent=1 // pred_check_branch
      %70 = sbr.rel (0) target = $region9
    $region8: #{encoder_forward.1} parent=1 // pred_region
      _
    $region9: #{encoder_forward.1} parent=1 // pred_fallthru
      _
    // Predicated region
    $region10: #{encoder_forward.1} parent=1 // pred_check
      _
    $region11: #{encoder_forward.1} parent=1 // pred_check_branch
      %72 = sbr.rel (0) target = $region13
    $region12: #{encoder_forward.1} parent=1 // pred_region
      _
    $region13: #{encoder_forward.1} parent=1 // pred_fallthru
      _
    // Predicated region
    $region14: #{encoder_forward.1} parent=1 // pred_check
      _
    $region15: #{encoder_forward.1} parent=1 // pred_check_branch
      %74 = sbr.rel (0) target = $region17
    $region16: #{encoder_forward.1} parent=1 // pred_region
      _
    $region17: #{encoder_forward.1} parent=1 // pred_fallthru
      _
    // Predicated region
    $region18: #{encoder_forward.1} parent=1 // pred_check
      _
    $region19: #{encoder_forward.1} parent=1 // pred_check_branch
      %76 = sbr.rel (0) target = $region21
    $region20: #{encoder_forward.1} parent=1 // pred_region
      _
    $region21: #{encoder_forward.1} parent=1 // pred_fallthru
      _
    // Predicated region
    $region22: #{encoder_forward.1} parent=1 // pred_check
      _
    $region23: #{encoder_forward.1} parent=1 // pred_check_branch
      %78 = sbr.rel (0) target = $region25
    $region24: #{encoder_forward.1} parent=1 // pred_region
      _
    $region25: #{encoder_forward.1} parent=1 // pred_fallthru
      _
    // Predicated region
    $region26: #{encoder_forward.1} parent=1 // pred_check
      _
    $region27: #{encoder_forward.1} parent=1 // pred_check_branch
      %80 = sbr.rel (0) target = $region29
    $region28: #{encoder_forward.1} parent=1 // pred_region
      _
    $region29: #{encoder_forward.1} parent=1 // pred_fallthru
      _
    // Predicated region
    $region30: #{encoder_forward.1} parent=1 // pred_check
      _
    $region31: #{encoder_forward.1} parent=1 // pred_check_branch
      %82 = sbr.rel (0) target = $region33
    $region32: #{encoder_forward.1} parent=1 // pred_region
      _
    $region33: #{encoder_forward.1} parent=1 // pred_fallthru
      _
    // Predicated region
    $region34: #{encoder_forward.1} parent=1 // pred_check
      _
    $region35: #{encoder_forward.1} parent=1 // pred_check_branch
      %84 = sbr.rel (0) target = $region37
    $region36: #{encoder_forward.1} parent=1 // pred_region
      _
    $region37: #{encoder_forward.1} parent=1 // pred_fallthru
      _
    // Predicated region
    $region38: #{encoder_forward.1} parent=1 // pred_check
      _
    $region39: #{encoder_forward.1} parent=1 // pred_check_branch
      %86 = sbr.rel (0) target = $region41
    $region40: #{encoder_forward.1} parent=1 // pred_region
      _
    $region41: #{encoder_forward.1} parent=1 // pred_fallthru
      _
    // Predicated region
    $region42: #{encoder_forward.1} parent=1 // pred_check
      _
    $region43: #{encoder_forward.1} parent=1 // pred_check_branch
      %88 = sbr.rel (0) target = $region45
    $region44: #{encoder_forward.1} parent=1 // pred_region
      _
    $region45: #{encoder_forward.1} parent=1 // pred_fallthru
      _
    // Predicated region
    $region46: #{encoder_forward.1} parent=1 // pred_check
      _
    $region47: #{encoder_forward.1} parent=1 // pred_check_branch
      %90 = sbr.rel (0) target = $region49
    $region48: #{encoder_forward.1} parent=1 // pred_region
      _
    $region49: #{encoder_forward.1} parent=1 // pred_fallthru
      _
    // Predicated region
    $region50: #{encoder_forward.1} parent=1 // pred_check
      _
    $region51: #{encoder_forward.1} parent=1 // pred_check_branch
      %92 = sbr.rel (0) target = $region53
    $region52: #{encoder_forward.1} parent=1 // pred_region
      _
    $region53: #{encoder_forward.1} parent=1 // pred_fallthru
      _
    // Predicated region
    $region54: #{encoder_forward.1} parent=1 // pred_check
      _
    $region55: #{encoder_forward.1} parent=1 // pred_check_branch
      %94 = sbr.rel (0) target = $region57
    $region56: #{encoder_forward.1} parent=1 // pred_region
      _
    $region57: #{encoder_forward.1} parent=1 // pred_fallthru
      _
    // Predicated region
    $region58: #{encoder_forward.1} parent=1 // pred_check
      _
    $region59: #{encoder_forward.1} parent=1 // pred_check_branch
      %96 = sbr.rel (0) target = $region61
    $region60: #{encoder_forward.1} parent=1 // pred_region
      _
    $region61: #{encoder_forward.1} parent=1 // pred_fallthru
      _
    // Predicated region
    $region62: #{encoder_forward.1} parent=1 // pred_check
      _
    $region63: #{encoder_forward.1} parent=1 // pred_check_branch
      %98 = sbr.rel (0) target = $region65
    $region64: #{encoder_forward.1} parent=1 // pred_region
      _
    $region65: #{encoder_forward.1} parent=1 // pred_fallthru
      _
    // Predicated region
    $region66: #{encoder_forward.1} parent=1 // pred_check
      _
    $region67: #{encoder_forward.1} parent=1 // pred_check_branch
      %100 = sbr.rel (0) target = $region69
    $region68: #{encoder_forward.1} parent=1 // pred_region
      _
    $region69: #{encoder_forward.1} parent=1 // pred_fallthru
      _
    // Predicated region
    $region70: #{encoder_forward.1} parent=1 // pred_check
      _
    $region71: #{encoder_forward.1} parent=1 // pred_check_branch
      %102 = sbr.rel (0) target = $region73
    $region72: #{encoder_forward.1} parent=1 // pred_region
      _
    $region73: #{encoder_forward.1} parent=1 // pred_fallthru
      _
    // Predicated region
    $region74: #{encoder_forward.1} parent=1 // pred_check
      _
    $region75: #{encoder_forward.1} parent=1 // pred_check_branch
      %104 = sbr.rel (0) target = $region77
    $region76: #{encoder_forward.1} parent=1 // pred_region
      _
    $region77: #{encoder_forward.1} parent=1 // pred_fallthru
      _
    // Predicated region
    $region78: #{encoder_forward.1} parent=1 // pred_check
      _
    $region79: #{encoder_forward.1} parent=1 // pred_check_branch
      %106 = sbr.rel (0) target = $region81
    $region80: #{encoder_forward.1} parent=1 // pred_region
      _
    $region81: #{encoder_forward.1} parent=1 // pred_fallthru
      _
    // Predicated region
    $region82: #{encoder_forward.1} parent=1 // pred_check
      _
    $region83: #{encoder_forward.1} parent=1 // pred_check_branch
      %108 = sbr.rel (0) target = $region85
    $region84: #{encoder_forward.1} parent=1 // pred_region
      _
    $region85: #{encoder_forward.1} parent=1 // pred_fallthru
      _
    // Predicated region
    $region86: #{encoder_forward.1} parent=1 // pred_check
      _
    $region87: #{encoder_forward.1} parent=1 // pred_check_branch
      %110 = sbr.rel (0) target = $region89
    $region88: #{encoder_forward.1} parent=1 // pred_region
      _
    $region89: #{encoder_forward.1} parent=1 // pred_fallthru
      _
    // Predicated region
    $region90: #{encoder_forward.1} parent=1 // pred_check
      _
    $region91: #{encoder_forward.1} parent=1 // pred_check_branch
      %112 = sbr.rel (0) target = $region93
    $region92: #{encoder_forward.1} parent=1 // pred_region
      _
    $region93: #{encoder_forward.1} parent=1 // pred_fallthru
      _
    // Predicated region
    $region94: #{encoder_forward.1} parent=1 // pred_check
      _
    $region95: #{encoder_forward.1} parent=1 // pred_check_branch
      %114 = sbr.rel (0) target = $region97
    $region96: #{encoder_forward.1} parent=1 // pred_region
      _
    $region97: #{encoder_forward.1} parent=1 // pred_fallthru
      _
    // Predicated region
    $region98: #{encoder_forward.1} parent=1 // pred_check
      _
    $region99: #{encoder_forward.1} parent=1 // pred_check_branch
      %116 = sbr.rel (0) target = $region101
    $region100: #{encoder_forward.1} parent=1 // pred_region
      _
    $region101: #{encoder_forward.1} parent=1 // pred_fallthru
      _
    // Predicated region
    $region102: #{encoder_forward.1} parent=1 // pred_check
      _
    $region103: #{encoder_forward.1} parent=1 // pred_check_branch
      %118 = sbr.rel (0) target = $region105
    $region104: #{encoder_forward.1} parent=1 // pred_region
      _
    $region105: #{encoder_forward.1} parent=1 // pred_fallthru
      _
    // Predicated region
    $region106: #{encoder_forward.1} parent=1 // pred_check
      _
    $region107: #{encoder_forward.1} parent=1 // pred_check_branch
      %120 = sbr.rel (0) target = $region109
    $region108: #{encoder_forward.1} parent=1 // pred_region
      _
    $region109: #{encoder_forward.1} parent=1 // pred_fallthru
      _
    // Predicated region
    $region110: #{encoder_forward.1} parent=1 // pred_check
      _
    $region111: #{encoder_forward.1} parent=1 // pred_check_branch
      %122 = sbr.rel (0) target = $region113
    $region112: #{encoder_forward.1} parent=1 // pred_region
      _
    $region113: #{encoder_forward.1} parent=1 // pred_fallthru
      _
    // Predicated region
    $region114: #{encoder_forward.1} parent=1 // pred_check
      _
    $region115: #{encoder_forward.1} parent=1 // pred_check_branch
      %124 = sbr.rel (0) target = $region117
    $region116: #{encoder_forward.1} parent=1 // pred_region
      _
    $region117: #{encoder_forward.1} parent=1 // pred_fallthru
      _
    // Predicated region
    $region118: #{encoder_forward.1} parent=1 // pred_check
      _
    $region119: #{encoder_forward.1} parent=1 // pred_check_branch
      %126 = sbr.rel (0) target = $region121
    $region120: #{encoder_forward.1} parent=1 // pred_region
      _
    $region121: #{encoder_forward.1} parent=1 // pred_fallthru
      _
    %v127 = vld [vmem:[%s1] sm:$0xff]
    %v128 = vld [vmem:[%s1 + $0x8] sm:$0xff]
    %v129 = vld [vmem:[%s3] sm:$0xff]
    %v130 = vld [vmem:[%s3 + $0x8] sm:$0xff]
    %v131 = vld [vmem:[%s5] sm:$0x1]
    %v133 = vlaneseq
    %v134 = vshrl.u32 %v133, 7
    %v135 = vsub.s32 0, %v134
    %v136 = vrot.slane %v131, %v135
    %vm138 = vcmask 130048
    %v140 = vsel %vm138, %v127, 0
    %v143 = vsel %vm138, %v128, 0
    %145 = vmatprep.subr.mxu0 0.0
    %146 = vmatpush1.msra.mxu0 0.0
    %147 = vmatprep.subr.mxu0 0.0
    %148 = vmatpush1.msra.mxu0 0.0
    %149 = vmatprep.subr.mxu0 0.0
    %150 = vmatpush1.msra.mxu0 0.0
    %151 = vmatprep.subr.mxu0 0.0
    %152 = vmatpush1.msra.mxu0 0.0
    %153 = vmatprep.subr.mxu0 0.0
    %154 = vmatpush1.msra.mxu0 0.0
    %155 = vmatprep.subr.mxu0 0.0
    %156 = vmatpush1.msra.mxu0 0.0
    %157 = vmatprep.subr.mxu0 0.0
    %158 = vmatpush1.msra.mxu0 0.0
    %159 = vmatprep.subr.mxu0 0.0
    %160 = vmatpush1.msra.mxu0 0.0
    %161 = vmatprep.subr.mxu0 0.0
    %162 = vmatpush1.msra.mxu0 0.0
    %163 = vmatprep.subr.mxu0 0.0
    %164 = vmatpush1.msra.mxu0 0.0
    %165 = vmatprep.subr.mxu0 0.0
    %166 = vmatpush1.msra.mxu0 0.0
    %167 = vmatprep.subr.mxu0 0.0
    %168 = vmatpush1.msra.mxu0 0.0
    %169 = vmatprep.subr.mxu0 0.0
    %170 = vmatpush1.msra.mxu0 0.0
    %171 = vmatprep.subr.mxu0 0.0
    %172 = vmatpush1.msra.mxu0 0.0
    %173 = vmatprep.subr.mxu0 0.0
    %174 = vmatpush1.msra.mxu0 %v130
    %175 = vmatprep.subr.mxu0 0.0
    %176 = vmatpush1.msra.mxu0 %v129
    %177 = vmatprep.subr.mxu0 0.0
    %178 = vmatpush2.msra.mxu0 0.0
    %179 = vmatprep.subr.mxu0 0.0
    %180 = vmatpush2.msra.mxu0 0.0
    %181 = vmatprep.subr.mxu0 0.0
    %182 = vmatpush2.msra.mxu0 0.0
    %183 = vmatprep.subr.mxu0 0.0
    %184 = vmatpush2.msra.mxu0 0.0
    %185 = vmatprep.subr.mxu0 0.0
    %186 = vmatpush2.msra.mxu0 0.0
    %187 = vmatprep.subr.mxu0 0.0
    %188 = vmatpush2.msra.mxu0 0.0
    %189 = vmatprep.subr.mxu0 0.0
    %190 = vmatpush2.msra.mxu0 0.0
    %191 = vmatprep.subr.mxu0 0.0
    %192 = vmatpush2.msra.mxu0 0.0
    %193 = vmatprep.subr.mxu0 0.0
    %194 = vmatpush2.msra.mxu0 0.0
    %195 = vmatprep.subr.mxu0 0.0
    %196 = vmatpush2.msra.mxu0 0.0
    %197 = vmatprep.subr.mxu0 0.0
    %198 = vmatpush2.msra.mxu0 0.0
    %199 = vmatprep.subr.mxu0 0.0
    %200 = vmatpush2.msra.mxu0 0.0
    %201 = vmatprep.subr.mxu0 0.0
    %202 = vmatpush2.msra.mxu0 0.0
    %203 = vmatprep.subr.mxu0 0.0
    %204 = vmatpush2.msra.mxu0 0.0
    %205 = vmatprep.subr.mxu0 0.0
    %206 = vmatpush2.msra.mxu0 0.0
    %207 = vmatprep.subr.mxu0 0.0
    %208 = vmatpush2.msra.mxu0 0.0
    %209 = vmatprep.mubr.f32.mxu0 0.0
    %210 = vmatmul.mubr.f32.gmra.mxu0 %v140
    %v211 = vpop.f32.mrf.mxu0
    %v212 = vadd.f32 %v136, %v211
    %v213 = vpop.f32.mrf.mxu0
    %214 = vmatprep.mubr.f32.mxu0 0.0
    %215 = vmatmul.mubr.f32.gmra.mxu0 %v143
    %v216 = vpop.f32.mrf.mxu0
    %v217 = vadd.f32 %v136, %v216
    %v218 = vpop.f32.mrf.mxu0
    %219 = vdwg.mxu0
    %v220 = vld [vmem:[%s7] sm:$0xff]
    %v221 = vadd.f32 %v212, %v220
    %v222 = vadd.f32 %v217, %v220
    %v223 = vld [vmem:[%s13] sm:$0xff]
    %v224 = vld [vmem:[%s13 + $0x8] sm:$0xff]
    %v225 = vld [vmem:[%s13 + $0x10] sm:$0xff]
    %v226 = vld [vmem:[%s13 + $0x18] sm:$0xff]
    %v227 = vld [vmem:[%s15] sm:$0x1]
    %v229 = vlaneseq
    %v230 = vshrl.u32 %v229, 7
    %v231 = vsub.s32 0, %v230
    %v232 = vrot.slane %v227, %v231
    %vm234 = vcmask 261120
    %v236 = vsel %vm234, %v221, 0
    %v239 = vsel %vm234, %v222, 0
    %241 = vmatprep.subr.mxu0 0.0
    %242 = vmatpush1.msra.mxu0 0.0
    %243 = vmatprep.subr.mxu0 0.0
    %244 = vmatpush1.msra.mxu0 0.0
    %245 = vmatprep.subr.mxu0 0.0
    %246 = vmatpush1.msra.mxu0 0.0
    %247 = vmatprep.subr.mxu0 0.0
    %248 = vmatpush1.msra.mxu0 0.0
    %249 = vmatprep.subr.mxu0 0.0
    %250 = vmatpush1.msra.mxu0 0.0
    %251 = vmatprep.subr.mxu0 0.0
    %252 = vmatpush1.msra.mxu0 0.0
    %253 = vmatprep.subr.mxu0 0.0
    %254 = vmatpush1.msra.mxu0 0.0
    %255 = vmatprep.subr.mxu0 0.0
    %256 = vmatpush1.msra.mxu0 0.0
    %257 = vmatprep.subr.mxu0 0.0
    %258 = vmatpush1.msra.mxu0 0.0
    %259 = vmatprep.subr.mxu0 0.0
    %260 = vmatpush1.msra.mxu0 0.0
    %261 = vmatprep.subr.mxu0 0.0
    %262 = vmatpush1.msra.mxu0 0.0
    %263 = vmatprep.subr.mxu0 0.0
    %264 = vmatpush1.msra.mxu0 0.0
    %265 = vmatprep.subr.mxu0 0.0
    %266 = vmatpush1.msra.mxu0 %v226
    %267 = vmatprep.subr.mxu0 0.0
    %268 = vmatpush1.msra.mxu0 %v225
    %269 = vmatprep.subr.mxu0 0.0
    %270 = vmatpush1.msra.mxu0 %v224
    %271 = vmatprep.subr.mxu0 0.0
    %272 = vmatpush1.msra.mxu0 %v223
    %273 = vmatprep.subr.mxu0 0.0
    %274 = vmatpush2.msra.mxu0 0.0
    %275 = vmatprep.subr.mxu0 0.0
    %276 = vmatpush2.msra.mxu0 0.0
    %277 = vmatprep.subr.mxu0 0.0
    %278 = vmatpush2.msra.mxu0 0.0
    %279 = vmatprep.subr.mxu0 0.0
    %280 = vmatpush2.msra.mxu0 0.0
    %281 = vmatprep.subr.mxu0 0.0
    %282 = vmatpush2.msra.mxu0 0.0
    %283 = vmatprep.subr.mxu0 0.0
    %284 = vmatpush2.msra.mxu0 0.0
    %285 = vmatprep.subr.mxu0 0.0
    %286 = vmatpush2.msra.mxu0 0.0
    %287 = vmatprep.subr.mxu0 0.0
    %288 = vmatpush2.msra.mxu0 0.0
    %289 = vmatprep.subr.mxu0 0.0
    %290 = vmatpush2.msra.mxu0 0.0
    %291 = vmatprep.subr.mxu0 0.0
    %292 = vmatpush2.msra.mxu0 0.0
    %293 = vmatprep.subr.mxu0 0.0
    %294 = vmatpush2.msra.mxu0 0.0
    %295 = vmatprep.subr.mxu0 0.0
    %296 = vmatpush2.msra.mxu0 0.0
    %297 = vmatprep.subr.mxu0 0.0
    %298 = vmatpush2.msra.mxu0 0.0
    %299 = vmatprep.subr.mxu0 0.0
    %300 = vmatpush2.msra.mxu0 0.0
    %301 = vmatprep.subr.mxu0 0.0
    %302 = vmatpush2.msra.mxu0 0.0
    %303 = vmatprep.subr.mxu0 0.0
    %304 = vmatpush2.msra.mxu0 0.0
    %305 = vmatprep.mubr.f32.mxu0 0.0
    %306 = vmatmul.mubr.f32.gmra.mxu0 %v236
    %v307 = vpop.f32.mrf.mxu0
    %v308 = vadd.f32 %v232, %v307
    %v309 = vpop.f32.mrf.mxu0
    %310 = vmatprep.mubr.f32.mxu0 0.0
    %311 = vmatmul.mubr.f32.gmra.mxu0 %v239
    %v312 = vpop.f32.mrf.mxu0
    %v313 = vadd.f32 %v232, %v312
    %v314 = vpop.f32.mrf.mxu0
    %315 = vdwg.mxu0
    %317 = vrot.lane.b32.xlu0 %v308, 96
    %v318 = vpop.permute.xlu0 %317
    %vm319 = vcmask 64512
    %v320 = vsel %vm319, %v308, 0
    %v322 = vsel %vm319, %v318, 0
    %324 = vmatprep.subr.mxu0 0.0
    %325 = vmatpush1.xpose.msra.mxu0 0.0
    %326 = vmatprep.subr.mxu0 0.0
    %327 = vmatpush1.xpose.msra.mxu0 0.0
    %328 = vmatprep.subr.mxu0 0.0
    %329 = vmatpush1.xpose.msra.mxu0 0.0
    %330 = vmatprep.subr.mxu0 0.0
    %331 = vmatpush1.xpose.msra.mxu0 0.0
    %332 = vmatprep.subr.mxu0 0.0
    %333 = vmatpush1.xpose.msra.mxu0 0.0
    %334 = vmatprep.subr.mxu0 0.0
    %335 = vmatpush1.xpose.msra.mxu0 0.0
    %336 = vmatprep.subr.mxu0 0.0
    %337 = vmatpush1.xpose.msra.mxu0 0.0
    %338 = vmatprep.subr.mxu0 0.0
    %339 = vmatpush1.xpose.msra.mxu0 0.0
    %340 = vmatprep.subr.mxu0 0.0
    %341 = vmatpush1.xpose.msra.mxu0 0.0
    %342 = vmatprep.subr.mxu0 0.0
    %343 = vmatpush1.xpose.msra.mxu0 0.0
    %344 = vmatprep.subr.mxu0 0.0
    %345 = vmatpush1.xpose.msra.mxu0 0.0
    %346 = vmatprep.subr.mxu0 0.0
    %347 = vmatpush1.xpose.msra.mxu0 0.0
    %348 = vmatprep.subr.mxu0 0.0
    %349 = vmatpush1.xpose.msra.mxu0 0.0
    %350 = vmatprep.subr.mxu0 0.0
    %351 = vmatpush1.xpose.msra.mxu0 0.0
    %352 = vmatprep.subr.mxu0 0.0
    %353 = vmatpush1.xpose.msra.mxu0 0.0
    %354 = vmatprep.subr.mxu0 0.0
    %355 = vmatpush1.xpose.msra.mxu0 %v322
    %356 = vmatprep.subr.mxu0 0.0
    %357 = vmatpush2.xpose.msra.mxu0 0.0
    %358 = vmatprep.subr.mxu0 0.0
    %359 = vmatpush2.xpose.msra.mxu0 0.0
    %360 = vmatprep.subr.mxu0 0.0
    %361 = vmatpush2.xpose.msra.mxu0 0.0
    %362 = vmatprep.subr.mxu0 0.0
    %363 = vmatpush2.xpose.msra.mxu0 0.0
    %364 = vmatprep.subr.mxu0 0.0
    %365 = vmatpush2.xpose.msra.mxu0 0.0
    %366 = vmatprep.subr.mxu0 0.0
    %367 = vmatpush2.xpose.msra.mxu0 0.0
    %368 = vmatprep.subr.mxu0 0.0
    %369 = vmatpush2.xpose.msra.mxu0 0.0
    %370 = vmatprep.subr.mxu0 0.0
    %371 = vmatpush2.xpose.msra.mxu0 0.0
    %372 = vmatprep.subr.mxu0 0.0
    %373 = vmatpush2.xpose.msra.mxu0 0.0
    %374 = vmatprep.subr.mxu0 0.0
    %375 = vmatpush2.xpose.msra.mxu0 0.0
    %376 = vmatprep.subr.mxu0 0.0
    %377 = vmatpush2.xpose.msra.mxu0 0.0
    %378 = vmatprep.subr.mxu0 0.0
    %379 = vmatpush2.xpose.msra.mxu0 0.0
    %380 = vmatprep.subr.mxu0 0.0
    %381 = vmatpush2.xpose.msra.mxu0 0.0
    %382 = vmatprep.subr.mxu0 0.0
    %383 = vmatpush2.xpose.msra.mxu0 0.0
    %384 = vmatprep.subr.mxu0 0.0
    %385 = vmatpush2.xpose.msra.mxu0 0.0
    %386 = vmatprep.subr.mxu0 0.0
    %387 = vmatpush2.xpose.msra.mxu0 0.0
    %388 = vmatprep.mubr.f32.mxu0 0.0
    %389 = vmatmul.mubr.f32.gmra.mxu0 %v320
    %v390 = vpop.f32.mrf.mxu0
    %v391 = vadd.f32 0.0, %v390
    %v392 = vpop.f32.mrf.mxu0
    %393 = vdwg.mxu0
    %v394 = vsel %vm319, %v391, -inf
    %395 = vmax.xlane.f32.xlu0 %v394
    %v396 = vpop.xlane.xlu0 %395
    %v397 = vsub.f32 %v391, %v396
    %v398 = vmul.f32 %v397, 1.442695
    %v399 = vpow.pop %v398
    %v400 = vsel %vm319, %v399, 0.0
    %401 = vadd.xlane.f32.xlu0 %v400
    %v402 = vpop.xlane.xlu0 %401
    %v403 = vrcp.pop %v402
    %v404 = vmul.f32 %v399, %v403
    %405 = vrot.lane.b32.xlu0 %v308, 64
    %v406 = vpop.permute.xlu0 %405
    %v409 = vsel %vm319, %v404, 0
    %411 = vmatprep.subr.mxu0 0.0
    %412 = vmatpush1.msra.mxu0 0.0
    %413 = vmatprep.subr.mxu0 0.0
    %414 = vmatpush1.msra.mxu0 0.0
    %415 = vmatprep.subr.mxu0 0.0
    %416 = vmatpush1.msra.mxu0 0.0
    %417 = vmatprep.subr.mxu0 0.0
    %418 = vmatpush1.msra.mxu0 0.0
    %419 = vmatprep.subr.mxu0 0.0
    %420 = vmatpush1.msra.mxu0 0.0
    %421 = vmatprep.subr.mxu0 0.0
    %422 = vmatpush1.msra.mxu0 0.0
    %423 = vmatprep.subr.mxu0 0.0
    %424 = vmatpush1.msra.mxu0 0.0
    %425 = vmatprep.subr.mxu0 0.0
    %426 = vmatpush1.msra.mxu0 0.0
    %427 = vmatprep.subr.mxu0 0.0
    %428 = vmatpush1.msra.mxu0 0.0
    %429 = vmatprep.subr.mxu0 0.0
    %430 = vmatpush1.msra.mxu0 0.0
    %431 = vmatprep.subr.mxu0 0.0
    %432 = vmatpush1.msra.mxu0 0.0
    %433 = vmatprep.subr.mxu0 0.0
    %434 = vmatpush1.msra.mxu0 0.0
    %435 = vmatprep.subr.mxu0 0.0
    %436 = vmatpush1.msra.mxu0 0.0
    %437 = vmatprep.subr.mxu0 0.0
    %438 = vmatpush1.msra.mxu0 0.0
    %439 = vmatprep.subr.mxu0 0.0
    %440 = vmatpush1.msra.mxu0 0.0
    %441 = vmatprep.subr.mxu0 0.0
    %442 = vmatpush1.msra.mxu0 %v406
    %443 = vmatprep.subr.mxu0 0.0
    %444 = vmatpush2.msra.mxu0 0.0
    %445 = vmatprep.subr.mxu0 0.0
    %446 = vmatpush2.msra.mxu0 0.0
    %447 = vmatprep.subr.mxu0 0.0
    %448 = vmatpush2.msra.mxu0 0.0
    %449 = vmatprep.subr.mxu0 0.0
    %450 = vmatpush2.msra.mxu0 0.0
    %451 = vmatprep.subr.mxu0 0.0
    %452 = vmatpush2.msra.mxu0 0.0
    %453 = vmatprep.subr.mxu0 0.0
    %454 = vmatpush2.msra.mxu0 0.0
    %455 = vmatprep.subr.mxu0 0.0
    %456 = vmatpush2.msra.mxu0 0.0
    %457 = vmatprep.subr.mxu0 0.0
    %458 = vmatpush2.msra.mxu0 0.0
    %459 = vmatprep.subr.mxu0 0.0
    %460 = vmatpush2.msra.mxu0 0.0
    %461 = vmatprep.subr.mxu0 0.0
    %462 = vmatpush2.msra.mxu0 0.0
    %463 = vmatprep.subr.mxu0 0.0
    %464 = vmatpush2.msra.mxu0 0.0
    %465 = vmatprep.subr.mxu0 0.0
    %466 = vmatpush2.msra.mxu0 0.0
    %467 = vmatprep.subr.mxu0 0.0
    %468 = vmatpush2.msra.mxu0 0.0
    %469 = vmatprep.subr.mxu0 0.0
    %470 = vmatpush2.msra.mxu0 0.0
    %471 = vmatprep.subr.mxu0 0.0
    %472 = vmatpush2.msra.mxu0 0.0
    %473 = vmatprep.subr.mxu0 0.0
    %474 = vmatpush2.msra.mxu0 0.0
    %475 = vmatprep.mubr.f32.mxu0 0.0
    %476 = vmatmul.mubr.f32.gmra.mxu0 %v409
    %v477 = vpop.f32.mrf.mxu0
    %v478 = vadd.f32 0.0, %v477
    %v479 = vpop.f32.mrf.mxu0
    %480 = vdwg.mxu0
    %481 = vrot.lane.b32.xlu0 %v308, 120
    %v482 = vpop.permute.xlu0 %481
    %483 = vrot.lane.b32.xlu0 %v308, 88
    %v484 = vpop.permute.xlu0 %483
    %v485 = vsel %vm319, %v482, 0
    %v487 = vsel %vm319, %v484, 0
    %489 = vmatprep.subr.mxu0 0.0
    %490 = vmatpush1.xpose.msra.mxu0 0.0
    %491 = vmatprep.subr.mxu0 0.0
    %492 = vmatpush1.xpose.msra.mxu0 0.0
    %493 = vmatprep.subr.mxu0 0.0
    %494 = vmatpush1.xpose.msra.mxu0 0.0
    %495 = vmatprep.subr.mxu0 0.0
    %496 = vmatpush1.xpose.msra.mxu0 0.0
    %497 = vmatprep.subr.mxu0 0.0
    %498 = vmatpush1.xpose.msra.mxu0 0.0
    %499 = vmatprep.subr.mxu0 0.0
    %500 = vmatpush1.xpose.msra.mxu0 0.0
    %501 = vmatprep.subr.mxu0 0.0
    %502 = vmatpush1.xpose.msra.mxu0 0.0
    %503 = vmatprep.subr.mxu0 0.0
    %504 = vmatpush1.xpose.msra.mxu0 0.0
    %505 = vmatprep.subr.mxu0 0.0
    %506 = vmatpush1.xpose.msra.mxu0 0.0
    %507 = vmatprep.subr.mxu0 0.0
    %508 = vmatpush1.xpose.msra.mxu0 0.0
    %509 = vmatprep.subr.mxu0 0.0
    %510 = vmatpush1.xpose.msra.mxu0 0.0
    %511 = vmatprep.subr.mxu0 0.0
    %512 = vmatpush1.xpose.msra.mxu0 0.0
    %513 = vmatprep.subr.mxu0 0.0
    %514 = vmatpush1.xpose.msra.mxu0 0.0
    %515 = vmatprep.subr.mxu0 0.0
    %516 = vmatpush1.xpose.msra.mxu0 0.0
    %517 = vmatprep.subr.mxu0 0.0
    %518 = vmatpush1.xpose.msra.mxu0 0.0
    %519 = vmatprep.subr.mxu0 0.0
    %520 = vmatpush1.xpose.msra.mxu0 %v487
    %521 = vmatprep.subr.mxu0 0.0
    %522 = vmatpush2.xpose.msra.mxu0 0.0
    %523 = vmatprep.subr.mxu0 0.0
    %524 = vmatpush2.xpose.msra.mxu0 0.0
    %525 = vmatprep.subr.mxu0 0.0
    %526 = vmatpush2.xpose.msra.mxu0 0.0
    %527 = vmatprep.subr.mxu0 0.0
    %528 = vmatpush2.xpose.msra.mxu0 0.0
    %529 = vmatprep.subr.mxu0 0.0
    %530 = vmatpush2.xpose.msra.mxu0 0.0
    %531 = vmatprep.subr.mxu0 0.0
    %532 = vmatpush2.xpose.msra.mxu0 0.0
    %533 = vmatprep.subr.mxu0 0.0
    %534 = vmatpush2.xpose.msra.mxu0 0.0
    %535 = vmatprep.subr.mxu0 0.0
    %536 = vmatpush2.xpose.msra.mxu0 0.0
    %537 = vmatprep.subr.mxu0 0.0
    %538 = vmatpush2.xpose.msra.mxu0 0.0
    %539 = vmatprep.subr.mxu0 0.0
    %540 = vmatpush2.xpose.msra.mxu0 0.0
    %541 = vmatprep.subr.mxu0 0.0
    %542 = vmatpush2.xpose.msra.mxu0 0.0
    %543 = vmatprep.subr.mxu0 0.0
    %544 = vmatpush2.xpose.msra.mxu0 0.0
    %545 = vmatprep.subr.mxu0 0.0
    %546 = vmatpush2.xpose.msra.mxu0 0.0
    %547 = vmatprep.subr.mxu0 0.0
    %548 = vmatpush2.xpose.msra.mxu0 0.0
    %549 = vmatprep.subr.mxu0 0.0
    %550 = vmatpush2.xpose.msra.mxu0 0.0
    %551 = vmatprep.subr.mxu0 0.0
    %552 = vmatpush2.xpose.msra.mxu0 0.0
    %553 = vmatprep.mubr.f32.mxu0 0.0
    %554 = vmatmul.mubr.f32.gmra.mxu0 %v485
    %v555 = vpop.f32.mrf.mxu0
    %v556 = vadd.f32 0.0, %v555
    %v557 = vpop.f32.mrf.mxu0
    %558 = vdwg.mxu0
    %v559 = vsel %vm319, %v556, -inf
    %560 = vmax.xlane.f32.xlu0 %v559
    %v561 = vpop.xlane.xlu0 %560
    %v562 = vsub.f32 %v556, %v561
    %v563 = vmul.f32 %v562, 1.442695
    %v564 = vpow.pop %v563
    %v565 = vsel %vm319, %v564, 0.0
    %566 = vadd.xlane.f32.xlu0 %v565
    %v567 = vpop.xlane.xlu0 %566
    %v568 = vrcp.pop %v567
    %v569 = vmul.f32 %v564, %v568
    %570 = vrot.lane.b32.xlu0 %v308, 56
    %v571 = vpop.permute.xlu0 %570
    %v574 = vsel %vm319, %v569, 0
    %576 = vmatprep.subr.mxu0 0.0
    %577 = vmatpush1.msra.mxu0 0.0
    %578 = vmatprep.subr.mxu0 0.0
    %579 = vmatpush1.msra.mxu0 0.0
    %580 = vmatprep.subr.mxu0 0.0
    %581 = vmatpush1.msra.mxu0 0.0
    %582 = vmatprep.subr.mxu0 0.0
    %583 = vmatpush1.msra.mxu0 0.0
    %584 = vmatprep.subr.mxu0 0.0
    %585 = vmatpush1.msra.mxu0 0.0
    %586 = vmatprep.subr.mxu0 0.0
    %587 = vmatpush1.msra.mxu0 0.0
    %588 = vmatprep.subr.mxu0 0.0
    %589 = vmatpush1.msra.mxu0 0.0
    %590 = vmatprep.subr.mxu0 0.0
    %591 = vmatpush1.msra.mxu0 0.0
    %592 = vmatprep.subr.mxu0 0.0
    %593 = vmatpush1.msra.mxu0 0.0
    %594 = vmatprep.subr.mxu0 0.0
    %595 = vmatpush1.msra.mxu0 0.0
    %596 = vmatprep.subr.mxu0 0.0
    %597 = vmatpush1.msra.mxu0 0.0
    %598 = vmatprep.subr.mxu0 0.0
    %599 = vmatpush1.msra.mxu0 0.0
    %600 = vmatprep.subr.mxu0 0.0
    %601 = vmatpush1.msra.mxu0 0.0
    %602 = vmatprep.subr.mxu0 0.0
    %603 = vmatpush1.msra.mxu0 0.0
    %604 = vmatprep.subr.mxu0 0.0
    %605 = vmatpush1.msra.mxu0 0.0
    %606 = vmatprep.subr.mxu0 0.0
    %607 = vmatpush1.msra.mxu0 %v571
    %608 = vmatprep.subr.mxu0 0.0
    %609 = vmatpush2.msra.mxu0 0.0
    %610 = vmatprep.subr.mxu0 0.0
    %611 = vmatpush2.msra.mxu0 0.0
    %612 = vmatprep.subr.mxu0 0.0
    %613 = vmatpush2.msra.mxu0 0.0
    %614 = vmatprep.subr.mxu0 0.0
    %615 = vmatpush2.msra.mxu0 0.0
    %616 = vmatprep.subr.mxu0 0.0
    %617 = vmatpush2.msra.mxu0 0.0
    %618 = vmatprep.subr.mxu0 0.0
    %619 = vmatpush2.msra.mxu0 0.0
    %620 = vmatprep.subr.mxu0 0.0
    %621 = vmatpush2.msra.mxu0 0.0
    %622 = vmatprep.subr.mxu0 0.0
    %623 = vmatpush2.msra.mxu0 0.0
    %624 = vmatprep.subr.mxu0 0.0
    %625 = vmatpush2.msra.mxu0 0.0
    %626 = vmatprep.subr.mxu0 0.0
    %627 = vmatpush2.msra.mxu0 0.0
    %628 = vmatprep.subr.mxu0 0.0
    %629 = vmatpush2.msra.mxu0 0.0
    %630 = vmatprep.subr.mxu0 0.0
    %631 = vmatpush2.msra.mxu0 0.0
    %632 = vmatprep.subr.mxu0 0.0
    %633 = vmatpush2.msra.mxu0 0.0
    %634 = vmatprep.subr.mxu0 0.0
    %635 = vmatpush2.msra.mxu0 0.0
    %636 = vmatprep.subr.mxu0 0.0
    %637 = vmatpush2.msra.mxu0 0.0
    %638 = vmatprep.subr.mxu0 0.0
    %639 = vmatpush2.msra.mxu0 0.0
    %640 = vmatprep.mubr.f32.mxu0 0.0
    %641 = vmatmul.mubr.f32.gmra.mxu0 %v574
    %v642 = vpop.f32.mrf.mxu0
    %v643 = vadd.f32 0.0, %v642
    %v644 = vpop.f32.mrf.mxu0
    %645 = vdwg.mxu0
    %646 = vrot.lane.b32.xlu0 %v308, 112
    %v647 = vpop.permute.xlu0 %646
    %648 = vrot.lane.b32.xlu0 %v308, 80
    %v649 = vpop.permute.xlu0 %648
    %v650 = vsel %vm319, %v647, 0
    %v652 = vsel %vm319, %v649, 0
    %654 = vmatprep.subr.mxu0 0.0
    %655 = vmatpush1.xpose.msra.mxu0 0.0
    %656 = vmatprep.subr.mxu0 0.0
    %657 = vmatpush1.xpose.msra.mxu0 0.0
    %658 = vmatprep.subr.mxu0 0.0
    %659 = vmatpush1.xpose.msra.mxu0 0.0
    %660 = vmatprep.subr.mxu0 0.0
    %661 = vmatpush1.xpose.msra.mxu0 0.0
    %662 = vmatprep.subr.mxu0 0.0
    %663 = vmatpush1.xpose.msra.mxu0 0.0
    %664 = vmatprep.subr.mxu0 0.0
    %665 = vmatpush1.xpose.msra.mxu0 0.0
    %666 = vmatprep.subr.mxu0 0.0
    %667 = vmatpush1.xpose.msra.mxu0 0.0
    %668 = vmatprep.subr.mxu0 0.0
    %669 = vmatpush1.xpose.msra.mxu0 0.0
    %670 = vmatprep.subr.mxu0 0.0
    %671 = vmatpush1.xpose.msra.mxu0 0.0
    %672 = vmatprep.subr.mxu0 0.0
    %673 = vmatpush1.xpose.msra.mxu0 0.0
    %674 = vmatprep.subr.mxu0 0.0
    %675 = vmatpush1.xpose.msra.mxu0 0.0
    %676 = vmatprep.subr.mxu0 0.0
    %677 = vmatpush1.xpose.msra.mxu0 0.0
    %678 = vmatprep.subr.mxu0 0.0
    %679 = vmatpush1.xpose.msra.mxu0 0.0
    %680 = vmatprep.subr.mxu0 0.0
    %681 = vmatpush1.xpose.msra.mxu0 0.0
    %682 = vmatprep.subr.mxu0 0.0
    %683 = vmatpush1.xpose.msra.mxu0 0.0
    %684 = vmatprep.subr.mxu0 0.0
    %685 = vmatpush1.xpose.msra.mxu0 %v652
    %686 = vmatprep.subr.mxu0 0.0
    %687 = vmatpush2.xpose.msra.mxu0 0.0
    %688 = vmatprep.subr.mxu0 0.0
    %689 = vmatpush2.xpose.msra.mxu0 0.0
    %690 = vmatprep.subr.mxu0 0.0
    %691 = vmatpush2.xpose.msra.mxu0 0.0
    %692 = vmatprep.subr.mxu0 0.0
    %693 = vmatpush2.xpose.msra.mxu0 0.0
    %694 = vmatprep.subr.mxu0 0.0
    %695 = vmatpush2.xpose.msra.mxu0 0.0
    %696 = vmatprep.subr.mxu0 0.0
    %697 = vmatpush2.xpose.msra.mxu0 0.0
    %698 = vmatprep.subr.mxu0 0.0
    %699 = vmatpush2.xpose.msra.mxu0 0.0
    %700 = vmatprep.subr.mxu0 0.0
    %701 = vmatpush2.xpose.msra.mxu0 0.0
    %702 = vmatprep.subr.mxu0 0.0
    %703 = vmatpush2.xpose.msra.mxu0 0.0
    %704 = vmatprep.subr.mxu0 0.0
    %705 = vmatpush2.xpose.msra.mxu0 0.0
    %706 = vmatprep.subr.mxu0 0.0
    %707 = vmatpush2.xpose.msra.mxu0 0.0
    %708 = vmatprep.subr.mxu0 0.0
    %709 = vmatpush2.xpose.msra.mxu0 0.0
    %710 = vmatprep.subr.mxu0 0.0
    %711 = vmatpush2.xpose.msra.mxu0 0.0
    %712 = vmatprep.subr.mxu0 0.0
    %713 = vmatpush2.xpose.msra.mxu0 0.0
    %714 = vmatprep.subr.mxu0 0.0
    %715 = vmatpush2.xpose.msra.mxu0 0.0
    %716 = vmatprep.subr.mxu0 0.0
    %717 = vmatpush2.xpose.msra.mxu0 0.0
    %718 = vmatprep.mubr.f32.mxu0 0.0
    %719 = vmatmul.mubr.f32.gmra.mxu0 %v650
    %v720 = vpop.f32.mrf.mxu0
    %v721 = vadd.f32 0.0, %v720
    %v722 = vpop.f32.mrf.mxu0
    %723 = vdwg.mxu0
    %v724 = vsel %vm319, %v721, -inf
    %725 = vmax.xlane.f32.xlu0 %v724
    %v726 = vpop.xlane.xlu0 %725
    %v727 = vsub.f32 %v721, %v726
    %v728 = vmul.f32 %v727, 1.442695
    %v729 = vpow.pop %v728
    %v730 = vsel %vm319, %v729, 0.0
    %731 = vadd.xlane.f32.xlu0 %v730
    %v732 = vpop.xlane.xlu0 %731
    %v733 = vrcp.pop %v732
    %v734 = vmul.f32 %v729, %v733
    %735 = vrot.lane.b32.xlu0 %v308, 48
    %v736 = vpop.permute.xlu0 %735
    %v739 = vsel %vm319, %v734, 0
    %741 = vmatprep.subr.mxu0 0.0
    %742 = vmatpush1.msra.mxu0 0.0
    %743 = vmatprep.subr.mxu0 0.0
    %744 = vmatpush1.msra.mxu0 0.0
    %745 = vmatprep.subr.mxu0 0.0
    %746 = vmatpush1.msra.mxu0 0.0
    %747 = vmatprep.subr.mxu0 0.0
    %748 = vmatpush1.msra.mxu0 0.0
    %749 = vmatprep.subr.mxu0 0.0
    %750 = vmatpush1.msra.mxu0 0.0
    %751 = vmatprep.subr.mxu0 0.0
    %752 = vmatpush1.msra.mxu0 0.0
    %753 = vmatprep.subr.mxu0 0.0
    %754 = vmatpush1.msra.mxu0 0.0
    %755 = vmatprep.subr.mxu0 0.0
    %756 = vmatpush1.msra.mxu0 0.0
    %757 = vmatprep.subr.mxu0 0.0
    %758 = vmatpush1.msra.mxu0 0.0
    %759 = vmatprep.subr.mxu0 0.0
    %760 = vmatpush1.msra.mxu0 0.0
    %761 = vmatprep.subr.mxu0 0.0
    %762 = vmatpush1.msra.mxu0 0.0
    %763 = vmatprep.subr.mxu0 0.0
    %764 = vmatpush1.msra.mxu0 0.0
    %765 = vmatprep.subr.mxu0 0.0
    %766 = vmatpush1.msra.mxu0 0.0
    %767 = vmatprep.subr.mxu0 0.0
    %768 = vmatpush1.msra.mxu0 0.0
    %769 = vmatprep.subr.mxu0 0.0
    %770 = vmatpush1.msra.mxu0 0.0
    %771 = vmatprep.subr.mxu0 0.0
    %772 = vmatpush1.msra.mxu0 %v736
    %773 = vmatprep.subr.mxu0 0.0
    %774 = vmatpush2.msra.mxu0 0.0
    %775 = vmatprep.subr.mxu0 0.0
    %776 = vmatpush2.msra.mxu0 0.0
    %777 = vmatprep.subr.mxu0 0.0
    %778 = vmatpush2.msra.mxu0 0.0
    %779 = vmatprep.subr.mxu0 0.0
    %780 = vmatpush2.msra.mxu0 0.0
    %781 = vmatprep.subr.mxu0 0.0
    %782 = vmatpush2.msra.mxu0 0.0
    %783 = vmatprep.subr.mxu0 0.0
    %784 = vmatpush2.msra.mxu0 0.0
    %785 = vmatprep.subr.mxu0 0.0
    %786 = vmatpush2.msra.mxu0 0.0
    %787 = vmatprep.subr.mxu0 0.0
    %788 = vmatpush2.msra.mxu0 0.0
    %789 = vmatprep.subr.mxu0 0.0
    %790 = vmatpush2.msra.mxu0 0.0
    %791 = vmatprep.subr.mxu0 0.0
    %792 = vmatpush2.msra.mxu0 0.0
    %793 = vmatprep.subr.mxu0 0.0
    %794 = vmatpush2.msra.mxu0 0.0
    %795 = vmatprep.subr.mxu0 0.0
    %796 = vmatpush2.msra.mxu0 0.0
    %797 = vmatprep.subr.mxu0 0.0
    %798 = vmatpush2.msra.mxu0 0.0
    %799 = vmatprep.subr.mxu0 0.0
    %800 = vmatpush2.msra.mxu0 0.0
    %801 = vmatprep.subr.mxu0 0.0
    %802 = vmatpush2.msra.mxu0 0.0
    %803 = vmatprep.subr.mxu0 0.0
    %804 = vmatpush2.msra.mxu0 0.0
    %805 = vmatprep.mubr.f32.mxu0 0.0
    %806 = vmatmul.mubr.f32.gmra.mxu0 %v739
    %v807 = vpop.f32.mrf.mxu0
    %v808 = vadd.f32 0.0, %v807
    %v809 = vpop.f32.mrf.mxu0
    %810 = vdwg.mxu0
    %811 = vrot.lane.b32.xlu0 %v308, 104
    %v812 = vpop.permute.xlu0 %811
    %813 = vrot.lane.b32.xlu0 %v308, 72
    %v814 = vpop.permute.xlu0 %813
    %v815 = vsel %vm319, %v812, 0
    %v817 = vsel %vm319, %v814, 0
    %819 = vmatprep.subr.mxu0 0.0
    %820 = vmatpush1.xpose.msra.mxu0 0.0
    %821 = vmatprep.subr.mxu0 0.0
    %822 = vmatpush1.xpose.msra.mxu0 0.0
    %823 = vmatprep.subr.mxu0 0.0
    %824 = vmatpush1.xpose.msra.mxu0 0.0
    %825 = vmatprep.subr.mxu0 0.0
    %826 = vmatpush1.xpose.msra.mxu0 0.0
    %827 = vmatprep.subr.mxu0 0.0
    %828 = vmatpush1.xpose.msra.mxu0 0.0
    %829 = vmatprep.subr.mxu0 0.0
    %830 = vmatpush1.xpose.msra.mxu0 0.0
    %831 = vmatprep.subr.mxu0 0.0
    %832 = vmatpush1.xpose.msra.mxu0 0.0
    %833 = vmatprep.subr.mxu0 0.0
    %834 = vmatpush1.xpose.msra.mxu0 0.0
    %835 = vmatprep.subr.mxu0 0.0
    %836 = vmatpush1.xpose.msra.mxu0 0.0
    %837 = vmatprep.subr.mxu0 0.0
    %838 = vmatpush1.xpose.msra.mxu0 0.0
    %839 = vmatprep.subr.mxu0 0.0
    %840 = vmatpush1.xpose.msra.mxu0 0.0
    %841 = vmatprep.subr.mxu0 0.0
    %842 = vmatpush1.xpose.msra.mxu0 0.0
    %843 = vmatprep.subr.mxu0 0.0
    %844 = vmatpush1.xpose.msra.mxu0 0.0
    %845 = vmatprep.subr.mxu0 0.0
    %846 = vmatpush1.xpose.msra.mxu0 0.0
    %847 = vmatprep.subr.mxu0 0.0
    %848 = vmatpush1.xpose.msra.mxu0 0.0
    %849 = vmatprep.subr.mxu0 0.0
    %850 = vmatpush1.xpose.msra.mxu0 %v817
    %851 = vmatprep.subr.mxu0 0.0
    %852 = vmatpush2.xpose.msra.mxu0 0.0
    %853 = vmatprep.subr.mxu0 0.0
    %854 = vmatpush2.xpose.msra.mxu0 0.0
    %855 = vmatprep.subr.mxu0 0.0
    %856 = vmatpush2.xpose.msra.mxu0 0.0
    %857 = vmatprep.subr.mxu0 0.0
    %858 = vmatpush2.xpose.msra.mxu0 0.0
    %859 = vmatprep.subr.mxu0 0.0
    %860 = vmatpush2.xpose.msra.mxu0 0.0
    %861 = vmatprep.subr.mxu0 0.0
    %862 = vmatpush2.xpose.msra.mxu0 0.0
    %863 = vmatprep.subr.mxu0 0.0
    %864 = vmatpush2.xpose.msra.mxu0 0.0
    %865 = vmatprep.subr.mxu0 0.0
    %866 = vmatpush2.xpose.msra.mxu0 0.0
    %867 = vmatprep.subr.mxu0 0.0
    %868 = vmatpush2.xpose.msra.mxu0 0.0
    %869 = vmatprep.subr.mxu0 0.0
    %870 = vmatpush2.xpose.msra.mxu0 0.0
    %871 = vmatprep.subr.mxu0 0.0
    %872 = vmatpush2.xpose.msra.mxu0 0.0
    %873 = vmatprep.subr.mxu0 0.0
    %874 = vmatpush2.xpose.msra.mxu0 0.0
    %875 = vmatprep.subr.mxu0 0.0
    %876 = vmatpush2.xpose.msra.mxu0 0.0
    %877 = vmatprep.subr.mxu0 0.0
    %878 = vmatpush2.xpose.msra.mxu0 0.0
    %879 = vmatprep.subr.mxu0 0.0
    %880 = vmatpush2.xpose.msra.mxu0 0.0
    %881 = vmatprep.subr.mxu0 0.0
    %882 = vmatpush2.xpose.msra.mxu0 0.0
    %883 = vmatprep.mubr.f32.mxu0 0.0
    %884 = vmatmul.mubr.f32.gmra.mxu0 %v815
    %v885 = vpop.f32.mrf.mxu0
    %v886 = vadd.f32 0.0, %v885
    %v887 = vpop.f32.mrf.mxu0
    %888 = vdwg.mxu0
    %v889 = vsel %vm319, %v886, -inf
    %890 = vmax.xlane.f32.xlu0 %v889
    %v891 = vpop.xlane.xlu0 %890
    %v892 = vsub.f32 %v886, %v891
    %v893 = vmul.f32 %v892, 1.442695
    %v894 = vpow.pop %v893
    %v895 = vsel %vm319, %v894, 0.0
    %896 = vadd.xlane.f32.xlu0 %v895
    %v897 = vpop.xlane.xlu0 %896
    %v898 = vrcp.pop %v897
    %v899 = vmul.f32 %v894, %v898
    %900 = vrot.lane.b32.xlu0 %v308, 40
    %v901 = vpop.permute.xlu0 %900
    %v904 = vsel %vm319, %v899, 0
    %906 = vmatprep.subr.mxu0 0.0
    %907 = vmatpush1.msra.mxu0 0.0
    %908 = vmatprep.subr.mxu0 0.0
    %909 = vmatpush1.msra.mxu0 0.0
    %910 = vmatprep.subr.mxu0 0.0
    %911 = vmatpush1.msra.mxu0 0.0
    %912 = vmatprep.subr.mxu0 0.0
    %913 = vmatpush1.msra.mxu0 0.0
    %914 = vmatprep.subr.mxu0 0.0
    %915 = vmatpush1.msra.mxu0 0.0
    %916 = vmatprep.subr.mxu0 0.0
    %917 = vmatpush1.msra.mxu0 0.0
    %918 = vmatprep.subr.mxu0 0.0
    %919 = vmatpush1.msra.mxu0 0.0
    %920 = vmatprep.subr.mxu0 0.0
    %921 = vmatpush1.msra.mxu0 0.0
    %922 = vmatprep.subr.mxu0 0.0
    %923 = vmatpush1.msra.mxu0 0.0
    %924 = vmatprep.subr.mxu0 0.0
    %925 = vmatpush1.msra.mxu0 0.0
    %926 = vmatprep.subr.mxu0 0.0
    %927 = vmatpush1.msra.mxu0 0.0
    %928 = vmatprep.subr.mxu0 0.0
    %929 = vmatpush1.msra.mxu0 0.0
    %930 = vmatprep.subr.mxu0 0.0
    %931 = vmatpush1.msra.mxu0 0.0
    %932 = vmatprep.subr.mxu0 0.0
    %933 = vmatpush1.msra.mxu0 0.0
    %934 = vmatprep.subr.mxu0 0.0
    %935 = vmatpush1.msra.mxu0 0.0
    %936 = vmatprep.subr.mxu0 0.0
    %937 = vmatpush1.msra.mxu0 %v901
    %938 = vmatprep.subr.mxu0 0.0
    %939 = vmatpush2.msra.mxu0 0.0
    %940 = vmatprep.subr.mxu0 0.0
    %941 = vmatpush2.msra.mxu0 0.0
    %942 = vmatprep.subr.mxu0 0.0
    %943 = vmatpush2.msra.mxu0 0.0
    %944 = vmatprep.subr.mxu0 0.0
    %945 = vmatpush2.msra.mxu0 0.0
    %946 = vmatprep.subr.mxu0 0.0
    %947 = vmatpush2.msra.mxu0 0.0
    %948 = vmatprep.subr.mxu0 0.0
    %949 = vmatpush2.msra.mxu0 0.0
    %950 = vmatprep.subr.mxu0 0.0
    %951 = vmatpush2.msra.mxu0 0.0
    %952 = vmatprep.subr.mxu0 0.0
    %953 = vmatpush2.msra.mxu0 0.0
    %954 = vmatprep.subr.mxu0 0.0
    %955 = vmatpush2.msra.mxu0 0.0
    %956 = vmatprep.subr.mxu0 0.0
    %957 = vmatpush2.msra.mxu0 0.0
    %958 = vmatprep.subr.mxu0 0.0
    %959 = vmatpush2.msra.mxu0 0.0
    %960 = vmatprep.subr.mxu0 0.0
    %961 = vmatpush2.msra.mxu0 0.0
    %962 = vmatprep.subr.mxu0 0.0
    %963 = vmatpush2.msra.mxu0 0.0
    %964 = vmatprep.subr.mxu0 0.0
    %965 = vmatpush2.msra.mxu0 0.0
    %966 = vmatprep.subr.mxu0 0.0
    %967 = vmatpush2.msra.mxu0 0.0
    %968 = vmatprep.subr.mxu0 0.0
    %969 = vmatpush2.msra.mxu0 0.0
    %970 = vmatprep.mubr.f32.mxu0 0.0
    %971 = vmatmul.mubr.f32.gmra.mxu0 %v904
    %v972 = vpop.f32.mrf.mxu0
    %v973 = vadd.f32 0.0, %v972
    %v974 = vpop.f32.mrf.mxu0
    %975 = vdwg.mxu0
    %977 = vrot.lane.b32.xlu0 %v643, 8
    %v978 = vpop.permute.xlu0 %977
    %981 = vrot.lane.b32.xlu0 %v808, 16
    %v982 = vpop.permute.xlu0 %981
    %985 = vrot.lane.b32.xlu0 %v973, 24
    %v986 = vpop.permute.xlu0 %985
    %v988 = vsel %vm319, %v478, %v978
    %v989 = vsel %vm138, %v988, %v982
    %vm990 = vcmask 195584
    %v991 = vsel %vm990, %v989, %v986
    %993 = vrot.lane.b32.xlu0 %v313, 96
    %v994 = vpop.permute.xlu0 %993
    %v995 = vsel %vm319, %v313, 0
    %v997 = vsel %vm319, %v994, 0
    %999 = vmatprep.subr.mxu0 0.0
    %1000 = vmatpush1.xpose.msra.mxu0 0.0
    %1001 = vmatprep.subr.mxu0 0.0
    %1002 = vmatpush1.xpose.msra.mxu0 0.0
    %1003 = vmatprep.subr.mxu0 0.0
    %1004 = vmatpush1.xpose.msra.mxu0 0.0
    %1005 = vmatprep.subr.mxu0 0.0
    %1006 = vmatpush1.xpose.msra.mxu0 0.0
    %1007 = vmatprep.subr.mxu0 0.0
    %1008 = vmatpush1.xpose.msra.mxu0 0.0
    %1009 = vmatprep.subr.mxu0 0.0
    %1010 = vmatpush1.xpose.msra.mxu0 0.0
    %1011 = vmatprep.subr.mxu0 0.0
    %1012 = vmatpush1.xpose.msra.mxu0 0.0
    %1013 = vmatprep.subr.mxu0 0.0
    %1014 = vmatpush1.xpose.msra.mxu0 0.0
    %1015 = vmatprep.subr.mxu0 0.0
    %1016 = vmatpush1.xpose.msra.mxu0 0.0
    %1017 = vmatprep.subr.mxu0 0.0
    %1018 = vmatpush1.xpose.msra.mxu0 0.0
    %1019 = vmatprep.subr.mxu0 0.0
    %1020 = vmatpush1.xpose.msra.mxu0 0.0
    %1021 = vmatprep.subr.mxu0 0.0
    %1022 = vmatpush1.xpose.msra.mxu0 0.0
    %1023 = vmatprep.subr.mxu0 0.0
    %1024 = vmatpush1.xpose.msra.mxu0 0.0
    %1025 = vmatprep.subr.mxu0 0.0
    %1026 = vmatpush1.xpose.msra.mxu0 0.0
    %1027 = vmatprep.subr.mxu0 0.0
    %1028 = vmatpush1.xpose.msra.mxu0 0.0
    %1029 = vmatprep.subr.mxu0 0.0
    %1030 = vmatpush1.xpose.msra.mxu0 %v997
    %1031 = vmatprep.subr.mxu0 0.0
    %1032 = vmatpush2.xpose.msra.mxu0 0.0
    %1033 = vmatprep.subr.mxu0 0.0
    %1034 = vmatpush2.xpose.msra.mxu0 0.0
    %1035 = vmatprep.subr.mxu0 0.0
    %1036 = vmatpush2.xpose.msra.mxu0 0.0
    %1037 = vmatprep.subr.mxu0 0.0
    %1038 = vmatpush2.xpose.msra.mxu0 0.0
    %1039 = vmatprep.subr.mxu0 0.0
    %1040 = vmatpush2.xpose.msra.mxu0 0.0
    %1041 = vmatprep.subr.mxu0 0.0
    %1042 = vmatpush2.xpose.msra.mxu0 0.0
    %1043 = vmatprep.subr.mxu0 0.0
    %1044 = vmatpush2.xpose.msra.mxu0 0.0
    %1045 = vmatprep.subr.mxu0 0.0
    %1046 = vmatpush2.xpose.msra.mxu0 0.0
    %1047 = vmatprep.subr.mxu0 0.0
    %1048 = vmatpush2.xpose.msra.mxu0 0.0
    %1049 = vmatprep.subr.mxu0 0.0
    %1050 = vmatpush2.xpose.msra.mxu0 0.0
    %1051 = vmatprep.subr.mxu0 0.0
    %1052 = vmatpush2.xpose.msra.mxu0 0.0
    %1053 = vmatprep.subr.mxu0 0.0
    %1054 = vmatpush2.xpose.msra.mxu0 0.0
    %1055 = vmatprep.subr.mxu0 0.0
    %1056 = vmatpush2.xpose.msra.mxu0 0.0
    %1057 = vmatprep.subr.mxu0 0.0
    %1058 = vmatpush2.xpose.msra.mxu0 0.0
    %1059 = vmatprep.subr.mxu0 0.0
    %1060 = vmatpush2.xpose.msra.mxu0 0.0
    %1061 = vmatprep.subr.mxu0 0.0
    %1062 = vmatpush2.xpose.msra.mxu0 0.0
    %1063 = vmatprep.mubr.f32.mxu0 0.0
    %1064 = vmatmul.mubr.f32.gmra.mxu0 %v995
    %v1065 = vpop.f32.mrf.mxu0
    %v1066 = vadd.f32 0.0, %v1065
    %v1067 = vpop.f32.mrf.mxu0
    %1068 = vdwg.mxu0
    %v1069 = vsel %vm319, %v1066, -inf
    %1070 = vmax.xlane.f32.xlu0 %v1069
    %v1071 = vpop.xlane.xlu0 %1070
    %v1072 = vsub.f32 %v1066, %v1071
    %v1073 = vmul.f32 %v1072, 1.442695
    %v1074 = vpow.pop %v1073
    %v1075 = vsel %vm319, %v1074, 0.0
    %1076 = vadd.xlane.f32.xlu0 %v1075
    %v1077 = vpop.xlane.xlu0 %1076
    %v1078 = vrcp.pop %v1077
    %v1079 = vmul.f32 %v1074, %v1078
    %1080 = vrot.lane.b32.xlu0 %v313, 64
    %v1081 = vpop.permute.xlu0 %1080
    %v1084 = vsel %vm319, %v1079, 0
    %1086 = vmatprep.subr.mxu0 0.0
    %1087 = vmatpush1.msra.mxu0 0.0
    %1088 = vmatprep.subr.mxu0 0.0
    %1089 = vmatpush1.msra.mxu0 0.0
    %1090 = vmatprep.subr.mxu0 0.0
    %1091 = vmatpush1.msra.mxu0 0.0
    %1092 = vmatprep.subr.mxu0 0.0
    %1093 = vmatpush1.msra.mxu0 0.0
    %1094 = vmatprep.subr.mxu0 0.0
    %1095 = vmatpush1.msra.mxu0 0.0
    %1096 = vmatprep.subr.mxu0 0.0
    %1097 = vmatpush1.msra.mxu0 0.0
    %1098 = vmatprep.subr.mxu0 0.0
    %1099 = vmatpush1.msra.mxu0 0.0
    %1100 = vmatprep.subr.mxu0 0.0
    %1101 = vmatpush1.msra.mxu0 0.0
    %1102 = vmatprep.subr.mxu0 0.0
    %1103 = vmatpush1.msra.mxu0 0.0
    %1104 = vmatprep.subr.mxu0 0.0
    %1105 = vmatpush1.msra.mxu0 0.0
    %1106 = vmatprep.subr.mxu0 0.0
    %1107 = vmatpush1.msra.mxu0 0.0
    %1108 = vmatprep.subr.mxu0 0.0
    %1109 = vmatpush1.msra.mxu0 0.0
    %1110 = vmatprep.subr.mxu0 0.0
    %1111 = vmatpush1.msra.mxu0 0.0
    %1112 = vmatprep.subr.mxu0 0.0
    %1113 = vmatpush1.msra.mxu0 0.0
    %1114 = vmatprep.subr.mxu0 0.0
    %1115 = vmatpush1.msra.mxu0 0.0
    %1116 = vmatprep.subr.mxu0 0.0
    %1117 = vmatpush1.msra.mxu0 %v1081
    %1118 = vmatprep.subr.mxu0 0.0
    %1119 = vmatpush2.msra.mxu0 0.0
    %1120 = vmatprep.subr.mxu0 0.0
    %1121 = vmatpush2.msra.mxu0 0.0
    %1122 = vmatprep.subr.mxu0 0.0
    %1123 = vmatpush2.msra.mxu0 0.0
    %1124 = vmatprep.subr.mxu0 0.0
    %1125 = vmatpush2.msra.mxu0 0.0
    %1126 = vmatprep.subr.mxu0 0.0
    %1127 = vmatpush2.msra.mxu0 0.0
    %1128 = vmatprep.subr.mxu0 0.0
    %1129 = vmatpush2.msra.mxu0 0.0
    %1130 = vmatprep.subr.mxu0 0.0
    %1131 = vmatpush2.msra.mxu0 0.0
    %1132 = vmatprep.subr.mxu0 0.0
    %1133 = vmatpush2.msra.mxu0 0.0
    %1134 = vmatprep.subr.mxu0 0.0
    %1135 = vmatpush2.msra.mxu0 0.0
    %1136 = vmatprep.subr.mxu0 0.0
    %1137 = vmatpush2.msra.mxu0 0.0
    %1138 = vmatprep.subr.mxu0 0.0
    %1139 = vmatpush2.msra.mxu0 0.0
    %1140 = vmatprep.subr.mxu0 0.0
    %1141 = vmatpush2.msra.mxu0 0.0
    %1142 = vmatprep.subr.mxu0 0.0
    %1143 = vmatpush2.msra.mxu0 0.0
    %1144 = vmatprep.subr.mxu0 0.0
    %1145 = vmatpush2.msra.mxu0 0.0
    %1146 = vmatprep.subr.mxu0 0.0
    %1147 = vmatpush2.msra.mxu0 0.0
    %1148 = vmatprep.subr.mxu0 0.0
    %1149 = vmatpush2.msra.mxu0 0.0
    %1150 = vmatprep.mubr.f32.mxu0 0.0
    %1151 = vmatmul.mubr.f32.gmra.mxu0 %v1084
    %v1152 = vpop.f32.mrf.mxu0
    %v1153 = vadd.f32 0.0, %v1152
    %v1154 = vpop.f32.mrf.mxu0
    %1155 = vdwg.mxu0
    %1156 = vrot.lane.b32.xlu0 %v313, 120
    %v1157 = vpop.permute.xlu0 %1156
    %1158 = vrot.lane.b32.xlu0 %v313, 88
    %v1159 = vpop.permute.xlu0 %1158
    %v1160 = vsel %vm319, %v1157, 0
    %v1162 = vsel %vm319, %v1159, 0
    %1164 = vmatprep.subr.mxu0 0.0
    %1165 = vmatpush1.xpose.msra.mxu0 0.0
    %1166 = vmatprep.subr.mxu0 0.0
    %1167 = vmatpush1.xpose.msra.mxu0 0.0
    %1168 = vmatprep.subr.mxu0 0.0
    %1169 = vmatpush1.xpose.msra.mxu0 0.0
    %1170 = vmatprep.subr.mxu0 0.0
    %1171 = vmatpush1.xpose.msra.mxu0 0.0
    %1172 = vmatprep.subr.mxu0 0.0
    %1173 = vmatpush1.xpose.msra.mxu0 0.0
    %1174 = vmatprep.subr.mxu0 0.0
    %1175 = vmatpush1.xpose.msra.mxu0 0.0
    %1176 = vmatprep.subr.mxu0 0.0
    %1177 = vmatpush1.xpose.msra.mxu0 0.0
    %1178 = vmatprep.subr.mxu0 0.0
    %1179 = vmatpush1.xpose.msra.mxu0 0.0
    %1180 = vmatprep.subr.mxu0 0.0
    %1181 = vmatpush1.xpose.msra.mxu0 0.0
    %1182 = vmatprep.subr.mxu0 0.0
    %1183 = vmatpush1.xpose.msra.mxu0 0.0
    %1184 = vmatprep.subr.mxu0 0.0
    %1185 = vmatpush1.xpose.msra.mxu0 0.0
    %1186 = vmatprep.subr.mxu0 0.0
    %1187 = vmatpush1.xpose.msra.mxu0 0.0
    %1188 = vmatprep.subr.mxu0 0.0
    %1189 = vmatpush1.xpose.msra.mxu0 0.0
    %1190 = vmatprep.subr.mxu0 0.0
    %1191 = vmatpush1.xpose.msra.mxu0 0.0
    %1192 = vmatprep.subr.mxu0 0.0
    %1193 = vmatpush1.xpose.msra.mxu0 0.0
    %1194 = vmatprep.subr.mxu0 0.0
    %1195 = vmatpush1.xpose.msra.mxu0 %v1162
    %1196 = vmatprep.subr.mxu0 0.0
    %1197 = vmatpush2.xpose.msra.mxu0 0.0
    %1198 = vmatprep.subr.mxu0 0.0
    %1199 = vmatpush2.xpose.msra.mxu0 0.0
    %1200 = vmatprep.subr.mxu0 0.0
    %1201 = vmatpush2.xpose.msra.mxu0 0.0
    %1202 = vmatprep.subr.mxu0 0.0
    %1203 = vmatpush2.xpose.msra.mxu0 0.0
    %1204 = vmatprep.subr.mxu0 0.0
    %1205 = vmatpush2.xpose.msra.mxu0 0.0
    %1206 = vmatprep.subr.mxu0 0.0
    %1207 = vmatpush2.xpose.msra.mxu0 0.0
    %1208 = vmatprep.subr.mxu0 0.0
    %1209 = vmatpush2.xpose.msra.mxu0 0.0
    %1210 = vmatprep.subr.mxu0 0.0
    %1211 = vmatpush2.xpose.msra.mxu0 0.0
    %1212 = vmatprep.subr.mxu0 0.0
    %1213 = vmatpush2.xpose.msra.mxu0 0.0
    %1214 = vmatprep.subr.mxu0 0.0
    %1215 = vmatpush2.xpose.msra.mxu0 0.0
    %1216 = vmatprep.subr.mxu0 0.0
    %1217 = vmatpush2.xpose.msra.mxu0 0.0
    %1218 = vmatprep.subr.mxu0 0.0
    %1219 = vmatpush2.xpose.msra.mxu0 0.0
    %1220 = vmatprep.subr.mxu0 0.0
    %1221 = vmatpush2.xpose.msra.mxu0 0.0
    %1222 = vmatprep.subr.mxu0 0.0
    %1223 = vmatpush2.xpose.msra.mxu0 0.0
    %1224 = vmatprep.subr.mxu0 0.0
    %1225 = vmatpush2.xpose.msra.mxu0 0.0
    %1226 = vmatprep.subr.mxu0 0.0
    %1227 = vmatpush2.xpose.msra.mxu0 0.0
    %1228 = vmatprep.mubr.f32.mxu0 0.0
    %1229 = vmatmul.mubr.f32.gmra.mxu0 %v1160
    %v1230 = vpop.f32.mrf.mxu0
    %v1231 = vadd.f32 0.0, %v1230
    %v1232 = vpop.f32.mrf.mxu0
    %1233 = vdwg.mxu0
    %v1234 = vsel %vm319, %v1231, -inf
    %1235 = vmax.xlane.f32.xlu0 %v1234
    %v1236 = vpop.xlane.xlu0 %1235
    %v1237 = vsub.f32 %v1231, %v1236
    %v1238 = vmul.f32 %v1237, 1.442695
    %v1239 = vpow.pop %v1238
    %v1240 = vsel %vm319, %v1239, 0.0
    %1241 = vadd.xlane.f32.xlu0 %v1240
    %v1242 = vpop.xlane.xlu0 %1241
    %v1243 = vrcp.pop %v1242
    %v1244 = vmul.f32 %v1239, %v1243
    %1245 = vrot.lane.b32.xlu0 %v313, 56
    %v1246 = vpop.permute.xlu0 %1245
    %v1249 = vsel %vm319, %v1244, 0
    %1251 = vmatprep.subr.mxu0 0.0
    %1252 = vmatpush1.msra.mxu0 0.0
    %1253 = vmatprep.subr.mxu0 0.0
    %1254 = vmatpush1.msra.mxu0 0.0
    %1255 = vmatprep.subr.mxu0 0.0
    %1256 = vmatpush1.msra.mxu0 0.0
    %1257 = vmatprep.subr.mxu0 0.0
    %1258 = vmatpush1.msra.mxu0 0.0
    %1259 = vmatprep.subr.mxu0 0.0
    %1260 = vmatpush1.msra.mxu0 0.0
    %1261 = vmatprep.subr.mxu0 0.0
    %1262 = vmatpush1.msra.mxu0 0.0
    %1263 = vmatprep.subr.mxu0 0.0
    %1264 = vmatpush1.msra.mxu0 0.0
    %1265 = vmatprep.subr.mxu0 0.0
    %1266 = vmatpush1.msra.mxu0 0.0
    %1267 = vmatprep.subr.mxu0 0.0
    %1268 = vmatpush1.msra.mxu0 0.0
    %1269 = vmatprep.subr.mxu0 0.0
    %1270 = vmatpush1.msra.mxu0 0.0
    %1271 = vmatprep.subr.mxu0 0.0
    %1272 = vmatpush1.msra.mxu0 0.0
    %1273 = vmatprep.subr.mxu0 0.0
    %1274 = vmatpush1.msra.mxu0 0.0
    %1275 = vmatprep.subr.mxu0 0.0
    %1276 = vmatpush1.msra.mxu0 0.0
    %1277 = vmatprep.subr.mxu0 0.0
    %1278 = vmatpush1.msra.mxu0 0.0
    %1279 = vmatprep.subr.mxu0 0.0
    %1280 = vmatpush1.msra.mxu0 0.0
    %1281 = vmatprep.subr.mxu0 0.0
    %1282 = vmatpush1.msra.mxu0 %v1246
    %1283 = vmatprep.subr.mxu0 0.0
    %1284 = vmatpush2.msra.mxu0 0.0
    %1285 = vmatprep.subr.mxu0 0.0
    %1286 = vmatpush2.msra.mxu0 0.0
    %1287 = vmatprep.subr.mxu0 0.0
    %1288 = vmatpush2.msra.mxu0 0.0
    %1289 = vmatprep.subr.mxu0 0.0
    %1290 = vmatpush2.msra.mxu0 0.0
    %1291 = vmatprep.subr.mxu0 0.0
    %1292 = vmatpush2.msra.mxu0 0.0
    %1293 = vmatprep.subr.mxu0 0.0
    %1294 = vmatpush2.msra.mxu0 0.0
    %1295 = vmatprep.subr.mxu0 0.0
    %1296 = vmatpush2.msra.mxu0 0.0
    %1297 = vmatprep.subr.mxu0 0.0
    %1298 = vmatpush2.msra.mxu0 0.0
    %1299 = vmatprep.subr.mxu0 0.0
    %1300 = vmatpush2.msra.mxu0 0.0
    %1301 = vmatprep.subr.mxu0 0.0
    %1302 = vmatpush2.msra.mxu0 0.0
    %1303 = vmatprep.subr.mxu0 0.0
    %1304 = vmatpush2.msra.mxu0 0.0
    %1305 = vmatprep.subr.mxu0 0.0
    %1306 = vmatpush2.msra.mxu0 0.0
    %1307 = vmatprep.subr.mxu0 0.0
    %1308 = vmatpush2.msra.mxu0 0.0
    %1309 = vmatprep.subr.mxu0 0.0
    %1310 = vmatpush2.msra.mxu0 0.0
    %1311 = vmatprep.subr.mxu0 0.0
    %1312 = vmatpush2.msra.mxu0 0.0
    %1313 = vmatprep.subr.mxu0 0.0
    %1314 = vmatpush2.msra.mxu0 0.0
    %1315 = vmatprep.mubr.f32.mxu0 0.0
    %1316 = vmatmul.mubr.f32.gmra.mxu0 %v1249
    %v1317 = vpop.f32.mrf.mxu0
    %v1318 = vadd.f32 0.0, %v1317
    %v1319 = vpop.f32.mrf.mxu0
    %1320 = vdwg.mxu0
    %1321 = vrot.lane.b32.xlu0 %v313, 112
    %v1322 = vpop.permute.xlu0 %1321
    %1323 = vrot.lane.b32.xlu0 %v313, 80
    %v1324 = vpop.permute.xlu0 %1323
    %v1325 = vsel %vm319, %v1322, 0
    %v1327 = vsel %vm319, %v1324, 0
    %1329 = vmatprep.subr.mxu0 0.0
    %1330 = vmatpush1.xpose.msra.mxu0 0.0
    %1331 = vmatprep.subr.mxu0 0.0
    %1332 = vmatpush1.xpose.msra.mxu0 0.0
    %1333 = vmatprep.subr.mxu0 0.0
    %1334 = vmatpush1.xpose.msra.mxu0 0.0
    %1335 = vmatprep.subr.mxu0 0.0
    %1336 = vmatpush1.xpose.msra.mxu0 0.0
    %1337 = vmatprep.subr.mxu0 0.0
    %1338 = vmatpush1.xpose.msra.mxu0 0.0
    %1339 = vmatprep.subr.mxu0 0.0
    %1340 = vmatpush1.xpose.msra.mxu0 0.0
    %1341 = vmatprep.subr.mxu0 0.0
    %1342 = vmatpush1.xpose.msra.mxu0 0.0
    %1343 = vmatprep.subr.mxu0 0.0
    %1344 = vmatpush1.xpose.msra.mxu0 0.0
    %1345 = vmatprep.subr.mxu0 0.0
    %1346 = vmatpush1.xpose.msra.mxu0 0.0
    %1347 = vmatprep.subr.mxu0 0.0
    %1348 = vmatpush1.xpose.msra.mxu0 0.0
    %1349 = vmatprep.subr.mxu0 0.0
    %1350 = vmatpush1.xpose.msra.mxu0 0.0
    %1351 = vmatprep.subr.mxu0 0.0
    %1352 = vmatpush1.xpose.msra.mxu0 0.0
    %1353 = vmatprep.subr.mxu0 0.0
    %1354 = vmatpush1.xpose.msra.mxu0 0.0
    %1355 = vmatprep.subr.mxu0 0.0
    %1356 = vmatpush1.xpose.msra.mxu0 0.0
    %1357 = vmatprep.subr.mxu0 0.0
    %1358 = vmatpush1.xpose.msra.mxu0 0.0
    %1359 = vmatprep.subr.mxu0 0.0
    %1360 = vmatpush1.xpose.msra.mxu0 %v1327
    %1361 = vmatprep.subr.mxu0 0.0
    %1362 = vmatpush2.xpose.msra.mxu0 0.0
    %1363 = vmatprep.subr.mxu0 0.0
    %1364 = vmatpush2.xpose.msra.mxu0 0.0
    %1365 = vmatprep.subr.mxu0 0.0
    %1366 = vmatpush2.xpose.msra.mxu0 0.0
    %1367 = vmatprep.subr.mxu0 0.0
    %1368 = vmatpush2.xpose.msra.mxu0 0.0
    %1369 = vmatprep.subr.mxu0 0.0
    %1370 = vmatpush2.xpose.msra.mxu0 0.0
    %1371 = vmatprep.subr.mxu0 0.0
    %1372 = vmatpush2.xpose.msra.mxu0 0.0
    %1373 = vmatprep.subr.mxu0 0.0
    %1374 = vmatpush2.xpose.msra.mxu0 0.0
    %1375 = vmatprep.subr.mxu0 0.0
    %1376 = vmatpush2.xpose.msra.mxu0 0.0
    %1377 = vmatprep.subr.mxu0 0.0
    %1378 = vmatpush2.xpose.msra.mxu0 0.0
    %1379 = vmatprep.subr.mxu0 0.0
    %1380 = vmatpush2.xpose.msra.mxu0 0.0
    %1381 = vmatprep.subr.mxu0 0.0
    %1382 = vmatpush2.xpose.msra.mxu0 0.0
    %1383 = vmatprep.subr.mxu0 0.0
    %1384 = vmatpush2.xpose.msra.mxu0 0.0
    %1385 = vmatprep.subr.mxu0 0.0
    %1386 = vmatpush2.xpose.msra.mxu0 0.0
    %1387 = vmatprep.subr.mxu0 0.0
    %1388 = vmatpush2.xpose.msra.mxu0 0.0
    %1389 = vmatprep.subr.mxu0 0.0
    %1390 = vmatpush2.xpose.msra.mxu0 0.0
    %1391 = vmatprep.subr.mxu0 0.0
    %1392 = vmatpush2.xpose.msra.mxu0 0.0
    %1393 = vmatprep.mubr.f32.mxu0 0.0
    %1394 = vmatmul.mubr.f32.gmra.mxu0 %v1325
    %v1395 = vpop.f32.mrf.mxu0
    %v1396 = vadd.f32 0.0, %v1395
    %v1397 = vpop.f32.mrf.mxu0
    %1398 = vdwg.mxu0
    %v1399 = vsel %vm319, %v1396, -inf
    %1400 = vmax.xlane.f32.xlu0 %v1399
    %v1401 = vpop.xlane.xlu0 %1400
    %v1402 = vsub.f32 %v1396, %v1401
    %v1403 = vmul.f32 %v1402, 1.442695
    %v1404 = vpow.pop %v1403
    %v1405 = vsel %vm319, %v1404, 0.0
    %1406 = vadd.xlane.f32.xlu0 %v1405
    %v1407 = vpop.xlane.xlu0 %1406
    %v1408 = vrcp.pop %v1407
    %v1409 = vmul.f32 %v1404, %v1408
    %1410 = vrot.lane.b32.xlu0 %v313, 48
    %v1411 = vpop.permute.xlu0 %1410
    %v1414 = vsel %vm319, %v1409, 0
    %1416 = vmatprep.subr.mxu0 0.0
    %1417 = vmatpush1.msra.mxu0 0.0
    %1418 = vmatprep.subr.mxu0 0.0
    %1419 = vmatpush1.msra.mxu0 0.0
    %1420 = vmatprep.subr.mxu0 0.0
    %1421 = vmatpush1.msra.mxu0 0.0
    %1422 = vmatprep.subr.mxu0 0.0
    %1423 = vmatpush1.msra.mxu0 0.0
    %1424 = vmatprep.subr.mxu0 0.0
    %1425 = vmatpush1.msra.mxu0 0.0
    %1426 = vmatprep.subr.mxu0 0.0
    %1427 = vmatpush1.msra.mxu0 0.0
    %1428 = vmatprep.subr.mxu0 0.0
    %1429 = vmatpush1.msra.mxu0 0.0
    %1430 = vmatprep.subr.mxu0 0.0
    %1431 = vmatpush1.msra.mxu0 0.0
    %1432 = vmatprep.subr.mxu0 0.0
    %1433 = vmatpush1.msra.mxu0 0.0
    %1434 = vmatprep.subr.mxu0 0.0
    %1435 = vmatpush1.msra.mxu0 0.0
    %1436 = vmatprep.subr.mxu0 0.0
    %1437 = vmatpush1.msra.mxu0 0.0
    %1438 = vmatprep.subr.mxu0 0.0
    %1439 = vmatpush1.msra.mxu0 0.0
    %1440 = vmatprep.subr.mxu0 0.0
    %1441 = vmatpush1.msra.mxu0 0.0
    %1442 = vmatprep.subr.mxu0 0.0
    %1443 = vmatpush1.msra.mxu0 0.0
    %1444 = vmatprep.subr.mxu0 0.0
    %1445 = vmatpush1.msra.mxu0 0.0
    %1446 = vmatprep.subr.mxu0 0.0
    %1447 = vmatpush1.msra.mxu0 %v1411
    %1448 = vmatprep.subr.mxu0 0.0
    %1449 = vmatpush2.msra.mxu0 0.0
    %1450 = vmatprep.subr.mxu0 0.0
    %1451 = vmatpush2.msra.mxu0 0.0
    %1452 = vmatprep.subr.mxu0 0.0
    %1453 = vmatpush2.msra.mxu0 0.0
    %1454 = vmatprep.subr.mxu0 0.0
    %1455 = vmatpush2.msra.mxu0 0.0
    %1456 = vmatprep.subr.mxu0 0.0
    %1457 = vmatpush2.msra.mxu0 0.0
    %1458 = vmatprep.subr.mxu0 0.0
    %1459 = vmatpush2.msra.mxu0 0.0
    %1460 = vmatprep.subr.mxu0 0.0
    %1461 = vmatpush2.msra.mxu0 0.0
    %1462 = vmatprep.subr.mxu0 0.0
    %1463 = vmatpush2.msra.mxu0 0.0
    %1464 = vmatprep.subr.mxu0 0.0
    %1465 = vmatpush2.msra.mxu0 0.0
    %1466 = vmatprep.subr.mxu0 0.0
    %1467 = vmatpush2.msra.mxu0 0.0
    %1468 = vmatprep.subr.mxu0 0.0
    %1469 = vmatpush2.msra.mxu0 0.0
    %1470 = vmatprep.subr.mxu0 0.0
    %1471 = vmatpush2.msra.mxu0 0.0
    %1472 = vmatprep.subr.mxu0 0.0
    %1473 = vmatpush2.msra.mxu0 0.0
    %1474 = vmatprep.subr.mxu0 0.0
    %1475 = vmatpush2.msra.mxu0 0.0
    %1476 = vmatprep.subr.mxu0 0.0
    %1477 = vmatpush2.msra.mxu0 0.0
    %1478 = vmatprep.subr.mxu0 0.0
    %1479 = vmatpush2.msra.mxu0 0.0
    %1480 = vmatprep.mubr.f32.mxu0 0.0
    %1481 = vmatmul.mubr.f32.gmra.mxu0 %v1414
    %v1482 = vpop.f32.mrf.mxu0
    %v1483 = vadd.f32 0.0, %v1482
    %v1484 = vpop.f32.mrf.mxu0
    %1485 = vdwg.mxu0
    %1486 = vrot.lane.b32.xlu0 %v313, 104
    %v1487 = vpop.permute.xlu0 %1486
    %1488 = vrot.lane.b32.xlu0 %v313, 72
    %v1489 = vpop.permute.xlu0 %1488
    %v1490 = vsel %vm319, %v1487, 0
    %v1492 = vsel %vm319, %v1489, 0
    %1494 = vmatprep.subr.mxu0 0.0
    %1495 = vmatpush1.xpose.msra.mxu0 0.0
    %1496 = vmatprep.subr.mxu0 0.0
    %1497 = vmatpush1.xpose.msra.mxu0 0.0
    %1498 = vmatprep.subr.mxu0 0.0
    %1499 = vmatpush1.xpose.msra.mxu0 0.0
    %1500 = vmatprep.subr.mxu0 0.0
    %1501 = vmatpush1.xpose.msra.mxu0 0.0
    %1502 = vmatprep.subr.mxu0 0.0
    %1503 = vmatpush1.xpose.msra.mxu0 0.0
    %1504 = vmatprep.subr.mxu0 0.0
    %1505 = vmatpush1.xpose.msra.mxu0 0.0
    %1506 = vmatprep.subr.mxu0 0.0
    %1507 = vmatpush1.xpose.msra.mxu0 0.0
    %1508 = vmatprep.subr.mxu0 0.0
    %1509 = vmatpush1.xpose.msra.mxu0 0.0
    %1510 = vmatprep.subr.mxu0 0.0
    %1511 = vmatpush1.xpose.msra.mxu0 0.0
    %1512 = vmatprep.subr.mxu0 0.0
    %1513 = vmatpush1.xpose.msra.mxu0 0.0
    %1514 = vmatprep.subr.mxu0 0.0
    %1515 = vmatpush1.xpose.msra.mxu0 0.0
    %1516 = vmatprep.subr.mxu0 0.0
    %1517 = vmatpush1.xpose.msra.mxu0 0.0
    %1518 = vmatprep.subr.mxu0 0.0
    %1519 = vmatpush1.xpose.msra.mxu0 0.0
    %1520 = vmatprep.subr.mxu0 0.0
    %1521 = vmatpush1.xpose.msra.mxu0 0.0
    %1522 = vmatprep.subr.mxu0 0.0
    %1523 = vmatpush1.xpose.msra.mxu0 0.0
    %1524 = vmatprep.subr.mxu0 0.0
    %1525 = vmatpush1.xpose.msra.mxu0 %v1492
    %1526 = vmatprep.subr.mxu0 0.0
    %1527 = vmatpush2.xpose.msra.mxu0 0.0
    %1528 = vmatprep.subr.mxu0 0.0
    %1529 = vmatpush2.xpose.msra.mxu0 0.0
    %1530 = vmatprep.subr.mxu0 0.0
    %1531 = vmatpush2.xpose.msra.mxu0 0.0
    %1532 = vmatprep.subr.mxu0 0.0
    %1533 = vmatpush2.xpose.msra.mxu0 0.0
    %1534 = vmatprep.subr.mxu0 0.0
    %1535 = vmatpush2.xpose.msra.mxu0 0.0
    %1536 = vmatprep.subr.mxu0 0.0
    %1537 = vmatpush2.xpose.msra.mxu0 0.0
    %1538 = vmatprep.subr.mxu0 0.0
    %1539 = vmatpush2.xpose.msra.mxu0 0.0
    %1540 = vmatprep.subr.mxu0 0.0
    %1541 = vmatpush2.xpose.msra.mxu0 0.0
    %1542 = vmatprep.subr.mxu0 0.0
    %1543 = vmatpush2.xpose.msra.mxu0 0.0
    %1544 = vmatprep.subr.mxu0 0.0
    %1545 = vmatpush2.xpose.msra.mxu0 0.0
    %1546 = vmatprep.subr.mxu0 0.0
    %1547 = vmatpush2.xpose.msra.mxu0 0.0
    %1548 = vmatprep.subr.mxu0 0.0
    %1549 = vmatpush2.xpose.msra.mxu0 0.0
    %1550 = vmatprep.subr.mxu0 0.0
    %1551 = vmatpush2.xpose.msra.mxu0 0.0
    %1552 = vmatprep.subr.mxu0 0.0
    %1553 = vmatpush2.xpose.msra.mxu0 0.0
    %1554 = vmatprep.subr.mxu0 0.0
    %1555 = vmatpush2.xpose.msra.mxu0 0.0
    %1556 = vmatprep.subr.mxu0 0.0
    %1557 = vmatpush2.xpose.msra.mxu0 0.0
    %1558 = vmatprep.mubr.f32.mxu0 0.0
    %1559 = vmatmul.mubr.f32.gmra.mxu0 %v1490
    %v1560 = vpop.f32.mrf.mxu0
    %v1561 = vadd.f32 0.0, %v1560
    %v1562 = vpop.f32.mrf.mxu0
    %1563 = vdwg.mxu0
    %v1564 = vsel %vm319, %v1561, -inf
    %1565 = vmax.xlane.f32.xlu0 %v1564
    %v1566 = vpop.xlane.xlu0 %1565
    %v1567 = vsub.f32 %v1561, %v1566
    %v1568 = vmul.f32 %v1567, 1.442695
    %v1569 = vpow.pop %v1568
    %v1570 = vsel %vm319, %v1569, 0.0
    %1571 = vadd.xlane.f32.xlu0 %v1570
    %v1572 = vpop.xlane.xlu0 %1571
    %v1573 = vrcp.pop %v1572
    %v1574 = vmul.f32 %v1569, %v1573
    %1575 = vrot.lane.b32.xlu0 %v313, 40
    %v1576 = vpop.permute.xlu0 %1575
    %v1579 = vsel %vm319, %v1574, 0
    %1581 = vmatprep.subr.mxu0 0.0
    %1582 = vmatpush1.msra.mxu0 0.0
    %1583 = vmatprep.subr.mxu0 0.0
    %1584 = vmatpush1.msra.mxu0 0.0
    %1585 = vmatprep.subr.mxu0 0.0
    %1586 = vmatpush1.msra.mxu0 0.0
    %1587 = vmatprep.subr.mxu0 0.0
    %1588 = vmatpush1.msra.mxu0 0.0
    %1589 = vmatprep.subr.mxu0 0.0
    %1590 = vmatpush1.msra.mxu0 0.0
    %1591 = vmatprep.subr.mxu0 0.0
    %1592 = vmatpush1.msra.mxu0 0.0
    %1593 = vmatprep.subr.mxu0 0.0
    %1594 = vmatpush1.msra.mxu0 0.0
    %1595 = vmatprep.subr.mxu0 0.0
    %1596 = vmatpush1.msra.mxu0 0.0
    %1597 = vmatprep.subr.mxu0 0.0
    %1598 = vmatpush1.msra.mxu0 0.0
    %1599 = vmatprep.subr.mxu0 0.0
    %1600 = vmatpush1.msra.mxu0 0.0
    %1601 = vmatprep.subr.mxu0 0.0
    %1602 = vmatpush1.msra.mxu0 0.0
    %1603 = vmatprep.subr.mxu0 0.0
    %1604 = vmatpush1.msra.mxu0 0.0
    %1605 = vmatprep.subr.mxu0 0.0
    %1606 = vmatpush1.msra.mxu0 0.0
    %1607 = vmatprep.subr.mxu0 0.0
    %1608 = vmatpush1.msra.mxu0 0.0
    %1609 = vmatprep.subr.mxu0 0.0
    %1610 = vmatpush1.msra.mxu0 0.0
    %1611 = vmatprep.subr.mxu0 0.0
    %1612 = vmatpush1.msra.mxu0 %v1576
    %1613 = vmatprep.subr.mxu0 0.0
    %1614 = vmatpush2.msra.mxu0 0.0
    %1615 = vmatprep.subr.mxu0 0.0
    %1616 = vmatpush2.msra.mxu0 0.0
    %1617 = vmatprep.subr.mxu0 0.0
    %1618 = vmatpush2.msra.mxu0 0.0
    %1619 = vmatprep.subr.mxu0 0.0
    %1620 = vmatpush2.msra.mxu0 0.0
    %1621 = vmatprep.subr.mxu0 0.0
    %1622 = vmatpush2.msra.mxu0 0.0
    %1623 = vmatprep.subr.mxu0 0.0
    %1624 = vmatpush2.msra.mxu0 0.0
    %1625 = vmatprep.subr.mxu0 0.0
    %1626 = vmatpush2.msra.mxu0 0.0
    %1627 = vmatprep.subr.mxu0 0.0
    %1628 = vmatpush2.msra.mxu0 0.0
    %1629 = vmatprep.subr.mxu0 0.0
    %1630 = vmatpush2.msra.mxu0 0.0
    %1631 = vmatprep.subr.mxu0 0.0
    %1632 = vmatpush2.msra.mxu0 0.0
    %1633 = vmatprep.subr.mxu0 0.0
    %1634 = vmatpush2.msra.mxu0 0.0
    %1635 = vmatprep.subr.mxu0 0.0
    %1636 = vmatpush2.msra.mxu0 0.0
    %1637 = vmatprep.subr.mxu0 0.0
    %1638 = vmatpush2.msra.mxu0 0.0
    %1639 = vmatprep.subr.mxu0 0.0
    %1640 = vmatpush2.msra.mxu0 0.0
    %1641 = vmatprep.subr.mxu0 0.0
    %1642 = vmatpush2.msra.mxu0 0.0
    %1643 = vmatprep.subr.mxu0 0.0
    %1644 = vmatpush2.msra.mxu0 0.0
    %1645 = vmatprep.mubr.f32.mxu0 0.0
    %1646 = vmatmul.mubr.f32.gmra.mxu0 %v1579
    %v1647 = vpop.f32.mrf.mxu0
    %v1648 = vadd.f32 0.0, %v1647
    %v1649 = vpop.f32.mrf.mxu0
    %1650 = vdwg.mxu0
    %1652 = vrot.lane.b32.xlu0 %v1318, 8
    %v1653 = vpop.permute.xlu0 %1652
    %1656 = vrot.lane.b32.xlu0 %v1483, 16
    %v1657 = vpop.permute.xlu0 %1656
    %1660 = vrot.lane.b32.xlu0 %v1648, 24
    %v1661 = vpop.permute.xlu0 %1660
    %v1663 = vsel %vm319, %v1153, %v1653
    %v1664 = vsel %vm138, %v1663, %v1657
    %v1665 = vsel %vm990, %v1664, %v1661
    %v1666 = vld [vmem:[%s17] sm:$0xff]
    %v1667 = vld [vmem:[%s17 + $0x8] sm:$0xff]
    %v1668 = vld [vmem:[%s17 + $0x10] sm:$0xff]
    %v1669 = vld [vmem:[%s17 + $0x18] sm:$0xff]
    %v1670 = vld [vmem:[%s19] sm:$0x1]
    %v1672 = vlaneseq
    %v1673 = vshrl.u32 %v1672, 7
    %v1674 = vsub.s32 0, %v1673
    %v1675 = vrot.slane %v1670, %v1674
    %v1678 = vsel %vm234, %v991, 0
    %v1681 = vsel %vm234, %v1665, 0
    %1683 = vmatprep.subr.mxu0 0.0
    %1684 = vmatpush1.msra.mxu0 0.0
    %1685 = vmatprep.subr.mxu0 0.0
    %1686 = vmatpush1.msra.mxu0 0.0
    %1687 = vmatprep.subr.mxu0 0.0
    %1688 = vmatpush1.msra.mxu0 0.0
    %1689 = vmatprep.subr.mxu0 0.0
    %1690 = vmatpush1.msra.mxu0 0.0
    %1691 = vmatprep.subr.mxu0 0.0
    %1692 = vmatpush1.msra.mxu0 0.0
    %1693 = vmatprep.subr.mxu0 0.0
    %1694 = vmatpush1.msra.mxu0 0.0
    %1695 = vmatprep.subr.mxu0 0.0
    %1696 = vmatpush1.msra.mxu0 0.0
    %1697 = vmatprep.subr.mxu0 0.0
    %1698 = vmatpush1.msra.mxu0 0.0
    %1699 = vmatprep.subr.mxu0 0.0
    %1700 = vmatpush1.msra.mxu0 0.0
    %1701 = vmatprep.subr.mxu0 0.0
    %1702 = vmatpush1.msra.mxu0 0.0
    %1703 = vmatprep.subr.mxu0 0.0
    %1704 = vmatpush1.msra.mxu0 0.0
    %1705 = vmatprep.subr.mxu0 0.0
    %1706 = vmatpush1.msra.mxu0 0.0
    %1707 = vmatprep.subr.mxu0 0.0
    %1708 = vmatpush1.msra.mxu0 %v1669
    %1709 = vmatprep.subr.mxu0 0.0
    %1710 = vmatpush1.msra.mxu0 %v1668
    %1711 = vmatprep.subr.mxu0 0.0
    %1712 = vmatpush1.msra.mxu0 %v1667
    %1713 = vmatprep.subr.mxu0 0.0
    %1714 = vmatpush1.msra.mxu0 %v1666
    %1715 = vmatprep.subr.mxu0 0.0
    %1716 = vmatpush2.msra.mxu0 0.0
    %1717 = vmatprep.subr.mxu0 0.0
    %1718 = vmatpush2.msra.mxu0 0.0
    %1719 = vmatprep.subr.mxu0 0.0
    %1720 = vmatpush2.msra.mxu0 0.0
    %1721 = vmatprep.subr.mxu0 0.0
    %1722 = vmatpush2.msra.mxu0 0.0
    %1723 = vmatprep.subr.mxu0 0.0
    %1724 = vmatpush2.msra.mxu0 0.0
    %1725 = vmatprep.subr.mxu0 0.0
    %1726 = vmatpush2.msra.mxu0 0.0
    %1727 = vmatprep.subr.mxu0 0.0
    %1728 = vmatpush2.msra.mxu0 0.0
    %1729 = vmatprep.subr.mxu0 0.0
    %1730 = vmatpush2.msra.mxu0 0.0
    %1731 = vmatprep.subr.mxu0 0.0
    %1732 = vmatpush2.msra.mxu0 0.0
    %1733 = vmatprep.subr.mxu0 0.0
    %1734 = vmatpush2.msra.mxu0 0.0
    %1735 = vmatprep.subr.mxu0 0.0
    %1736 = vmatpush2.msra.mxu0 0.0
    %1737 = vmatprep.subr.mxu0 0.0
    %1738 = vmatpush2.msra.mxu0 0.0
    %1739 = vmatprep.subr.mxu0 0.0
    %1740 = vmatpush2.msra.mxu0 0.0
    %1741 = vmatprep.subr.mxu0 0.0
    %1742 = vmatpush2.msra.mxu0 0.0
    %1743 = vmatprep.subr.mxu0 0.0
    %1744 = vmatpush2.msra.mxu0 0.0
    %1745 = vmatprep.subr.mxu0 0.0
    %1746 = vmatpush2.msra.mxu0 0.0
    %1747 = vmatprep.mubr.f32.mxu0 0.0
    %1748 = vmatmul.mubr.f32.gmra.mxu0 %v1678
    %v1749 = vpop.f32.mrf.mxu0
    %v1750 = vadd.f32 %v1675, %v1749
    %v1751 = vpop.f32.mrf.mxu0
    %1752 = vmatprep.mubr.f32.mxu0 0.0
    %1753 = vmatmul.mubr.f32.gmra.mxu0 %v1681
    %v1754 = vpop.f32.mrf.mxu0
    %v1755 = vadd.f32 %v1675, %v1754
    %v1756 = vpop.f32.mrf.mxu0
    %1757 = vdwg.mxu0
    %v1758 = vadd.f32 %v221, %v1750
    %v1759 = vadd.f32 %v222, %v1755
    %v1760 = vld [vmem:[%s21] sm:$0x1]
    %v1761 = vld [vmem:[%s23] sm:$0x1]
    %v1762 = vsel %vm234, %v1758, 0.0
    %1763 = vadd.xlane.f32.xlu0 %v1762
    %v1764 = vpop.xlane.xlu0 %1763
    %v1765 = vsel %vm234, %v1759, 0.0
    %1766 = vadd.xlane.f32.xlu0 %v1765
    %v1767 = vpop.xlane.xlu0 %1766
    %v1768 = vrcp.pop 32.0
    %v1769 = vmul.f32 %v1764, %v1768
    %v1770 = vmul.f32 %v1767, %v1768
    %v1771 = vsub.f32 %v1758, %v1769
    %v1772 = vsub.f32 %v1759, %v1770
    %v1773 = vmul.f32 %v1771, %v1771
    %v1774 = vmul.f32 %v1772, %v1772
    %v1775 = vsel %vm234, %v1773, 0.0
    %1776 = vadd.xlane.f32.xlu0 %v1775
    %v1777 = vpop.xlane.xlu0 %1776
    %v1778 = vsel %vm234, %v1774, 0.0
    %1779 = vadd.xlane.f32.xlu0 %v1778
    %v1780 = vpop.xlane.xlu0 %1779
    %v1781 = vmul.f32 %v1777, %v1768
    %v1782 = vmul.f32 %v1780, %v1768
    %v1783 = vadd.f32 %v1781, 1e-05
    %v1784 = vadd.f32 %v1782, 1e-05
    %v1785 = vrsqrt.pop %v1783
    %v1786 = vrsqrt.pop %v1784
    %v1787 = vmul.f32 %v1771, %v1785
    %v1788 = vmul.f32 %v1772, %v1786
    %v1790 = vlaneseq
    %v1791 = vshrl.u32 %v1790, 7
    %v1792 = vsub.s32 0, %v1791
    %v1793 = vrot.slane %v1760, %v1792
    %v1795 = vmul.f32 %v1787, %v1793
    %v1796 = vmul.f32 %v1788, %v1793
    %v1798 = vlaneseq
    %v1799 = vshrl.u32 %v1798, 7
    %v1800 = vsub.s32 0, %v1799
    %v1801 = vrot.slane %v1761, %v1800
    %v1803 = vadd.f32 %v1795, %v1801
    %v1804 = vadd.f32 %v1796, %v1801
    %v1805 = vld [vmem:[%s25] sm:$0xff]
    %v1806 = vld [vmem:[%s25 + $0x8] sm:$0xff]
    %v1807 = vld [vmem:[%s25 + $0x10] sm:$0xff]
    %v1808 = vld [vmem:[%s25 + $0x18] sm:$0xff]
    %v1809 = vld [vmem:[%s27] sm:$0x1]
    %v1811 = vlaneseq
    %v1812 = vshrl.u32 %v1811, 7
    %v1813 = vsub.s32 0, %v1812
    %v1814 = vrot.slane %v1809, %v1813
    %v1817 = vsel %vm234, %v1803, 0
    %v1820 = vsel %vm234, %v1804, 0
    %1822 = vmatprep.subr.mxu0 0.0
    %1823 = vmatpush1.msra.mxu0 0.0
    %1824 = vmatprep.subr.mxu0 0.0
    %1825 = vmatpush1.msra.mxu0 0.0
    %1826 = vmatprep.subr.mxu0 0.0
    %1827 = vmatpush1.msra.mxu0 0.0
    %1828 = vmatprep.subr.mxu0 0.0
    %1829 = vmatpush1.msra.mxu0 0.0
    %1830 = vmatprep.subr.mxu0 0.0
    %1831 = vmatpush1.msra.mxu0 0.0
    %1832 = vmatprep.subr.mxu0 0.0
    %1833 = vmatpush1.msra.mxu0 0.0
    %1834 = vmatprep.subr.mxu0 0.0
    %1835 = vmatpush1.msra.mxu0 0.0
    %1836 = vmatprep.subr.mxu0 0.0
    %1837 = vmatpush1.msra.mxu0 0.0
    %1838 = vmatprep.subr.mxu0 0.0
    %1839 = vmatpush1.msra.mxu0 0.0
    %1840 = vmatprep.subr.mxu0 0.0
    %1841 = vmatpush1.msra.mxu0 0.0
    %1842 = vmatprep.subr.mxu0 0.0
    %1843 = vmatpush1.msra.mxu0 0.0
    %1844 = vmatprep.subr.mxu0 0.0
    %1845 = vmatpush1.msra.mxu0 0.0
    %1846 = vmatprep.subr.mxu0 0.0
    %1847 = vmatpush1.msra.mxu0 %v1808
    %1848 = vmatprep.subr.mxu0 0.0
    %1849 = vmatpush1.msra.mxu0 %v1807
    %1850 = vmatprep.subr.mxu0 0.0
    %1851 = vmatpush1.msra.mxu0 %v1806
    %1852 = vmatprep.subr.mxu0 0.0
    %1853 = vmatpush1.msra.mxu0 %v1805
    %1854 = vmatprep.subr.mxu0 0.0
    %1855 = vmatpush2.msra.mxu0 0.0
    %1856 = vmatprep.subr.mxu0 0.0
    %1857 = vmatpush2.msra.mxu0 0.0
    %1858 = vmatprep.subr.mxu0 0.0
    %1859 = vmatpush2.msra.mxu0 0.0
    %1860 = vmatprep.subr.mxu0 0.0
    %1861 = vmatpush2.msra.mxu0 0.0
    %1862 = vmatprep.subr.mxu0 0.0
    %1863 = vmatpush2.msra.mxu0 0.0
    %1864 = vmatprep.subr.mxu0 0.0
    %1865 = vmatpush2.msra.mxu0 0.0
    %1866 = vmatprep.subr.mxu0 0.0
    %1867 = vmatpush2.msra.mxu0 0.0
    %1868 = vmatprep.subr.mxu0 0.0
    %1869 = vmatpush2.msra.mxu0 0.0
    %1870 = vmatprep.subr.mxu0 0.0
    %1871 = vmatpush2.msra.mxu0 0.0
    %1872 = vmatprep.subr.mxu0 0.0
    %1873 = vmatpush2.msra.mxu0 0.0
    %1874 = vmatprep.subr.mxu0 0.0
    %1875 = vmatpush2.msra.mxu0 0.0
    %1876 = vmatprep.subr.mxu0 0.0
    %1877 = vmatpush2.msra.mxu0 0.0
    %1878 = vmatprep.subr.mxu0 0.0
    %1879 = vmatpush2.msra.mxu0 0.0
    %1880 = vmatprep.subr.mxu0 0.0
    %1881 = vmatpush2.msra.mxu0 0.0
    %1882 = vmatprep.subr.mxu0 0.0
    %1883 = vmatpush2.msra.mxu0 0.0
    %1884 = vmatprep.subr.mxu0 0.0
    %1885 = vmatpush2.msra.mxu0 0.0
    %1886 = vmatprep.mubr.f32.mxu0 0.0
    %1887 = vmatmul.mubr.f32.gmra.mxu0 %v1817
    %v1888 = vpop.f32.mrf.mxu0
    %v1889 = vadd.f32 %v1814, %v1888
    %v1890 = vpop.f32.mrf.mxu0
    %1891 = vmatprep.mubr.f32.mxu0 0.0
    %1892 = vmatmul.mubr.f32.gmra.mxu0 %v1820
    %v1893 = vpop.f32.mrf.mxu0
    %v1894 = vadd.f32 %v1814, %v1893
    %v1895 = vpop.f32.mrf.mxu0
    %1896 = vdwg.mxu0
    %v1897 = vmax.f32 %v1889, 0.0
    %v1898 = vmax.f32 %v1894, 0.0
    %v1899 = vld [vmem:[%s29] sm:$0xff]
    %v1900 = vld [vmem:[%s29 + $0x8] sm:$0xff]
    %v1901 = vld [vmem:[%s29 + $0x10] sm:$0xff]
    %v1902 = vld [vmem:[%s29 + $0x18] sm:$0xff]
    %v1903 = vld [vmem:[%s29 + $0x20] sm:$0xff]
    %v1904 = vld [vmem:[%s29 + $0x28] sm:$0xff]
    %v1905 = vld [vmem:[%s29 + $0x30] sm:$0xff]
    %v1906 = vld [vmem:[%s29 + $0x38] sm:$0xff]
    %v1907 = vld [vmem:[%s31] sm:$0x1]
    %v1909 = vlaneseq
    %v1910 = vshrl.u32 %v1909, 7
    %v1911 = vsub.s32 0, %v1910
    %v1912 = vrot.slane %v1907, %v1911
    %vm1914 = vcmask 523264
    %v1916 = vsel %vm1914, %v1897, 0
    %v1919 = vsel %vm1914, %v1898, 0
    %1921 = vmatprep.subr.mxu0 0.0
    %1922 = vmatpush1.msra.mxu0 0.0
    %1923 = vmatprep.subr.mxu0 0.0
    %1924 = vmatpush1.msra.mxu0 0.0
    %1925 = vmatprep.subr.mxu0 0.0
    %1926 = vmatpush1.msra.mxu0 0.0
    %1927 = vmatprep.subr.mxu0 0.0
    %1928 = vmatpush1.msra.mxu0 0.0
    %1929 = vmatprep.subr.mxu0 0.0
    %1930 = vmatpush1.msra.mxu0 0.0
    %1931 = vmatprep.subr.mxu0 0.0
    %1932 = vmatpush1.msra.mxu0 0.0
    %1933 = vmatprep.subr.mxu0 0.0
    %1934 = vmatpush1.msra.mxu0 0.0
    %1935 = vmatprep.subr.mxu0 0.0
    %1936 = vmatpush1.msra.mxu0 0.0
    %1937 = vmatprep.subr.mxu0 0.0
    %1938 = vmatpush1.msra.mxu0 %v1906
    %1939 = vmatprep.subr.mxu0 0.0
    %1940 = vmatpush1.msra.mxu0 %v1905
    %1941 = vmatprep.subr.mxu0 0.0
    %1942 = vmatpush1.msra.mxu0 %v1904
    %1943 = vmatprep.subr.mxu0 0.0
    %1944 = vmatpush1.msra.mxu0 %v1903
    %1945 = vmatprep.subr.mxu0 0.0
    %1946 = vmatpush1.msra.mxu0 %v1902
    %1947 = vmatprep.subr.mxu0 0.0
    %1948 = vmatpush1.msra.mxu0 %v1901
    %1949 = vmatprep.subr.mxu0 0.0
    %1950 = vmatpush1.msra.mxu0 %v1900
    %1951 = vmatprep.subr.mxu0 0.0
    %1952 = vmatpush1.msra.mxu0 %v1899
    %1953 = vmatprep.subr.mxu0 0.0
    %1954 = vmatpush2.msra.mxu0 0.0
    %1955 = vmatprep.subr.mxu0 0.0
    %1956 = vmatpush2.msra.mxu0 0.0
    %1957 = vmatprep.subr.mxu0 0.0
    %1958 = vmatpush2.msra.mxu0 0.0
    %1959 = vmatprep.subr.mxu0 0.0
    %1960 = vmatpush2.msra.mxu0 0.0
    %1961 = vmatprep.subr.mxu0 0.0
    %1962 = vmatpush2.msra.mxu0 0.0
    %1963 = vmatprep.subr.mxu0 0.0
    %1964 = vmatpush2.msra.mxu0 0.0
    %1965 = vmatprep.subr.mxu0 0.0
    %1966 = vmatpush2.msra.mxu0 0.0
    %1967 = vmatprep.subr.mxu0 0.0
    %1968 = vmatpush2.msra.mxu0 0.0
    %1969 = vmatprep.subr.mxu0 0.0
    %1970 = vmatpush2.msra.mxu0 0.0
    %1971 = vmatprep.subr.mxu0 0.0
    %1972 = vmatpush2.msra.mxu0 0.0
    %1973 = vmatprep.subr.mxu0 0.0
    %1974 = vmatpush2.msra.mxu0 0.0
    %1975 = vmatprep.subr.mxu0 0.0
    %1976 = vmatpush2.msra.mxu0 0.0
    %1977 = vmatprep.subr.mxu0 0.0
    %1978 = vmatpush2.msra.mxu0 0.0
    %1979 = vmatprep.subr.mxu0 0.0
    %1980 = vmatpush2.msra.mxu0 0.0
    %1981 = vmatprep.subr.mxu0 0.0
    %1982 = vmatpush2.msra.mxu0 0.0
    %1983 = vmatprep.subr.mxu0 0.0
    %1984 = vmatpush2.msra.mxu0 0.0
    %1985 = vmatprep.mubr.f32.mxu0 0.0
    %1986 = vmatmul.mubr.f32.gmra.mxu0 %v1916
    %v1987 = vpop.f32.mrf.mxu0
    %v1988 = vadd.f32 %v1912, %v1987
    %v1989 = vpop.f32.mrf.mxu0
    %1990 = vmatprep.mubr.f32.mxu0 0.0
    %1991 = vmatmul.mubr.f32.gmra.mxu0 %v1919
    %v1992 = vpop.f32.mrf.mxu0
    %v1993 = vadd.f32 %v1912, %v1992
    %v1994 = vpop.f32.mrf.mxu0
    %1995 = vdwg.mxu0
    %v1996 = vadd.f32 %v1803, %v1988
    %v1997 = vadd.f32 %v1804, %v1993
    %v1998 = vld [vmem:[%s33] sm:$0x1]
    %v1999 = vld [vmem:[%s35] sm:$0x1]
    %v2000 = vsel %vm234, %v1996, 0.0
    %2001 = vadd.xlane.f32.xlu0 %v2000
    %v2002 = vpop.xlane.xlu0 %2001
    %v2003 = vsel %vm234, %v1997, 0.0
    %2004 = vadd.xlane.f32.xlu0 %v2003
    %v2005 = vpop.xlane.xlu0 %2004
    %v2006 = vmul.f32 %v2002, %v1768
    %v2007 = vmul.f32 %v2005, %v1768
    %v2008 = vsub.f32 %v1996, %v2006
    %v2009 = vsub.f32 %v1997, %v2007
    %v2010 = vmul.f32 %v2008, %v2008
    %v2011 = vmul.f32 %v2009, %v2009
    %v2012 = vsel %vm234, %v2010, 0.0
    %2013 = vadd.xlane.f32.xlu0 %v2012
    %v2014 = vpop.xlane.xlu0 %2013
    %v2015 = vsel %vm234, %v2011, 0.0
    %2016 = vadd.xlane.f32.xlu0 %v2015
    %v2017 = vpop.xlane.xlu0 %2016
    %v2018 = vmul.f32 %v2014, %v1768
    %v2019 = vmul.f32 %v2017, %v1768
    %v2020 = vadd.f32 %v2018, 1e-05
    %v2021 = vadd.f32 %v2019, 1e-05
    %v2022 = vrsqrt.pop %v2020
    %v2023 = vrsqrt.pop %v2021
    %v2024 = vmul.f32 %v2008, %v2022
    %v2025 = vmul.f32 %v2009, %v2023
    %v2027 = vlaneseq
    %v2028 = vshrl.u32 %v2027, 7
    %v2029 = vsub.s32 0, %v2028
    %v2030 = vrot.slane %v1998, %v2029
    %v2032 = vmul.f32 %v2024, %v2030
    %v2033 = vmul.f32 %v2025, %v2030
    %v2035 = vlaneseq
    %v2036 = vshrl.u32 %v2035, 7
    %v2037 = vsub.s32 0, %v2036
    %v2038 = vrot.slane %v1999, %v2037
    %v2040 = vadd.f32 %v2032, %v2038
    %v2041 = vadd.f32 %v2033, %v2038
    %v2042 = vld [vmem:[%s37] sm:$0xff]
    %v2043 = vld [vmem:[%s37 + $0x8] sm:$0xff]
    %v2044 = vld [vmem:[%s37 + $0x10] sm:$0xff]
    %v2045 = vld [vmem:[%s37 + $0x18] sm:$0xff]
    %v2046 = vld [vmem:[%s39] sm:$0x1]
    %v2048 = vlaneseq
    %v2049 = vshrl.u32 %v2048, 7
    %v2050 = vsub.s32 0, %v2049
    %v2051 = vrot.slane %v2046, %v2050
    %v2054 = vsel %vm234, %v2040, 0
    %v2057 = vsel %vm234, %v2041, 0
    %2059 = vmatprep.subr.mxu0 0.0
    %2060 = vmatpush1.msra.mxu0 0.0
    %2061 = vmatprep.subr.mxu0 0.0
    %2062 = vmatpush1.msra.mxu0 0.0
    %2063 = vmatprep.subr.mxu0 0.0
    %2064 = vmatpush1.msra.mxu0 0.0
    %2065 = vmatprep.subr.mxu0 0.0
    %2066 = vmatpush1.msra.mxu0 0.0
    %2067 = vmatprep.subr.mxu0 0.0
    %2068 = vmatpush1.msra.mxu0 0.0
    %2069 = vmatprep.subr.mxu0 0.0
    %2070 = vmatpush1.msra.mxu0 0.0
    %2071 = vmatprep.subr.mxu0 0.0
    %2072 = vmatpush1.msra.mxu0 0.0
    %2073 = vmatprep.subr.mxu0 0.0
    %2074 = vmatpush1.msra.mxu0 0.0
    %2075 = vmatprep.subr.mxu0 0.0
    %2076 = vmatpush1.msra.mxu0 0.0
    %2077 = vmatprep.subr.mxu0 0.0
    %2078 = vmatpush1.msra.mxu0 0.0
    %2079 = vmatprep.subr.mxu0 0.0
    %2080 = vmatpush1.msra.mxu0 0.0
    %2081 = vmatprep.subr.mxu0 0.0
    %2082 = vmatpush1.msra.mxu0 0.0
    %2083 = vmatprep.subr.mxu0 0.0
    %2084 = vmatpush1.msra.mxu0 %v2045
    %2085 = vmatprep.subr.mxu0 0.0
    %2086 = vmatpush1.msra.mxu0 %v2044
    %2087 = vmatprep.subr.mxu0 0.0
    %2088 = vmatpush1.msra.mxu0 %v2043
    %2089 = vmatprep.subr.mxu0 0.0
    %2090 = vmatpush1.msra.mxu0 %v2042
    %2091 = vmatprep.subr.mxu0 0.0
    %2092 = vmatpush2.msra.mxu0 0.0
    %2093 = vmatprep.subr.mxu0 0.0
    %2094 = vmatpush2.msra.mxu0 0.0
    %2095 = vmatprep.subr.mxu0 0.0
    %2096 = vmatpush2.msra.mxu0 0.0
    %2097 = vmatprep.subr.mxu0 0.0
    %2098 = vmatpush2.msra.mxu0 0.0
    %2099 = vmatprep.subr.mxu0 0.0
    %2100 = vmatpush2.msra.mxu0 0.0
    %2101 = vmatprep.subr.mxu0 0.0
    %2102 = vmatpush2.msra.mxu0 0.0
    %2103 = vmatprep.subr.mxu0 0.0
    %2104 = vmatpush2.msra.mxu0 0.0
    %2105 = vmatprep.subr.mxu0 0.0
    %2106 = vmatpush2.msra.mxu0 0.0
    %2107 = vmatprep.subr.mxu0 0.0
    %2108 = vmatpush2.msra.mxu0 0.0
    %2109 = vmatprep.subr.mxu0 0.0
    %2110 = vmatpush2.msra.mxu0 0.0
    %2111 = vmatprep.subr.mxu0 0.0
    %2112 = vmatpush2.msra.mxu0 0.0
    %2113 = vmatprep.subr.mxu0 0.0
    %2114 = vmatpush2.msra.mxu0 0.0
    %2115 = vmatprep.subr.mxu0 0.0
    %2116 = vmatpush2.msra.mxu0 0.0
    %2117 = vmatprep.subr.mxu0 0.0
    %2118 = vmatpush2.msra.mxu0 0.0
    %2119 = vmatprep.subr.mxu0 0.0
    %2120 = vmatpush2.msra.mxu0 0.0
    %2121 = vmatprep.subr.mxu0 0.0
    %2122 = vmatpush2.msra.mxu0 0.0
    %2123 = vmatprep.mubr.f32.mxu0 0.0
    %2124 = vmatmul.mubr.f32.gmra.mxu0 %v2054
    %v2125 = vpop.f32.mrf.mxu0
    %v2126 = vadd.f32 %v2051, %v2125
    %v2127 = vpop.f32.mrf.mxu0
    %2128 = vmatprep.mubr.f32.mxu0 0.0
    %2129 = vmatmul.mubr.f32.gmra.mxu0 %v2057
    %v2130 = vpop.f32.mrf.mxu0
    %v2131 = vadd.f32 %v2051, %v2130
    %v2132 = vpop.f32.mrf.mxu0
    %2133 = vdwg.mxu0
    %2135 = vrot.lane.b32.xlu0 %v2126, 96
    %v2136 = vpop.permute.xlu0 %2135
    %v2137 = vsel %vm319, %v2126, 0
    %v2139 = vsel %vm319, %v2136, 0
    %2141 = vmatprep.subr.mxu0 0.0
    %2142 = vmatpush1.xpose.msra.mxu0 0.0
    %2143 = vmatprep.subr.mxu0 0.0
    %2144 = vmatpush1.xpose.msra.mxu0 0.0
    %2145 = vmatprep.subr.mxu0 0.0
    %2146 = vmatpush1.xpose.msra.mxu0 0.0
    %2147 = vmatprep.subr.mxu0 0.0
    %2148 = vmatpush1.xpose.msra.mxu0 0.0
    %2149 = vmatprep.subr.mxu0 0.0
    %2150 = vmatpush1.xpose.msra.mxu0 0.0
    %2151 = vmatprep.subr.mxu0 0.0
    %2152 = vmatpush1.xpose.msra.mxu0 0.0
    %2153 = vmatprep.subr.mxu0 0.0
    %2154 = vmatpush1.xpose.msra.mxu0 0.0
    %2155 = vmatprep.subr.mxu0 0.0
    %2156 = vmatpush1.xpose.msra.mxu0 0.0
    %2157 = vmatprep.subr.mxu0 0.0
    %2158 = vmatpush1.xpose.msra.mxu0 0.0
    %2159 = vmatprep.subr.mxu0 0.0
    %2160 = vmatpush1.xpose.msra.mxu0 0.0
    %2161 = vmatprep.subr.mxu0 0.0
    %2162 = vmatpush1.xpose.msra.mxu0 0.0
    %2163 = vmatprep.subr.mxu0 0.0
    %2164 = vmatpush1.xpose.msra.mxu0 0.0
    %2165 = vmatprep.subr.mxu0 0.0
    %2166 = vmatpush1.xpose.msra.mxu0 0.0
    %2167 = vmatprep.subr.mxu0 0.0
    %2168 = vmatpush1.xpose.msra.mxu0 0.0
    %2169 = vmatprep.subr.mxu0 0.0
    %2170 = vmatpush1.xpose.msra.mxu0 0.0
    %2171 = vmatprep.subr.mxu0 0.0
    %2172 = vmatpush1.xpose.msra.mxu0 %v2139
    %2173 = vmatprep.subr.mxu0 0.0
    %2174 = vmatpush2.xpose.msra.mxu0 0.0
    %2175 = vmatprep.subr.mxu0 0.0
    %2176 = vmatpush2.xpose.msra.mxu0 0.0
    %2177 = vmatprep.subr.mxu0 0.0
    %2178 = vmatpush2.xpose.msra.mxu0 0.0
    %2179 = vmatprep.subr.mxu0 0.0
    %2180 = vmatpush2.xpose.msra.mxu0 0.0
    %2181 = vmatprep.subr.mxu0 0.0
    %2182 = vmatpush2.xpose.msra.mxu0 0.0
    %2183 = vmatprep.subr.mxu0 0.0
    %2184 = vmatpush2.xpose.msra.mxu0 0.0
    %2185 = vmatprep.subr.mxu0 0.0
    %2186 = vmatpush2.xpose.msra.mxu0 0.0
    %2187 = vmatprep.subr.mxu0 0.0
    %2188 = vmatpush2.xpose.msra.mxu0 0.0
    %2189 = vmatprep.subr.mxu0 0.0
    %2190 = vmatpush2.xpose.msra.mxu0 0.0
    %2191 = vmatprep.subr.mxu0 0.0
    %2192 = vmatpush2.xpose.msra.mxu0 0.0
    %2193 = vmatprep.subr.mxu0 0.0
    %2194 = vmatpush2.xpose.msra.mxu0 0.0
    %2195 = vmatprep.subr.mxu0 0.0
    %2196 = vmatpush2.xpose.msra.mxu0 0.0
    %2197 = vmatprep.subr.mxu0 0.0
    %2198 = vmatpush2.xpose.msra.mxu0 0.0
    %2199 = vmatprep.subr.mxu0 0.0
    %2200 = vmatpush2.xpose.msra.mxu0 0.0
    %2201 = vmatprep.subr.mxu0 0.0
    %2202 = vmatpush2.xpose.msra.mxu0 0.0
    %2203 = vmatprep.subr.mxu0 0.0
    %2204 = vmatpush2.xpose.msra.mxu0 0.0
    %2205 = vmatprep.mubr.f32.mxu0 0.0
    %2206 = vmatmul.mubr.f32.gmra.mxu0 %v2137
    %v2207 = vpop.f32.mrf.mxu0
    %v2208 = vadd.f32 0.0, %v2207
    %v2209 = vpop.f32.mrf.mxu0
    %2210 = vdwg.mxu0
    %v2211 = vsel %vm319, %v2208, -inf
    %2212 = vmax.xlane.f32.xlu0 %v2211
    %v2213 = vpop.xlane.xlu0 %2212
    %v2214 = vsub.f32 %v2208, %v2213
    %v2215 = vmul.f32 %v2214, 1.442695
    %v2216 = vpow.pop %v2215
    %v2217 = vsel %vm319, %v2216, 0.0
    %2218 = vadd.xlane.f32.xlu0 %v2217
    %v2219 = vpop.xlane.xlu0 %2218
    %v2220 = vrcp.pop %v2219
    %v2221 = vmul.f32 %v2216, %v2220
    %2222 = vrot.lane.b32.xlu0 %v2126, 64
    %v2223 = vpop.permute.xlu0 %2222
    %v2226 = vsel %vm319, %v2221, 0
    %2228 = vmatprep.subr.mxu0 0.0
    %2229 = vmatpush1.msra.mxu0 0.0
    %2230 = vmatprep.subr.mxu0 0.0
    %2231 = vmatpush1.msra.mxu0 0.0
    %2232 = vmatprep.subr.mxu0 0.0
    %2233 = vmatpush1.msra.mxu0 0.0
    %2234 = vmatprep.subr.mxu0 0.0
    %2235 = vmatpush1.msra.mxu0 0.0
    %2236 = vmatprep.subr.mxu0 0.0
    %2237 = vmatpush1.msra.mxu0 0.0
    %2238 = vmatprep.subr.mxu0 0.0
    %2239 = vmatpush1.msra.mxu0 0.0
    %2240 = vmatprep.subr.mxu0 0.0
    %2241 = vmatpush1.msra.mxu0 0.0
    %2242 = vmatprep.subr.mxu0 0.0
    %2243 = vmatpush1.msra.mxu0 0.0
    %2244 = vmatprep.subr.mxu0 0.0
    %2245 = vmatpush1.msra.mxu0 0.0
    %2246 = vmatprep.subr.mxu0 0.0
    %2247 = vmatpush1.msra.mxu0 0.0
    %2248 = vmatprep.subr.mxu0 0.0
    %2249 = vmatpush1.msra.mxu0 0.0
    %2250 = vmatprep.subr.mxu0 0.0
    %2251 = vmatpush1.msra.mxu0 0.0
    %2252 = vmatprep.subr.mxu0 0.0
    %2253 = vmatpush1.msra.mxu0 0.0
    %2254 = vmatprep.subr.mxu0 0.0
    %2255 = vmatpush1.msra.mxu0 0.0
    %2256 = vmatprep.subr.mxu0 0.0
    %2257 = vmatpush1.msra.mxu0 0.0
    %2258 = vmatprep.subr.mxu0 0.0
    %2259 = vmatpush1.msra.mxu0 %v2223
    %2260 = vmatprep.subr.mxu0 0.0
    %2261 = vmatpush2.msra.mxu0 0.0
    %2262 = vmatprep.subr.mxu0 0.0
    %2263 = vmatpush2.msra.mxu0 0.0
    %2264 = vmatprep.subr.mxu0 0.0
    %2265 = vmatpush2.msra.mxu0 0.0
    %2266 = vmatprep.subr.mxu0 0.0
    %2267 = vmatpush2.msra.mxu0 0.0
    %2268 = vmatprep.subr.mxu0 0.0
    %2269 = vmatpush2.msra.mxu0 0.0
    %2270 = vmatprep.subr.mxu0 0.0
    %2271 = vmatpush2.msra.mxu0 0.0
    %2272 = vmatprep.subr.mxu0 0.0
    %2273 = vmatpush2.msra.mxu0 0.0
    %2274 = vmatprep.subr.mxu0 0.0
    %2275 = vmatpush2.msra.mxu0 0.0
    %2276 = vmatprep.subr.mxu0 0.0
    %2277 = vmatpush2.msra.mxu0 0.0
    %2278 = vmatprep.subr.mxu0 0.0
    %2279 = vmatpush2.msra.mxu0 0.0
    %2280 = vmatprep.subr.mxu0 0.0
    %2281 = vmatpush2.msra.mxu0 0.0
    %2282 = vmatprep.subr.mxu0 0.0
    %2283 = vmatpush2.msra.mxu0 0.0
    %2284 = vmatprep.subr.mxu0 0.0
    %2285 = vmatpush2.msra.mxu0 0.0
    %2286 = vmatprep.subr.mxu0 0.0
    %2287 = vmatpush2.msra.mxu0 0.0
    %2288 = vmatprep.subr.mxu0 0.0
    %2289 = vmatpush2.msra.mxu0 0.0
    %2290 = vmatprep.subr.mxu0 0.0
    %2291 = vmatpush2.msra.mxu0 0.0
    %2292 = vmatprep.mubr.f32.mxu0 0.0
    %2293 = vmatmul.mubr.f32.gmra.mxu0 %v2226
    %v2294 = vpop.f32.mrf.mxu0
    %v2295 = vadd.f32 0.0, %v2294
    %v2296 = vpop.f32.mrf.mxu0
    %2297 = vdwg.mxu0
    %2298 = vrot.lane.b32.xlu0 %v2126, 120
    %v2299 = vpop.permute.xlu0 %2298
    %2300 = vrot.lane.b32.xlu0 %v2126, 88
    %v2301 = vpop.permute.xlu0 %2300
    %v2302 = vsel %vm319, %v2299, 0
    %v2304 = vsel %vm319, %v2301, 0
    %2306 = vmatprep.subr.mxu0 0.0
    %2307 = vmatpush1.xpose.msra.mxu0 0.0
    %2308 = vmatprep.subr.mxu0 0.0
    %2309 = vmatpush1.xpose.msra.mxu0 0.0
    %2310 = vmatprep.subr.mxu0 0.0
    %2311 = vmatpush1.xpose.msra.mxu0 0.0
    %2312 = vmatprep.subr.mxu0 0.0
    %2313 = vmatpush1.xpose.msra.mxu0 0.0
    %2314 = vmatprep.subr.mxu0 0.0
    %2315 = vmatpush1.xpose.msra.mxu0 0.0
    %2316 = vmatprep.subr.mxu0 0.0
    %2317 = vmatpush1.xpose.msra.mxu0 0.0
    %2318 = vmatprep.subr.mxu0 0.0
    %2319 = vmatpush1.xpose.msra.mxu0 0.0
    %2320 = vmatprep.subr.mxu0 0.0
    %2321 = vmatpush1.xpose.msra.mxu0 0.0
    %2322 = vmatprep.subr.mxu0 0.0
    %2323 = vmatpush1.xpose.msra.mxu0 0.0
    %2324 = vmatprep.subr.mxu0 0.0
    %2325 = vmatpush1.xpose.msra.mxu0 0.0
    %2326 = vmatprep.subr.mxu0 0.0
    %2327 = vmatpush1.xpose.msra.mxu0 0.0
    %2328 = vmatprep.subr.mxu0 0.0
    %2329 = vmatpush1.xpose.msra.mxu0 0.0
    %2330 = vmatprep.subr.mxu0 0.0
    %2331 = vmatpush1.xpose.msra.mxu0 0.0
    %2332 = vmatprep.subr.mxu0 0.0
    %2333 = vmatpush1.xpose.msra.mxu0 0.0
    %2334 = vmatprep.subr.mxu0 0.0
    %2335 = vmatpush1.xpose.msra.mxu0 0.0
    %2336 = vmatprep.subr.mxu0 0.0
    %2337 = vmatpush1.xpose.msra.mxu0 %v2304
    %2338 = vmatprep.subr.mxu0 0.0
    %2339 = vmatpush2.xpose.msra.mxu0 0.0
    %2340 = vmatprep.subr.mxu0 0.0
    %2341 = vmatpush2.xpose.msra.mxu0 0.0
    %2342 = vmatprep.subr.mxu0 0.0
    %2343 = vmatpush2.xpose.msra.mxu0 0.0
    %2344 = vmatprep.subr.mxu0 0.0
    %2345 = vmatpush2.xpose.msra.mxu0 0.0
    %2346 = vmatprep.subr.mxu0 0.0
    %2347 = vmatpush2.xpose.msra.mxu0 0.0
    %2348 = vmatprep.subr.mxu0 0.0
    %2349 = vmatpush2.xpose.msra.mxu0 0.0
    %2350 = vmatprep.subr.mxu0 0.0
    %2351 = vmatpush2.xpose.msra.mxu0 0.0
    %2352 = vmatprep.subr.mxu0 0.0
    %2353 = vmatpush2.xpose.msra.mxu0 0.0
    %2354 = vmatprep.subr.mxu0 0.0
    %2355 = vmatpush2.xpose.msra.mxu0 0.0
    %2356 = vmatprep.subr.mxu0 0.0
    %2357 = vmatpush2.xpose.msra.mxu0 0.0
    %2358 = vmatprep.subr.mxu0 0.0
    %2359 = vmatpush2.xpose.msra.mxu0 0.0
    %2360 = vmatprep.subr.mxu0 0.0
    %2361 = vmatpush2.xpose.msra.mxu0 0.0
    %2362 = vmatprep.subr.mxu0 0.0
    %2363 = vmatpush2.xpose.msra.mxu0 0.0
    %2364 = vmatprep.subr.mxu0 0.0
    %2365 = vmatpush2.xpose.msra.mxu0 0.0
    %2366 = vmatprep.subr.mxu0 0.0
    %2367 = vmatpush2.xpose.msra.mxu0 0.0
    %2368 = vmatprep.subr.mxu0 0.0
    %2369 = vmatpush2.xpose.msra.mxu0 0.0
    %2370 = vmatprep.mubr.f32.mxu0 0.0
    %2371 = vmatmul.mubr.f32.gmra.mxu0 %v2302
    %v2372 = vpop.f32.mrf.mxu0
    %v2373 = vadd.f32 0.0, %v2372
    %v2374 = vpop.f32.mrf.mxu0
    %2375 = vdwg.mxu0
    %v2376 = vsel %vm319, %v2373, -inf
    %2377 = vmax.xlane.f32.xlu0 %v2376
    %v2378 = vpop.xlane.xlu0 %2377
    %v2379 = vsub.f32 %v2373, %v2378
    %v2380 = vmul.f32 %v2379, 1.442695
    %v2381 = vpow.pop %v2380
    %v2382 = vsel %vm319, %v2381, 0.0
    %2383 = vadd.xlane.f32.xlu0 %v2382
    %v2384 = vpop.xlane.xlu0 %2383
    %v2385 = vrcp.pop %v2384
    %v2386 = vmul.f32 %v2381, %v2385
    %2387 = vrot.lane.b32.xlu0 %v2126, 56
    %v2388 = vpop.permute.xlu0 %2387
    %v2391 = vsel %vm319, %v2386, 0
    %2393 = vmatprep.subr.mxu0 0.0
    %2394 = vmatpush1.msra.mxu0 0.0
    %2395 = vmatprep.subr.mxu0 0.0
    %2396 = vmatpush1.msra.mxu0 0.0
    %2397 = vmatprep.subr.mxu0 0.0
    %2398 = vmatpush1.msra.mxu0 0.0
    %2399 = vmatprep.subr.mxu0 0.0
    %2400 = vmatpush1.msra.mxu0 0.0
    %2401 = vmatprep.subr.mxu0 0.0
    %2402 = vmatpush1.msra.mxu0 0.0
    %2403 = vmatprep.subr.mxu0 0.0
    %2404 = vmatpush1.msra.mxu0 0.0
    %2405 = vmatprep.subr.mxu0 0.0
    %2406 = vmatpush1.msra.mxu0 0.0
    %2407 = vmatprep.subr.mxu0 0.0
    %2408 = vmatpush1.msra.mxu0 0.0
    %2409 = vmatprep.subr.mxu0 0.0
    %2410 = vmatpush1.msra.mxu0 0.0
    %2411 = vmatprep.subr.mxu0 0.0
    %2412 = vmatpush1.msra.mxu0 0.0
    %2413 = vmatprep.subr.mxu0 0.0
    %2414 = vmatpush1.msra.mxu0 0.0
    %2415 = vmatprep.subr.mxu0 0.0
    %2416 = vmatpush1.msra.mxu0 0.0
    %2417 = vmatprep.subr.mxu0 0.0
    %2418 = vmatpush1.msra.mxu0 0.0
    %2419 = vmatprep.subr.mxu0 0.0
    %2420 = vmatpush1.msra.mxu0 0.0
    %2421 = vmatprep.subr.mxu0 0.0
    %2422 = vmatpush1.msra.mxu0 0.0
    %2423 = vmatprep.subr.mxu0 0.0
    %2424 = vmatpush1.msra.mxu0 %v2388
    %2425 = vmatprep.subr.mxu0 0.0
    %2426 = vmatpush2.msra.mxu0 0.0
    %2427 = vmatprep.subr.mxu0 0.0
    %2428 = vmatpush2.msra.mxu0 0.0
    %2429 = vmatprep.subr.mxu0 0.0
    %2430 = vmatpush2.msra.mxu0 0.0
    %2431 = vmatprep.subr.mxu0 0.0
    %2432 = vmatpush2.msra.mxu0 0.0
    %2433 = vmatprep.subr.mxu0 0.0
    %2434 = vmatpush2.msra.mxu0 0.0
    %2435 = vmatprep.subr.mxu0 0.0
    %2436 = vmatpush2.msra.mxu0 0.0
    %2437 = vmatprep.subr.mxu0 0.0
    %2438 = vmatpush2.msra.mxu0 0.0
    %2439 = vmatprep.subr.mxu0 0.0
    %2440 = vmatpush2.msra.mxu0 0.0
    %2441 = vmatprep.subr.mxu0 0.0
    %2442 = vmatpush2.msra.mxu0 0.0
    %2443 = vmatprep.subr.mxu0 0.0
    %2444 = vmatpush2.msra.mxu0 0.0
    %2445 = vmatprep.subr.mxu0 0.0
    %2446 = vmatpush2.msra.mxu0 0.0
    %2447 = vmatprep.subr.mxu0 0.0
    %2448 = vmatpush2.msra.mxu0 0.0
    %2449 = vmatprep.subr.mxu0 0.0
    %2450 = vmatpush2.msra.mxu0 0.0
    %2451 = vmatprep.subr.mxu0 0.0
    %2452 = vmatpush2.msra.mxu0 0.0
    %2453 = vmatprep.subr.mxu0 0.0
    %2454 = vmatpush2.msra.mxu0 0.0
    %2455 = vmatprep.subr.mxu0 0.0
    %2456 = vmatpush2.msra.mxu0 0.0
    %2457 = vmatprep.mubr.f32.mxu0 0.0
    %2458 = vmatmul.mubr.f32.gmra.mxu0 %v2391
    %v2459 = vpop.f32.mrf.mxu0
    %v2460 = vadd.f32 0.0, %v2459
    %v2461 = vpop.f32.mrf.mxu0
    %2462 = vdwg.mxu0
    %2463 = vrot.lane.b32.xlu0 %v2126, 112
    %v2464 = vpop.permute.xlu0 %2463
    %2465 = vrot.lane.b32.xlu0 %v2126, 80
    %v2466 = vpop.permute.xlu0 %2465
    %v2467 = vsel %vm319, %v2464, 0
    %v2469 = vsel %vm319, %v2466, 0
    %2471 = vmatprep.subr.mxu0 0.0
    %2472 = vmatpush1.xpose.msra.mxu0 0.0
    %2473 = vmatprep.subr.mxu0 0.0
    %2474 = vmatpush1.xpose.msra.mxu0 0.0
    %2475 = vmatprep.subr.mxu0 0.0
    %2476 = vmatpush1.xpose.msra.mxu0 0.0
    %2477 = vmatprep.subr.mxu0 0.0
    %2478 = vmatpush1.xpose.msra.mxu0 0.0
    %2479 = vmatprep.subr.mxu0 0.0
    %2480 = vmatpush1.xpose.msra.mxu0 0.0
    %2481 = vmatprep.subr.mxu0 0.0
    %2482 = vmatpush1.xpose.msra.mxu0 0.0
    %2483 = vmatprep.subr.mxu0 0.0
    %2484 = vmatpush1.xpose.msra.mxu0 0.0
    %2485 = vmatprep.subr.mxu0 0.0
    %2486 = vmatpush1.xpose.msra.mxu0 0.0
    %2487 = vmatprep.subr.mxu0 0.0
    %2488 = vmatpush1.xpose.msra.mxu0 0.0
    %2489 = vmatprep.subr.mxu0 0.0
    %2490 = vmatpush1.xpose.msra.mxu0 0.0
    %2491 = vmatprep.subr.mxu0 0.0
    %2492 = vmatpush1.xpose.msra.mxu0 0.0
    %2493 = vmatprep.subr.mxu0 0.0
    %2494 = vmatpush1.xpose.msra.mxu0 0.0
    %2495 = vmatprep.subr.mxu0 0.0
    %2496 = vmatpush1.xpose.msra.mxu0 0.0
    %2497 = vmatprep.subr.mxu0 0.0
    %2498 = vmatpush1.xpose.msra.mxu0 0.0
    %2499 = vmatprep.subr.mxu0 0.0
    %2500 = vmatpush1.xpose.msra.mxu0 0.0
    %2501 = vmatprep.subr.mxu0 0.0
    %2502 = vmatpush1.xpose.msra.mxu0 %v2469
    %2503 = vmatprep.subr.mxu0 0.0
    %2504 = vmatpush2.xpose.msra.mxu0 0.0
    %2505 = vmatprep.subr.mxu0 0.0
    %2506 = vmatpush2.xpose.msra.mxu0 0.0
    %2507 = vmatprep.subr.mxu0 0.0
    %2508 = vmatpush2.xpose.msra.mxu0 0.0
    %2509 = vmatprep.subr.mxu0 0.0
    %2510 = vmatpush2.xpose.msra.mxu0 0.0
    %2511 = vmatprep.subr.mxu0 0.0
    %2512 = vmatpush2.xpose.msra.mxu0 0.0
    %2513 = vmatprep.subr.mxu0 0.0
    %2514 = vmatpush2.xpose.msra.mxu0 0.0
    %2515 = vmatprep.subr.mxu0 0.0
    %2516 = vmatpush2.xpose.msra.mxu0 0.0
    %2517 = vmatprep.subr.mxu0 0.0
    %2518 = vmatpush2.xpose.msra.mxu0 0.0
    %2519 = vmatprep.subr.mxu0 0.0
    %2520 = vmatpush2.xpose.msra.mxu0 0.0
    %2521 = vmatprep.subr.mxu0 0.0
    %2522 = vmatpush2.xpose.msra.mxu0 0.0
    %2523 = vmatprep.subr.mxu0 0.0
    %2524 = vmatpush2.xpose.msra.mxu0 0.0
    %2525 = vmatprep.subr.mxu0 0.0
    %2526 = vmatpush2.xpose.msra.mxu0 0.0
    %2527 = vmatprep.subr.mxu0 0.0
    %2528 = vmatpush2.xpose.msra.mxu0 0.0
    %2529 = vmatprep.subr.mxu0 0.0
    %2530 = vmatpush2.xpose.msra.mxu0 0.0
    %2531 = vmatprep.subr.mxu0 0.0
    %2532 = vmatpush2.xpose.msra.mxu0 0.0
    %2533 = vmatprep.subr.mxu0 0.0
    %2534 = vmatpush2.xpose.msra.mxu0 0.0
    %2535 = vmatprep.mubr.f32.mxu0 0.0
    %2536 = vmatmul.mubr.f32.gmra.mxu0 %v2467
    %v2537 = vpop.f32.mrf.mxu0
    %v2538 = vadd.f32 0.0, %v2537
    %v2539 = vpop.f32.mrf.mxu0
    %2540 = vdwg.mxu0
    %v2541 = vsel %vm319, %v2538, -inf
    %2542 = vmax.xlane.f32.xlu0 %v2541
    %v2543 = vpop.xlane.xlu0 %2542
    %v2544 = vsub.f32 %v2538, %v2543
    %v2545 = vmul.f32 %v2544, 1.442695
    %v2546 = vpow.pop %v2545
    %v2547 = vsel %vm319, %v2546, 0.0
    %2548 = vadd.xlane.f32.xlu0 %v2547
    %v2549 = vpop.xlane.xlu0 %2548
    %v2550 = vrcp.pop %v2549
    %v2551 = vmul.f32 %v2546, %v2550
    %2552 = vrot.lane.b32.xlu0 %v2126, 48
    %v2553 = vpop.permute.xlu0 %2552
    %v2556 = vsel %vm319, %v2551, 0
    %2558 = vmatprep.subr.mxu0 0.0
    %2559 = vmatpush1.msra.mxu0 0.0
    %2560 = vmatprep.subr.mxu0 0.0
    %2561 = vmatpush1.msra.mxu0 0.0
    %2562 = vmatprep.subr.mxu0 0.0
    %2563 = vmatpush1.msra.mxu0 0.0
    %2564 = vmatprep.subr.mxu0 0.0
    %2565 = vmatpush1.msra.mxu0 0.0
    %2566 = vmatprep.subr.mxu0 0.0
    %2567 = vmatpush1.msra.mxu0 0.0
    %2568 = vmatprep.subr.mxu0 0.0
    %2569 = vmatpush1.msra.mxu0 0.0
    %2570 = vmatprep.subr.mxu0 0.0
    %2571 = vmatpush1.msra.mxu0 0.0
    %2572 = vmatprep.subr.mxu0 0.0
    %2573 = vmatpush1.msra.mxu0 0.0
    %2574 = vmatprep.subr.mxu0 0.0
    %2575 = vmatpush1.msra.mxu0 0.0
    %2576 = vmatprep.subr.mxu0 0.0
    %2577 = vmatpush1.msra.mxu0 0.0
    %2578 = vmatprep.subr.mxu0 0.0
    %2579 = vmatpush1.msra.mxu0 0.0
    %2580 = vmatprep.subr.mxu0 0.0
    %2581 = vmatpush1.msra.mxu0 0.0
    %2582 = vmatprep.subr.mxu0 0.0
    %2583 = vmatpush1.msra.mxu0 0.0
    %2584 = vmatprep.subr.mxu0 0.0
    %2585 = vmatpush1.msra.mxu0 0.0
    %2586 = vmatprep.subr.mxu0 0.0
    %2587 = vmatpush1.msra.mxu0 0.0
    %2588 = vmatprep.subr.mxu0 0.0
    %2589 = vmatpush1.msra.mxu0 %v2553
    %2590 = vmatprep.subr.mxu0 0.0
    %2591 = vmatpush2.msra.mxu0 0.0
    %2592 = vmatprep.subr.mxu0 0.0
    %2593 = vmatpush2.msra.mxu0 0.0
    %2594 = vmatprep.subr.mxu0 0.0
    %2595 = vmatpush2.msra.mxu0 0.0
    %2596 = vmatprep.subr.mxu0 0.0
    %2597 = vmatpush2.msra.mxu0 0.0
    %2598 = vmatprep.subr.mxu0 0.0
    %2599 = vmatpush2.msra.mxu0 0.0
    %2600 = vmatprep.subr.mxu0 0.0
    %2601 = vmatpush2.msra.mxu0 0.0
    %2602 = vmatprep.subr.mxu0 0.0
    %2603 = vmatpush2.msra.mxu0 0.0
    %2604 = vmatprep.subr.mxu0 0.0
    %2605 = vmatpush2.msra.mxu0 0.0
    %2606 = vmatprep.subr.mxu0 0.0
    %2607 = vmatpush2.msra.mxu0 0.0
    %2608 = vmatprep.subr.mxu0 0.0
    %2609 = vmatpush2.msra.mxu0 0.0
    %2610 = vmatprep.subr.mxu0 0.0
    %2611 = vmatpush2.msra.mxu0 0.0
    %2612 = vmatprep.subr.mxu0 0.0
    %2613 = vmatpush2.msra.mxu0 0.0
    %2614 = vmatprep.subr.mxu0 0.0
    %2615 = vmatpush2.msra.mxu0 0.0
    %2616 = vmatprep.subr.mxu0 0.0
    %2617 = vmatpush2.msra.mxu0 0.0
    %2618 = vmatprep.subr.mxu0 0.0
    %2619 = vmatpush2.msra.mxu0 0.0
    %2620 = vmatprep.subr.mxu0 0.0
    %2621 = vmatpush2.msra.mxu0 0.0
    %2622 = vmatprep.mubr.f32.mxu0 0.0
    %2623 = vmatmul.mubr.f32.gmra.mxu0 %v2556
    %v2624 = vpop.f32.mrf.mxu0
    %v2625 = vadd.f32 0.0, %v2624
    %v2626 = vpop.f32.mrf.mxu0
    %2627 = vdwg.mxu0
    %2628 = vrot.lane.b32.xlu0 %v2126, 104
    %v2629 = vpop.permute.xlu0 %2628
    %2630 = vrot.lane.b32.xlu0 %v2126, 72
    %v2631 = vpop.permute.xlu0 %2630
    %v2632 = vsel %vm319, %v2629, 0
    %v2634 = vsel %vm319, %v2631, 0
    %2636 = vmatprep.subr.mxu0 0.0
    %2637 = vmatpush1.xpose.msra.mxu0 0.0
    %2638 = vmatprep.subr.mxu0 0.0
    %2639 = vmatpush1.xpose.msra.mxu0 0.0
    %2640 = vmatprep.subr.mxu0 0.0
    %2641 = vmatpush1.xpose.msra.mxu0 0.0
    %2642 = vmatprep.subr.mxu0 0.0
    %2643 = vmatpush1.xpose.msra.mxu0 0.0
    %2644 = vmatprep.subr.mxu0 0.0
    %2645 = vmatpush1.xpose.msra.mxu0 0.0
    %2646 = vmatprep.subr.mxu0 0.0
    %2647 = vmatpush1.xpose.msra.mxu0 0.0
    %2648 = vmatprep.subr.mxu0 0.0
    %2649 = vmatpush1.xpose.msra.mxu0 0.0
    %2650 = vmatprep.subr.mxu0 0.0
    %2651 = vmatpush1.xpose.msra.mxu0 0.0
    %2652 = vmatprep.subr.mxu0 0.0
    %2653 = vmatpush1.xpose.msra.mxu0 0.0
    %2654 = vmatprep.subr.mxu0 0.0
    %2655 = vmatpush1.xpose.msra.mxu0 0.0
    %2656 = vmatprep.subr.mxu0 0.0
    %2657 = vmatpush1.xpose.msra.mxu0 0.0
    %2658 = vmatprep.subr.mxu0 0.0
    %2659 = vmatpush1.xpose.msra.mxu0 0.0
    %2660 = vmatprep.subr.mxu0 0.0
    %2661 = vmatpush1.xpose.msra.mxu0 0.0
    %2662 = vmatprep.subr.mxu0 0.0
    %2663 = vmatpush1.xpose.msra.mxu0 0.0
    %2664 = vmatprep.subr.mxu0 0.0
    %2665 = vmatpush1.xpose.msra.mxu0 0.0
    %2666 = vmatprep.subr.mxu0 0.0
    %2667 = vmatpush1.xpose.msra.mxu0 %v2634
    %2668 = vmatprep.subr.mxu0 0.0
    %2669 = vmatpush2.xpose.msra.mxu0 0.0
    %2670 = vmatprep.subr.mxu0 0.0
    %2671 = vmatpush2.xpose.msra.mxu0 0.0
    %2672 = vmatprep.subr.mxu0 0.0
    %2673 = vmatpush2.xpose.msra.mxu0 0.0
    %2674 = vmatprep.subr.mxu0 0.0
    %2675 = vmatpush2.xpose.msra.mxu0 0.0
    %2676 = vmatprep.subr.mxu0 0.0
    %2677 = vmatpush2.xpose.msra.mxu0 0.0
    %2678 = vmatprep.subr.mxu0 0.0
    %2679 = vmatpush2.xpose.msra.mxu0 0.0
    %2680 = vmatprep.subr.mxu0 0.0
    %2681 = vmatpush2.xpose.msra.mxu0 0.0
    %2682 = vmatprep.subr.mxu0 0.0
    %2683 = vmatpush2.xpose.msra.mxu0 0.0
    %2684 = vmatprep.subr.mxu0 0.0
    %2685 = vmatpush2.xpose.msra.mxu0 0.0
    %2686 = vmatprep.subr.mxu0 0.0
    %2687 = vmatpush2.xpose.msra.mxu0 0.0
    %2688 = vmatprep.subr.mxu0 0.0
    %2689 = vmatpush2.xpose.msra.mxu0 0.0
    %2690 = vmatprep.subr.mxu0 0.0
    %2691 = vmatpush2.xpose.msra.mxu0 0.0
    %2692 = vmatprep.subr.mxu0 0.0
    %2693 = vmatpush2.xpose.msra.mxu0 0.0
    %2694 = vmatprep.subr.mxu0 0.0
    %2695 = vmatpush2.xpose.msra.mxu0 0.0
    %2696 = vmatprep.subr.mxu0 0.0
    %2697 = vmatpush2.xpose.msra.mxu0 0.0
    %2698 = vmatprep.subr.mxu0 0.0
    %2699 = vmatpush2.xpose.msra.mxu0 0.0
    %2700 = vmatprep.mubr.f32.mxu0 0.0
    %2701 = vmatmul.mubr.f32.gmra.mxu0 %v2632
    %v2702 = vpop.f32.mrf.mxu0
    %v2703 = vadd.f32 0.0, %v2702
    %v2704 = vpop.f32.mrf.mxu0
    %2705 = vdwg.mxu0
    %v2706 = vsel %vm319, %v2703, -inf
    %2707 = vmax.xlane.f32.xlu0 %v2706
    %v2708 = vpop.xlane.xlu0 %2707
    %v2709 = vsub.f32 %v2703, %v2708
    %v2710 = vmul.f32 %v2709, 1.442695
    %v2711 = vpow.pop %v2710
    %v2712 = vsel %vm319, %v2711, 0.0
    %2713 = vadd.xlane.f32.xlu0 %v2712
    %v2714 = vpop.xlane.xlu0 %2713
    %v2715 = vrcp.pop %v2714
    %v2716 = vmul.f32 %v2711, %v2715
    %2717 = vrot.lane.b32.xlu0 %v2126, 40
    %v2718 = vpop.permute.xlu0 %2717
    %v2721 = vsel %vm319, %v2716, 0
    %2723 = vmatprep.subr.mxu0 0.0
    %2724 = vmatpush1.msra.mxu0 0.0
    %2725 = vmatprep.subr.mxu0 0.0
    %2726 = vmatpush1.msra.mxu0 0.0
    %2727 = vmatprep.subr.mxu0 0.0
    %2728 = vmatpush1.msra.mxu0 0.0
    %2729 = vmatprep.subr.mxu0 0.0
    %2730 = vmatpush1.msra.mxu0 0.0
    %2731 = vmatprep.subr.mxu0 0.0
    %2732 = vmatpush1.msra.mxu0 0.0
    %2733 = vmatprep.subr.mxu0 0.0
    %2734 = vmatpush1.msra.mxu0 0.0
    %2735 = vmatprep.subr.mxu0 0.0
    %2736 = vmatpush1.msra.mxu0 0.0
    %2737 = vmatprep.subr.mxu0 0.0
    %2738 = vmatpush1.msra.mxu0 0.0
    %2739 = vmatprep.subr.mxu0 0.0
    %2740 = vmatpush1.msra.mxu0 0.0
    %2741 = vmatprep.subr.mxu0 0.0
    %2742 = vmatpush1.msra.mxu0 0.0
    %2743 = vmatprep.subr.mxu0 0.0
    %2744 = vmatpush1.msra.mxu0 0.0
    %2745 = vmatprep.subr.mxu0 0.0
    %2746 = vmatpush1.msra.mxu0 0.0
    %2747 = vmatprep.subr.mxu0 0.0
    %2748 = vmatpush1.msra.mxu0 0.0
    %2749 = vmatprep.subr.mxu0 0.0
    %2750 = vmatpush1.msra.mxu0 0.0
    %2751 = vmatprep.subr.mxu0 0.0
    %2752 = vmatpush1.msra.mxu0 0.0
    %2753 = vmatprep.subr.mxu0 0.0
    %2754 = vmatpush1.msra.mxu0 %v2718
    %2755 = vmatprep.subr.mxu0 0.0
    %2756 = vmatpush2.msra.mxu0 0.0
    %2757 = vmatprep.subr.mxu0 0.0
    %2758 = vmatpush2.msra.mxu0 0.0
    %2759 = vmatprep.subr.mxu0 0.0
    %2760 = vmatpush2.msra.mxu0 0.0
    %2761 = vmatprep.subr.mxu0 0.0
    %2762 = vmatpush2.msra.mxu0 0.0
    %2763 = vmatprep.subr.mxu0 0.0
    %2764 = vmatpush2.msra.mxu0 0.0
    %2765 = vmatprep.subr.mxu0 0.0
    %2766 = vmatpush2.msra.mxu0 0.0
    %2767 = vmatprep.subr.mxu0 0.0
    %2768 = vmatpush2.msra.mxu0 0.0
    %2769 = vmatprep.subr.mxu0 0.0
    %2770 = vmatpush2.msra.mxu0 0.0
    %2771 = vmatprep.subr.mxu0 0.0
    %2772 = vmatpush2.msra.mxu0 0.0
    %2773 = vmatprep.subr.mxu0 0.0
    %2774 = vmatpush2.msra.mxu0 0.0
    %2775 = vmatprep.subr.mxu0 0.0
    %2776 = vmatpush2.msra.mxu0 0.0
    %2777 = vmatprep.subr.mxu0 0.0
    %2778 = vmatpush2.msra.mxu0 0.0
    %2779 = vmatprep.subr.mxu0 0.0
    %2780 = vmatpush2.msra.mxu0 0.0
    %2781 = vmatprep.subr.mxu0 0.0
    %2782 = vmatpush2.msra.mxu0 0.0
    %2783 = vmatprep.subr.mxu0 0.0
    %2784 = vmatpush2.msra.mxu0 0.0
    %2785 = vmatprep.subr.mxu0 0.0
    %2786 = vmatpush2.msra.mxu0 0.0
    %2787 = vmatprep.mubr.f32.mxu0 0.0
    %2788 = vmatmul.mubr.f32.gmra.mxu0 %v2721
    %v2789 = vpop.f32.mrf.mxu0
    %v2790 = vadd.f32 0.0, %v2789
    %v2791 = vpop.f32.mrf.mxu0
    %2792 = vdwg.mxu0
    %2794 = vrot.lane.b32.xlu0 %v2460, 8
    %v2795 = vpop.permute.xlu0 %2794
    %2798 = vrot.lane.b32.xlu0 %v2625, 16
    %v2799 = vpop.permute.xlu0 %2798
    %2802 = vrot.lane.b32.xlu0 %v2790, 24
    %v2803 = vpop.permute.xlu0 %2802
    %v2805 = vsel %vm319, %v2295, %v2795
    %v2806 = vsel %vm138, %v2805, %v2799
    %v2807 = vsel %vm990, %v2806, %v2803
    %2809 = vrot.lane.b32.xlu0 %v2131, 96
    %v2810 = vpop.permute.xlu0 %2809
    %v2811 = vsel %vm319, %v2131, 0
    %v2813 = vsel %vm319, %v2810, 0
    %2815 = vmatprep.subr.mxu0 0.0
    %2816 = vmatpush1.xpose.msra.mxu0 0.0
    %2817 = vmatprep.subr.mxu0 0.0
    %2818 = vmatpush1.xpose.msra.mxu0 0.0
    %2819 = vmatprep.subr.mxu0 0.0
    %2820 = vmatpush1.xpose.msra.mxu0 0.0
    %2821 = vmatprep.subr.mxu0 0.0
    %2822 = vmatpush1.xpose.msra.mxu0 0.0
    %2823 = vmatprep.subr.mxu0 0.0
    %2824 = vmatpush1.xpose.msra.mxu0 0.0
    %2825 = vmatprep.subr.mxu0 0.0
    %2826 = vmatpush1.xpose.msra.mxu0 0.0
    %2827 = vmatprep.subr.mxu0 0.0
    %2828 = vmatpush1.xpose.msra.mxu0 0.0
    %2829 = vmatprep.subr.mxu0 0.0
    %2830 = vmatpush1.xpose.msra.mxu0 0.0
    %2831 = vmatprep.subr.mxu0 0.0
    %2832 = vmatpush1.xpose.msra.mxu0 0.0
    %2833 = vmatprep.subr.mxu0 0.0
    %2834 = vmatpush1.xpose.msra.mxu0 0.0
    %2835 = vmatprep.subr.mxu0 0.0
    %2836 = vmatpush1.xpose.msra.mxu0 0.0
    %2837 = vmatprep.subr.mxu0 0.0
    %2838 = vmatpush1.xpose.msra.mxu0 0.0
    %2839 = vmatprep.subr.mxu0 0.0
    %2840 = vmatpush1.xpose.msra.mxu0 0.0
    %2841 = vmatprep.subr.mxu0 0.0
    %2842 = vmatpush1.xpose.msra.mxu0 0.0
    %2843 = vmatprep.subr.mxu0 0.0
    %2844 = vmatpush1.xpose.msra.mxu0 0.0
    %2845 = vmatprep.subr.mxu0 0.0
    %2846 = vmatpush1.xpose.msra.mxu0 %v2813
    %2847 = vmatprep.subr.mxu0 0.0
    %2848 = vmatpush2.xpose.msra.mxu0 0.0
    %2849 = vmatprep.subr.mxu0 0.0
    %2850 = vmatpush2.xpose.msra.mxu0 0.0
    %2851 = vmatprep.subr.mxu0 0.0
    %2852 = vmatpush2.xpose.msra.mxu0 0.0
    %2853 = vmatprep.subr.mxu0 0.0
    %2854 = vmatpush2.xpose.msra.mxu0 0.0
    %2855 = vmatprep.subr.mxu0 0.0
    %2856 = vmatpush2.xpose.msra.mxu0 0.0
    %2857 = vmatprep.subr.mxu0 0.0
    %2858 = vmatpush2.xpose.msra.mxu0 0.0
    %2859 = vmatprep.subr.mxu0 0.0
    %2860 = vmatpush2.xpose.msra.mxu0 0.0
    %2861 = vmatprep.subr.mxu0 0.0
    %2862 = vmatpush2.xpose.msra.mxu0 0.0
    %2863 = vmatprep.subr.mxu0 0.0
    %2864 = vmatpush2.xpose.msra.mxu0 0.0
    %2865 = vmatprep.subr.mxu0 0.0
    %2866 = vmatpush2.xpose.msra.mxu0 0.0
    %2867 = vmatprep.subr.mxu0 0.0
    %2868 = vmatpush2.xpose.msra.mxu0 0.0
    %2869 = vmatprep.subr.mxu0 0.0
    %2870 = vmatpush2.xpose.msra.mxu0 0.0
    %2871 = vmatprep.subr.mxu0 0.0
    %2872 = vmatpush2.xpose.msra.mxu0 0.0
    %2873 = vmatprep.subr.mxu0 0.0
    %2874 = vmatpush2.xpose.msra.mxu0 0.0
    %2875 = vmatprep.subr.mxu0 0.0
    %2876 = vmatpush2.xpose.msra.mxu0 0.0
    %2877 = vmatprep.subr.mxu0 0.0
    %2878 = vmatpush2.xpose.msra.mxu0 0.0
    %2879 = vmatprep.mubr.f32.mxu0 0.0
    %2880 = vmatmul.mubr.f32.gmra.mxu0 %v2811
    %v2881 = vpop.f32.mrf.mxu0
    %v2882 = vadd.f32 0.0, %v2881
    %v2883 = vpop.f32.mrf.mxu0
    %2884 = vdwg.mxu0
    %v2885 = vsel %vm319, %v2882, -inf
    %2886 = vmax.xlane.f32.xlu0 %v2885
    %v2887 = vpop.xlane.xlu0 %2886
    %v2888 = vsub.f32 %v2882, %v2887
    %v2889 = vmul.f32 %v2888, 1.442695
    %v2890 = vpow.pop %v2889
    %v2891 = vsel %vm319, %v2890, 0.0
    %2892 = vadd.xlane.f32.xlu0 %v2891
    %v2893 = vpop.xlane.xlu0 %2892
    %v2894 = vrcp.pop %v2893
    %v2895 = vmul.f32 %v2890, %v2894
    %2896 = vrot.lane.b32.xlu0 %v2131, 64
    %v2897 = vpop.permute.xlu0 %2896
    %v2900 = vsel %vm319, %v2895, 0
    %2902 = vmatprep.subr.mxu0 0.0
    %2903 = vmatpush1.msra.mxu0 0.0
    %2904 = vmatprep.subr.mxu0 0.0
    %2905 = vmatpush1.msra.mxu0 0.0
    %2906 = vmatprep.subr.mxu0 0.0
    %2907 = vmatpush1.msra.mxu0 0.0
    %2908 = vmatprep.subr.mxu0 0.0
    %2909 = vmatpush1.msra.mxu0 0.0
    %2910 = vmatprep.subr.mxu0 0.0
    %2911 = vmatpush1.msra.mxu0 0.0
    %2912 = vmatprep.subr.mxu0 0.0
    %2913 = vmatpush1.msra.mxu0 0.0
    %2914 = vmatprep.subr.mxu0 0.0
    %2915 = vmatpush1.msra.mxu0 0.0
    %2916 = vmatprep.subr.mxu0 0.0
    %2917 = vmatpush1.msra.mxu0 0.0
    %2918 = vmatprep.subr.mxu0 0.0
    %2919 = vmatpush1.msra.mxu0 0.0
    %2920 = vmatprep.subr.mxu0 0.0
    %2921 = vmatpush1.msra.mxu0 0.0
    %2922 = vmatprep.subr.mxu0 0.0
    %2923 = vmatpush1.msra.mxu0 0.0
    %2924 = vmatprep.subr.mxu0 0.0
    %2925 = vmatpush1.msra.mxu0 0.0
    %2926 = vmatprep.subr.mxu0 0.0
    %2927 = vmatpush1.msra.mxu0 0.0
    %2928 = vmatprep.subr.mxu0 0.0
    %2929 = vmatpush1.msra.mxu0 0.0
    %2930 = vmatprep.subr.mxu0 0.0
    %2931 = vmatpush1.msra.mxu0 0.0
    %2932 = vmatprep.subr.mxu0 0.0
    %2933 = vmatpush1.msra.mxu0 %v2897
    %2934 = vmatprep.subr.mxu0 0.0
    %2935 = vmatpush2.msra.mxu0 0.0
    %2936 = vmatprep.subr.mxu0 0.0
    %2937 = vmatpush2.msra.mxu0 0.0
    %2938 = vmatprep.subr.mxu0 0.0
    %2939 = vmatpush2.msra.mxu0 0.0
    %2940 = vmatprep.subr.mxu0 0.0
    %2941 = vmatpush2.msra.mxu0 0.0
    %2942 = vmatprep.subr.mxu0 0.0
    %2943 = vmatpush2.msra.mxu0 0.0
    %2944 = vmatprep.subr.mxu0 0.0
    %2945 = vmatpush2.msra.mxu0 0.0
    %2946 = vmatprep.subr.mxu0 0.0
    %2947 = vmatpush2.msra.mxu0 0.0
    %2948 = vmatprep.subr.mxu0 0.0
    %2949 = vmatpush2.msra.mxu0 0.0
    %2950 = vmatprep.subr.mxu0 0.0
    %2951 = vmatpush2.msra.mxu0 0.0
    %2952 = vmatprep.subr.mxu0 0.0
    %2953 = vmatpush2.msra.mxu0 0.0
    %2954 = vmatprep.subr.mxu0 0.0
    %2955 = vmatpush2.msra.mxu0 0.0
    %2956 = vmatprep.subr.mxu0 0.0
    %2957 = vmatpush2.msra.mxu0 0.0
    %2958 = vmatprep.subr.mxu0 0.0
    %2959 = vmatpush2.msra.mxu0 0.0
    %2960 = vmatprep.subr.mxu0 0.0
    %2961 = vmatpush2.msra.mxu0 0.0
    %2962 = vmatprep.subr.mxu0 0.0
    %2963 = vmatpush2.msra.mxu0 0.0
    %2964 = vmatprep.subr.mxu0 0.0
    %2965 = vmatpush2.msra.mxu0 0.0
    %2966 = vmatprep.mubr.f32.mxu0 0.0
    %2967 = vmatmul.mubr.f32.gmra.mxu0 %v2900
    %v2968 = vpop.f32.mrf.mxu0
    %v2969 = vadd.f32 0.0, %v2968
    %v2970 = vpop.f32.mrf.mxu0
    %2971 = vdwg.mxu0
    %2972 = vrot.lane.b32.xlu0 %v2131, 120
    %v2973 = vpop.permute.xlu0 %2972
    %2974 = vrot.lane.b32.xlu0 %v2131, 88
    %v2975 = vpop.permute.xlu0 %2974
    %v2976 = vsel %vm319, %v2973, 0
    %v2978 = vsel %vm319, %v2975, 0
    %2980 = vmatprep.subr.mxu0 0.0
    %2981 = vmatpush1.xpose.msra.mxu0 0.0
    %2982 = vmatprep.subr.mxu0 0.0
    %2983 = vmatpush1.xpose.msra.mxu0 0.0
    %2984 = vmatprep.subr.mxu0 0.0
    %2985 = vmatpush1.xpose.msra.mxu0 0.0
    %2986 = vmatprep.subr.mxu0 0.0
    %2987 = vmatpush1.xpose.msra.mxu0 0.0
    %2988 = vmatprep.subr.mxu0 0.0
    %2989 = vmatpush1.xpose.msra.mxu0 0.0
    %2990 = vmatprep.subr.mxu0 0.0
    %2991 = vmatpush1.xpose.msra.mxu0 0.0
    %2992 = vmatprep.subr.mxu0 0.0
    %2993 = vmatpush1.xpose.msra.mxu0 0.0
    %2994 = vmatprep.subr.mxu0 0.0
    %2995 = vmatpush1.xpose.msra.mxu0 0.0
    %2996 = vmatprep.subr.mxu0 0.0
    %2997 = vmatpush1.xpose.msra.mxu0 0.0
    %2998 = vmatprep.subr.mxu0 0.0
    %2999 = vmatpush1.xpose.msra.mxu0 0.0
    %3000 = vmatprep.subr.mxu0 0.0
    %3001 = vmatpush1.xpose.msra.mxu0 0.0
    %3002 = vmatprep.subr.mxu0 0.0
    %3003 = vmatpush1.xpose.msra.mxu0 0.0
    %3004 = vmatprep.subr.mxu0 0.0
    %3005 = vmatpush1.xpose.msra.mxu0 0.0
    %3006 = vmatprep.subr.mxu0 0.0
    %3007 = vmatpush1.xpose.msra.mxu0 0.0
    %3008 = vmatprep.subr.mxu0 0.0
    %3009 = vmatpush1.xpose.msra.mxu0 0.0
    %3010 = vmatprep.subr.mxu0 0.0
    %3011 = vmatpush1.xpose.msra.mxu0 %v2978
    %3012 = vmatprep.subr.mxu0 0.0
    %3013 = vmatpush2.xpose.msra.mxu0 0.0
    %3014 = vmatprep.subr.mxu0 0.0
    %3015 = vmatpush2.xpose.msra.mxu0 0.0
    %3016 = vmatprep.subr.mxu0 0.0
    %3017 = vmatpush2.xpose.msra.mxu0 0.0
    %3018 = vmatprep.subr.mxu0 0.0
    %3019 = vmatpush2.xpose.msra.mxu0 0.0
    %3020 = vmatprep.subr.mxu0 0.0
    %3021 = vmatpush2.xpose.msra.mxu0 0.0
    %3022 = vmatprep.subr.mxu0 0.0
    %3023 = vmatpush2.xpose.msra.mxu0 0.0
    %3024 = vmatprep.subr.mxu0 0.0
    %3025 = vmatpush2.xpose.msra.mxu0 0.0
    %3026 = vmatprep.subr.mxu0 0.0
    %3027 = vmatpush2.xpose.msra.mxu0 0.0
    %3028 = vmatprep.subr.mxu0 0.0
    %3029 = vmatpush2.xpose.msra.mxu0 0.0
    %3030 = vmatprep.subr.mxu0 0.0
    %3031 = vmatpush2.xpose.msra.mxu0 0.0
    %3032 = vmatprep.subr.mxu0 0.0
    %3033 = vmatpush2.xpose.msra.mxu0 0.0
    %3034 = vmatprep.subr.mxu0 0.0
    %3035 = vmatpush2.xpose.msra.mxu0 0.0
    %3036 = vmatprep.subr.mxu0 0.0
    %3037 = vmatpush2.xpose.msra.mxu0 0.0
    %3038 = vmatprep.subr.mxu0 0.0
    %3039 = vmatpush2.xpose.msra.mxu0 0.0
    %3040 = vmatprep.subr.mxu0 0.0
    %3041 = vmatpush2.xpose.msra.mxu0 0.0
    %3042 = vmatprep.subr.mxu0 0.0
    %3043 = vmatpush2.xpose.msra.mxu0 0.0
    %3044 = vmatprep.mubr.f32.mxu0 0.0
    %3045 = vmatmul.mubr.f32.gmra.mxu0 %v2976
    %v3046 = vpop.f32.mrf.mxu0
    %v3047 = vadd.f32 0.0, %v3046
    %v3048 = vpop.f32.mrf.mxu0
    %3049 = vdwg.mxu0
    %v3050 = vsel %vm319, %v3047, -inf
    %3051 = vmax.xlane.f32.xlu0 %v3050
    %v3052 = vpop.xlane.xlu0 %3051
    %v3053 = vsub.f32 %v3047, %v3052
    %v3054 = vmul.f32 %v3053, 1.442695
    %v3055 = vpow.pop %v3054
    %v3056 = vsel %vm319, %v3055, 0.0
    %3057 = vadd.xlane.f32.xlu0 %v3056
    %v3058 = vpop.xlane.xlu0 %3057
    %v3059 = vrcp.pop %v3058
    %v3060 = vmul.f32 %v3055, %v3059
    %3061 = vrot.lane.b32.xlu0 %v2131, 56
    %v3062 = vpop.permute.xlu0 %3061
    %v3065 = vsel %vm319, %v3060, 0
    %3067 = vmatprep.subr.mxu0 0.0
    %3068 = vmatpush1.msra.mxu0 0.0
    %3069 = vmatprep.subr.mxu0 0.0
    %3070 = vmatpush1.msra.mxu0 0.0
    %3071 = vmatprep.subr.mxu0 0.0
    %3072 = vmatpush1.msra.mxu0 0.0
    %3073 = vmatprep.subr.mxu0 0.0
    %3074 = vmatpush1.msra.mxu0 0.0
    %3075 = vmatprep.subr.mxu0 0.0
    %3076 = vmatpush1.msra.mxu0 0.0
    %3077 = vmatprep.subr.mxu0 0.0
    %3078 = vmatpush1.msra.mxu0 0.0
    %3079 = vmatprep.subr.mxu0 0.0
    %3080 = vmatpush1.msra.mxu0 0.0
    %3081 = vmatprep.subr.mxu0 0.0
    %3082 = vmatpush1.msra.mxu0 0.0
    %3083 = vmatprep.subr.mxu0 0.0
    %3084 = vmatpush1.msra.mxu0 0.0
    %3085 = vmatprep.subr.mxu0 0.0
    %3086 = vmatpush1.msra.mxu0 0.0
    %3087 = vmatprep.subr.mxu0 0.0
    %3088 = vmatpush1.msra.mxu0 0.0
    %3089 = vmatprep.subr.mxu0 0.0
    %3090 = vmatpush1.msra.mxu0 0.0
    %3091 = vmatprep.subr.mxu0 0.0
    %3092 = vmatpush1.msra.mxu0 0.0
    %3093 = vmatprep.subr.mxu0 0.0
    %3094 = vmatpush1.msra.mxu0 0.0
    %3095 = vmatprep.subr.mxu0 0.0
    %3096 = vmatpush1.msra.mxu0 0.0
    %3097 = vmatprep.subr.mxu0 0.0
    %3098 = vmatpush1.msra.mxu0 %v3062
    %3099 = vmatprep.subr.mxu0 0.0
    %3100 = vmatpush2.msra.mxu0 0.0
    %3101 = vmatprep.subr.mxu0 0.0
    %3102 = vmatpush2.msra.mxu0 0.0
    %3103 = vmatprep.subr.mxu0 0.0
    %3104 = vmatpush2.msra.mxu0 0.0
    %3105 = vmatprep.subr.mxu0 0.0
    %3106 = vmatpush2.msra.mxu0 0.0
    %3107 = vmatprep.subr.mxu0 0.0
    %3108 = vmatpush2.msra.mxu0 0.0
    %3109 = vmatprep.subr.mxu0 0.0
    %3110 = vmatpush2.msra.mxu0 0.0
    %3111 = vmatprep.subr.mxu0 0.0
    %3112 = vmatpush2.msra.mxu0 0.0
    %3113 = vmatprep.subr.mxu0 0.0
    %3114 = vmatpush2.msra.mxu0 0.0
    %3115 = vmatprep.subr.mxu0 0.0
    %3116 = vmatpush2.msra.mxu0 0.0
    %3117 = vmatprep.subr.mxu0 0.0
    %3118 = vmatpush2.msra.mxu0 0.0
    %3119 = vmatprep.subr.mxu0 0.0
    %3120 = vmatpush2.msra.mxu0 0.0
    %3121 = vmatprep.subr.mxu0 0.0
    %3122 = vmatpush2.msra.mxu0 0.0
    %3123 = vmatprep.subr.mxu0 0.0
    %3124 = vmatpush2.msra.mxu0 0.0
    %3125 = vmatprep.subr.mxu0 0.0
    %3126 = vmatpush2.msra.mxu0 0.0
    %3127 = vmatprep.subr.mxu0 0.0
    %3128 = vmatpush2.msra.mxu0 0.0
    %3129 = vmatprep.subr.mxu0 0.0
    %3130 = vmatpush2.msra.mxu0 0.0
    %3131 = vmatprep.mubr.f32.mxu0 0.0
    %3132 = vmatmul.mubr.f32.gmra.mxu0 %v3065
    %v3133 = vpop.f32.mrf.mxu0
    %v3134 = vadd.f32 0.0, %v3133
    %v3135 = vpop.f32.mrf.mxu0
    %3136 = vdwg.mxu0
    %3137 = vrot.lane.b32.xlu0 %v2131, 112
    %v3138 = vpop.permute.xlu0 %3137
    %3139 = vrot.lane.b32.xlu0 %v2131, 80
    %v3140 = vpop.permute.xlu0 %3139
    %v3141 = vsel %vm319, %v3138, 0
    %v3143 = vsel %vm319, %v3140, 0
    %3145 = vmatprep.subr.mxu0 0.0
    %3146 = vmatpush1.xpose.msra.mxu0 0.0
    %3147 = vmatprep.subr.mxu0 0.0
    %3148 = vmatpush1.xpose.msra.mxu0 0.0
    %3149 = vmatprep.subr.mxu0 0.0
    %3150 = vmatpush1.xpose.msra.mxu0 0.0
    %3151 = vmatprep.subr.mxu0 0.0
    %3152 = vmatpush1.xpose.msra.mxu0 0.0
    %3153 = vmatprep.subr.mxu0 0.0
    %3154 = vmatpush1.xpose.msra.mxu0 0.0
    %3155 = vmatprep.subr.mxu0 0.0
    %3156 = vmatpush1.xpose.msra.mxu0 0.0
    %3157 = vmatprep.subr.mxu0 0.0
    %3158 = vmatpush1.xpose.msra.mxu0 0.0
    %3159 = vmatprep.subr.mxu0 0.0
    %3160 = vmatpush1.xpose.msra.mxu0 0.0
    %3161 = vmatprep.subr.mxu0 0.0
    %3162 = vmatpush1.xpose.msra.mxu0 0.0
    %3163 = vmatprep.subr.mxu0 0.0
    %3164 = vmatpush1.xpose.msra.mxu0 0.0
    %3165 = vmatprep.subr.mxu0 0.0
    %3166 = vmatpush1.xpose.msra.mxu0 0.0
    %3167 = vmatprep.subr.mxu0 0.0
    %3168 = vmatpush1.xpose.msra.mxu0 0.0
    %3169 = vmatprep.subr.mxu0 0.0
    %3170 = vmatpush1.xpose.msra.mxu0 0.0
    %3171 = vmatprep.subr.mxu0 0.0
    %3172 = vmatpush1.xpose.msra.mxu0 0.0
    %3173 = vmatprep.subr.mxu0 0.0
    %3174 = vmatpush1.xpose.msra.mxu0 0.0
    %3175 = vmatprep.subr.mxu0 0.0
    %3176 = vmatpush1.xpose.msra.mxu0 %v3143
    %3177 = vmatprep.subr.mxu0 0.0
    %3178 = vmatpush2.xpose.msra.mxu0 0.0
    %3179 = vmatprep.subr.mxu0 0.0
    %3180 = vmatpush2.xpose.msra.mxu0 0.0
    %3181 = vmatprep.subr.mxu0 0.0
    %3182 = vmatpush2.xpose.msra.mxu0 0.0
    %3183 = vmatprep.subr.mxu0 0.0
    %3184 = vmatpush2.xpose.msra.mxu0 0.0
    %3185 = vmatprep.subr.mxu0 0.0
    %3186 = vmatpush2.xpose.msra.mxu0 0.0
    %3187 = vmatprep.subr.mxu0 0.0
    %3188 = vmatpush2.xpose.msra.mxu0 0.0
    %3189 = vmatprep.subr.mxu0 0.0
    %3190 = vmatpush2.xpose.msra.mxu0 0.0
    %3191 = vmatprep.subr.mxu0 0.0
    %3192 = vmatpush2.xpose.msra.mxu0 0.0
    %3193 = vmatprep.subr.mxu0 0.0
    %3194 = vmatpush2.xpose.msra.mxu0 0.0
    %3195 = vmatprep.subr.mxu0 0.0
    %3196 = vmatpush2.xpose.msra.mxu0 0.0
    %3197 = vmatprep.subr.mxu0 0.0
    %3198 = vmatpush2.xpose.msra.mxu0 0.0
    %3199 = vmatprep.subr.mxu0 0.0
    %3200 = vmatpush2.xpose.msra.mxu0 0.0
    %3201 = vmatprep.subr.mxu0 0.0
    %3202 = vmatpush2.xpose.msra.mxu0 0.0
    %3203 = vmatprep.subr.mxu0 0.0
    %3204 = vmatpush2.xpose.msra.mxu0 0.0
    %3205 = vmatprep.subr.mxu0 0.0
    %3206 = vmatpush2.xpose.msra.mxu0 0.0
    %3207 = vmatprep.subr.mxu0 0.0
    %3208 = vmatpush2.xpose.msra.mxu0 0.0
    %3209 = vmatprep.mubr.f32.mxu0 0.0
    %3210 = vmatmul.mubr.f32.gmra.mxu0 %v3141
    %v3211 = vpop.f32.mrf.mxu0
    %v3212 = vadd.f32 0.0, %v3211
    %v3213 = vpop.f32.mrf.mxu0
    %3214 = vdwg.mxu0
    %v3215 = vsel %vm319, %v3212, -inf
    %3216 = vmax.xlane.f32.xlu0 %v3215
    %v3217 = vpop.xlane.xlu0 %3216
    %v3218 = vsub.f32 %v3212, %v3217
    %v3219 = vmul.f32 %v3218, 1.442695
    %v3220 = vpow.pop %v3219
    %v3221 = vsel %vm319, %v3220, 0.0
    %3222 = vadd.xlane.f32.xlu0 %v3221
    %v3223 = vpop.xlane.xlu0 %3222
    %v3224 = vrcp.pop %v3223
    %v3225 = vmul.f32 %v3220, %v3224
    %3226 = vrot.lane.b32.xlu0 %v2131, 48
    %v3227 = vpop.permute.xlu0 %3226
    %v3230 = vsel %vm319, %v3225, 0
    %3232 = vmatprep.subr.mxu0 0.0
    %3233 = vmatpush1.msra.mxu0 0.0
    %3234 = vmatprep.subr.mxu0 0.0
    %3235 = vmatpush1.msra.mxu0 0.0
    %3236 = vmatprep.subr.mxu0 0.0
    %3237 = vmatpush1.msra.mxu0 0.0
    %3238 = vmatprep.subr.mxu0 0.0
    %3239 = vmatpush1.msra.mxu0 0.0
    %3240 = vmatprep.subr.mxu0 0.0
    %3241 = vmatpush1.msra.mxu0 0.0
    %3242 = vmatprep.subr.mxu0 0.0
    %3243 = vmatpush1.msra.mxu0 0.0
    %3244 = vmatprep.subr.mxu0 0.0
    %3245 = vmatpush1.msra.mxu0 0.0
    %3246 = vmatprep.subr.mxu0 0.0
    %3247 = vmatpush1.msra.mxu0 0.0
    %3248 = vmatprep.subr.mxu0 0.0
    %3249 = vmatpush1.msra.mxu0 0.0
    %3250 = vmatprep.subr.mxu0 0.0
    %3251 = vmatpush1.msra.mxu0 0.0
    %3252 = vmatprep.subr.mxu0 0.0
    %3253 = vmatpush1.msra.mxu0 0.0
    %3254 = vmatprep.subr.mxu0 0.0
    %3255 = vmatpush1.msra.mxu0 0.0
    %3256 = vmatprep.subr.mxu0 0.0
    %3257 = vmatpush1.msra.mxu0 0.0
    %3258 = vmatprep.subr.mxu0 0.0
    %3259 = vmatpush1.msra.mxu0 0.0
    %3260 = vmatprep.subr.mxu0 0.0
    %3261 = vmatpush1.msra.mxu0 0.0
    %3262 = vmatprep.subr.mxu0 0.0
    %3263 = vmatpush1.msra.mxu0 %v3227
    %3264 = vmatprep.subr.mxu0 0.0
    %3265 = vmatpush2.msra.mxu0 0.0
    %3266 = vmatprep.subr.mxu0 0.0
    %3267 = vmatpush2.msra.mxu0 0.0
    %3268 = vmatprep.subr.mxu0 0.0
    %3269 = vmatpush2.msra.mxu0 0.0
    %3270 = vmatprep.subr.mxu0 0.0
    %3271 = vmatpush2.msra.mxu0 0.0
    %3272 = vmatprep.subr.mxu0 0.0
    %3273 = vmatpush2.msra.mxu0 0.0
    %3274 = vmatprep.subr.mxu0 0.0
    %3275 = vmatpush2.msra.mxu0 0.0
    %3276 = vmatprep.subr.mxu0 0.0
    %3277 = vmatpush2.msra.mxu0 0.0
    %3278 = vmatprep.subr.mxu0 0.0
    %3279 = vmatpush2.msra.mxu0 0.0
    %3280 = vmatprep.subr.mxu0 0.0
    %3281 = vmatpush2.msra.mxu0 0.0
    %3282 = vmatprep.subr.mxu0 0.0
    %3283 = vmatpush2.msra.mxu0 0.0
    %3284 = vmatprep.subr.mxu0 0.0
    %3285 = vmatpush2.msra.mxu0 0.0
    %3286 = vmatprep.subr.mxu0 0.0
    %3287 = vmatpush2.msra.mxu0 0.0
    %3288 = vmatprep.subr.mxu0 0.0
    %3289 = vmatpush2.msra.mxu0 0.0
    %3290 = vmatprep.subr.mxu0 0.0
    %3291 = vmatpush2.msra.mxu0 0.0
    %3292 = vmatprep.subr.mxu0 0.0
    %3293 = vmatpush2.msra.mxu0 0.0
    %3294 = vmatprep.subr.mxu0 0.0
    %3295 = vmatpush2.msra.mxu0 0.0
    %3296 = vmatprep.mubr.f32.mxu0 0.0
    %3297 = vmatmul.mubr.f32.gmra.mxu0 %v3230
    %v3298 = vpop.f32.mrf.mxu0
    %v3299 = vadd.f32 0.0, %v3298
    %v3300 = vpop.f32.mrf.mxu0
    %3301 = vdwg.mxu0
    %3302 = vrot.lane.b32.xlu0 %v2131, 104
    %v3303 = vpop.permute.xlu0 %3302
    %3304 = vrot.lane.b32.xlu0 %v2131, 72
    %v3305 = vpop.permute.xlu0 %3304
    %v3306 = vsel %vm319, %v3303, 0
    %v3308 = vsel %vm319, %v3305, 0
    %3310 = vmatprep.subr.mxu0 0.0
    %3311 = vmatpush1.xpose.msra.mxu0 0.0
    %3312 = vmatprep.subr.mxu0 0.0
    %3313 = vmatpush1.xpose.msra.mxu0 0.0
    %3314 = vmatprep.subr.mxu0 0.0
    %3315 = vmatpush1.xpose.msra.mxu0 0.0
    %3316 = vmatprep.subr.mxu0 0.0
    %3317 = vmatpush1.xpose.msra.mxu0 0.0
    %3318 = vmatprep.subr.mxu0 0.0
    %3319 = vmatpush1.xpose.msra.mxu0 0.0
    %3320 = vmatprep.subr.mxu0 0.0
    %3321 = vmatpush1.xpose.msra.mxu0 0.0
    %3322 = vmatprep.subr.mxu0 0.0
    %3323 = vmatpush1.xpose.msra.mxu0 0.0
    %3324 = vmatprep.subr.mxu0 0.0
    %3325 = vmatpush1.xpose.msra.mxu0 0.0
    %3326 = vmatprep.subr.mxu0 0.0
    %3327 = vmatpush1.xpose.msra.mxu0 0.0
    %3328 = vmatprep.subr.mxu0 0.0
    %3329 = vmatpush1.xpose.msra.mxu0 0.0
    %3330 = vmatprep.subr.mxu0 0.0
    %3331 = vmatpush1.xpose.msra.mxu0 0.0
    %3332 = vmatprep.subr.mxu0 0.0
    %3333 = vmatpush1.xpose.msra.mxu0 0.0
    %3334 = vmatprep.subr.mxu0 0.0
    %3335 = vmatpush1.xpose.msra.mxu0 0.0
    %3336 = vmatprep.subr.mxu0 0.0
    %3337 = vmatpush1.xpose.msra.mxu0 0.0
    %3338 = vmatprep.subr.mxu0 0.0
    %3339 = vmatpush1.xpose.msra.mxu0 0.0
    %3340 = vmatprep.subr.mxu0 0.0
    %3341 = vmatpush1.xpose.msra.mxu0 %v3308
    %3342 = vmatprep.subr.mxu0 0.0
    %3343 = vmatpush2.xpose.msra.mxu0 0.0
    %3344 = vmatprep.subr.mxu0 0.0
    %3345 = vmatpush2.xpose.msra.mxu0 0.0
    %3346 = vmatprep.subr.mxu0 0.0
    %3347 = vmatpush2.xpose.msra.mxu0 0.0
    %3348 = vmatprep.subr.mxu0 0.0
    %3349 = vmatpush2.xpose.msra.mxu0 0.0
    %3350 = vmatprep.subr.mxu0 0.0
    %3351 = vmatpush2.xpose.msra.mxu0 0.0
    %3352 = vmatprep.subr.mxu0 0.0
    %3353 = vmatpush2.xpose.msra.mxu0 0.0
    %3354 = vmatprep.subr.mxu0 0.0
    %3355 = vmatpush2.xpose.msra.mxu0 0.0
    %3356 = vmatprep.subr.mxu0 0.0
    %3357 = vmatpush2.xpose.msra.mxu0 0.0
    %3358 = vmatprep.subr.mxu0 0.0
    %3359 = vmatpush2.xpose.msra.mxu0 0.0
    %3360 = vmatprep.subr.mxu0 0.0
    %3361 = vmatpush2.xpose.msra.mxu0 0.0
    %3362 = vmatprep.subr.mxu0 0.0
    %3363 = vmatpush2.xpose.msra.mxu0 0.0
    %3364 = vmatprep.subr.mxu0 0.0
    %3365 = vmatpush2.xpose.msra.mxu0 0.0
    %3366 = vmatprep.subr.mxu0 0.0
    %3367 = vmatpush2.xpose.msra.mxu0 0.0
    %3368 = vmatprep.subr.mxu0 0.0
    %3369 = vmatpush2.xpose.msra.mxu0 0.0
    %3370 = vmatprep.subr.mxu0 0.0
    %3371 = vmatpush2.xpose.msra.mxu0 0.0
    %3372 = vmatprep.subr.mxu0 0.0
    %3373 = vmatpush2.xpose.msra.mxu0 0.0
    %3374 = vmatprep.mubr.f32.mxu0 0.0
    %3375 = vmatmul.mubr.f32.gmra.mxu0 %v3306
    %v3376 = vpop.f32.mrf.mxu0
    %v3377 = vadd.f32 0.0, %v3376
    %v3378 = vpop.f32.mrf.mxu0
    %3379 = vdwg.mxu0
    %v3380 = vsel %vm319, %v3377, -inf
    %3381 = vmax.xlane.f32.xlu0 %v3380
    %v3382 = vpop.xlane.xlu0 %3381
    %v3383 = vsub.f32 %v3377, %v3382
    %v3384 = vmul.f32 %v3383, 1.442695
    %v3385 = vpow.pop %v3384
    %v3386 = vsel %vm319, %v3385, 0.0
    %3387 = vadd.xlane.f32.xlu0 %v3386
    %v3388 = vpop.xlane.xlu0 %3387
    %v3389 = vrcp.pop %v3388
    %v3390 = vmul.f32 %v3385, %v3389
    %3391 = vrot.lane.b32.xlu0 %v2131, 40
    %v3392 = vpop.permute.xlu0 %3391
    %v3395 = vsel %vm319, %v3390, 0
    %3397 = vmatprep.subr.mxu0 0.0
    %3398 = vmatpush1.msra.mxu0 0.0
    %3399 = vmatprep.subr.mxu0 0.0
    %3400 = vmatpush1.msra.mxu0 0.0
    %3401 = vmatprep.subr.mxu0 0.0
    %3402 = vmatpush1.msra.mxu0 0.0
    %3403 = vmatprep.subr.mxu0 0.0
    %3404 = vmatpush1.msra.mxu0 0.0
    %3405 = vmatprep.subr.mxu0 0.0
    %3406 = vmatpush1.msra.mxu0 0.0
    %3407 = vmatprep.subr.mxu0 0.0
    %3408 = vmatpush1.msra.mxu0 0.0
    %3409 = vmatprep.subr.mxu0 0.0
    %3410 = vmatpush1.msra.mxu0 0.0
    %3411 = vmatprep.subr.mxu0 0.0
    %3412 = vmatpush1.msra.mxu0 0.0
    %3413 = vmatprep.subr.mxu0 0.0
    %3414 = vmatpush1.msra.mxu0 0.0
    %3415 = vmatprep.subr.mxu0 0.0
    %3416 = vmatpush1.msra.mxu0 0.0
    %3417 = vmatprep.subr.mxu0 0.0
    %3418 = vmatpush1.msra.mxu0 0.0
    %3419 = vmatprep.subr.mxu0 0.0
    %3420 = vmatpush1.msra.mxu0 0.0
    %3421 = vmatprep.subr.mxu0 0.0
    %3422 = vmatpush1.msra.mxu0 0.0
    %3423 = vmatprep.subr.mxu0 0.0
    %3424 = vmatpush1.msra.mxu0 0.0
    %3425 = vmatprep.subr.mxu0 0.0
    %3426 = vmatpush1.msra.mxu0 0.0
    %3427 = vmatprep.subr.mxu0 0.0
    %3428 = vmatpush1.msra.mxu0 %v3392
    %3429 = vmatprep.subr.mxu0 0.0
    %3430 = vmatpush2.msra.mxu0 0.0
    %3431 = vmatprep.subr.mxu0 0.0
    %3432 = vmatpush2.msra.mxu0 0.0
    %3433 = vmatprep.subr.mxu0 0.0
    %3434 = vmatpush2.msra.mxu0 0.0
    %3435 = vmatprep.subr.mxu0 0.0
    %3436 = vmatpush2.msra.mxu0 0.0
    %3437 = vmatprep.subr.mxu0 0.0
    %3438 = vmatpush2.msra.mxu0 0.0
    %3439 = vmatprep.subr.mxu0 0.0
    %3440 = vmatpush2.msra.mxu0 0.0
    %3441 = vmatprep.subr.mxu0 0.0
    %3442 = vmatpush2.msra.mxu0 0.0
    %3443 = vmatprep.subr.mxu0 0.0
    %3444 = vmatpush2.msra.mxu0 0.0
    %3445 = vmatprep.subr.mxu0 0.0
    %3446 = vmatpush2.msra.mxu0 0.0
    %3447 = vmatprep.subr.mxu0 0.0
    %3448 = vmatpush2.msra.mxu0 0.0
    %3449 = vmatprep.subr.mxu0 0.0
    %3450 = vmatpush2.msra.mxu0 0.0
    %3451 = vmatprep.subr.mxu0 0.0
    %3452 = vmatpush2.msra.mxu0 0.0
    %3453 = vmatprep.subr.mxu0 0.0
    %3454 = vmatpush2.msra.mxu0 0.0
    %3455 = vmatprep.subr.mxu0 0.0
    %3456 = vmatpush2.msra.mxu0 0.0
    %3457 = vmatprep.subr.mxu0 0.0
    %3458 = vmatpush2.msra.mxu0 0.0
    %3459 = vmatprep.subr.mxu0 0.0
    %3460 = vmatpush2.msra.mxu0 0.0
    %3461 = vmatprep.mubr.f32.mxu0 0.0
    %3462 = vmatmul.mubr.f32.gmra.mxu0 %v3395
    %v3463 = vpop.f32.mrf.mxu0
    %v3464 = vadd.f32 0.0, %v3463
    %v3465 = vpop.f32.mrf.mxu0
    %3466 = vdwg.mxu0
    %3468 = vrot.lane.b32.xlu0 %v3134, 8
    %v3469 = vpop.permute.xlu0 %3468
    %3472 = vrot.lane.b32.xlu0 %v3299, 16
    %v3473 = vpop.permute.xlu0 %3472
    %3476 = vrot.lane.b32.xlu0 %v3464, 24
    %v3477 = vpop.permute.xlu0 %3476
    %v3479 = vsel %vm319, %v2969, %v3469
    %v3480 = vsel %vm138, %v3479, %v3473
    %v3481 = vsel %vm990, %v3480, %v3477
    %v3482 = vld [vmem:[%s41] sm:$0xff]
    %v3483 = vld [vmem:[%s41 + $0x8] sm:$0xff]
    %v3484 = vld [vmem:[%s41 + $0x10] sm:$0xff]
    %v3485 = vld [vmem:[%s41 + $0x18] sm:$0xff]
    %v3486 = vld [vmem:[%s43] sm:$0x1]
    %v3488 = vlaneseq
    %v3489 = vshrl.u32 %v3488, 7
    %v3490 = vsub.s32 0, %v3489
    %v3491 = vrot.slane %v3486, %v3490
    %v3494 = vsel %vm234, %v2807, 0
    %v3497 = vsel %vm234, %v3481, 0
    %3499 = vmatprep.subr.mxu0 0.0
    %3500 = vmatpush1.msra.mxu0 0.0
    %3501 = vmatprep.subr.mxu0 0.0
    %3502 = vmatpush1.msra.mxu0 0.0
    %3503 = vmatprep.subr.mxu0 0.0
    %3504 = vmatpush1.msra.mxu0 0.0
    %3505 = vmatprep.subr.mxu0 0.0
    %3506 = vmatpush1.msra.mxu0 0.0
    %3507 = vmatprep.subr.mxu0 0.0
    %3508 = vmatpush1.msra.mxu0 0.0
    %3509 = vmatprep.subr.mxu0 0.0
    %3510 = vmatpush1.msra.mxu0 0.0
    %3511 = vmatprep.subr.mxu0 0.0
    %3512 = vmatpush1.msra.mxu0 0.0
    %3513 = vmatprep.subr.mxu0 0.0
    %3514 = vmatpush1.msra.mxu0 0.0
    %3515 = vmatprep.subr.mxu0 0.0
    %3516 = vmatpush1.msra.mxu0 0.0
    %3517 = vmatprep.subr.mxu0 0.0
    %3518 = vmatpush1.msra.mxu0 0.0
    %3519 = vmatprep.subr.mxu0 0.0
    %3520 = vmatpush1.msra.mxu0 0.0
    %3521 = vmatprep.subr.mxu0 0.0
    %3522 = vmatpush1.msra.mxu0 0.0
    %3523 = vmatprep.subr.mxu0 0.0
    %3524 = vmatpush1.msra.mxu0 %v3485
    %3525 = vmatprep.subr.mxu0 0.0
    %3526 = vmatpush1.msra.mxu0 %v3484
    %3527 = vmatprep.subr.mxu0 0.0
    %3528 = vmatpush1.msra.mxu0 %v3483
    %3529 = vmatprep.subr.mxu0 0.0
    %3530 = vmatpush1.msra.mxu0 %v3482
    %3531 = vmatprep.subr.mxu0 0.0
    %3532 = vmatpush2.msra.mxu0 0.0
    %3533 = vmatprep.subr.mxu0 0.0
    %3534 = vmatpush2.msra.mxu0 0.0
    %3535 = vmatprep.subr.mxu0 0.0
    %3536 = vmatpush2.msra.mxu0 0.0
    %3537 = vmatprep.subr.mxu0 0.0
    %3538 = vmatpush2.msra.mxu0 0.0
    %3539 = vmatprep.subr.mxu0 0.0
    %3540 = vmatpush2.msra.mxu0 0.0
    %3541 = vmatprep.subr.mxu0 0.0
    %3542 = vmatpush2.msra.mxu0 0.0
    %3543 = vmatprep.subr.mxu0 0.0
    %3544 = vmatpush2.msra.mxu0 0.0
    %3545 = vmatprep.subr.mxu0 0.0
    %3546 = vmatpush2.msra.mxu0 0.0
    %3547 = vmatprep.subr.mxu0 0.0
    %3548 = vmatpush2.msra.mxu0 0.0
    %3549 = vmatprep.subr.mxu0 0.0
    %3550 = vmatpush2.msra.mxu0 0.0
    %3551 = vmatprep.subr.mxu0 0.0
    %3552 = vmatpush2.msra.mxu0 0.0
    %3553 = vmatprep.subr.mxu0 0.0
    %3554 = vmatpush2.msra.mxu0 0.0
    %3555 = vmatprep.subr.mxu0 0.0
    %3556 = vmatpush2.msra.mxu0 0.0
    %3557 = vmatprep.subr.mxu0 0.0
    %3558 = vmatpush2.msra.mxu0 0.0
    %3559 = vmatprep.subr.mxu0 0.0
    %3560 = vmatpush2.msra.mxu0 0.0
    %3561 = vmatprep.subr.mxu0 0.0
    %3562 = vmatpush2.msra.mxu0 0.0
    %3563 = vmatprep.mubr.f32.mxu0 0.0
    %3564 = vmatmul.mubr.f32.gmra.mxu0 %v3494
    %v3565 = vpop.f32.mrf.mxu0
    %v3566 = vadd.f32 %v3491, %v3565
    %v3567 = vpop.f32.mrf.mxu0
    %3568 = vmatprep.mubr.f32.mxu0 0.0
    %3569 = vmatmul.mubr.f32.gmra.mxu0 %v3497
    %v3570 = vpop.f32.mrf.mxu0
    %v3571 = vadd.f32 %v3491, %v3570
    %v3572 = vpop.f32.mrf.mxu0
    %3573 = vdwg.mxu0
    %v3574 = vadd.f32 %v2040, %v3566
    %v3575 = vadd.f32 %v2041, %v3571
    %v3576 = vld [vmem:[%s45] sm:$0x1]
    %v3577 = vld [vmem:[%s47] sm:$0x1]
    %v3578 = vsel %vm234, %v3574, 0.0
    %3579 = vadd.xlane.f32.xlu0 %v3578
    %v3580 = vpop.xlane.xlu0 %3579
    %v3581 = vsel %vm234, %v3575, 0.0
    %3582 = vadd.xlane.f32.xlu0 %v3581
    %v3583 = vpop.xlane.xlu0 %3582
    %v3584 = vmul.f32 %v3580, %v1768
    %v3585 = vmul.f32 %v3583, %v1768
    %v3586 = vsub.f32 %v3574, %v3584
    %v3587 = vsub.f32 %v3575, %v3585
    %v3588 = vmul.f32 %v3586, %v3586
    %v3589 = vmul.f32 %v3587, %v3587
    %v3590 = vsel %vm234, %v3588, 0.0
    %3591 = vadd.xlane.f32.xlu0 %v3590
    %v3592 = vpop.xlane.xlu0 %3591
    %v3593 = vsel %vm234, %v3589, 0.0
    %3594 = vadd.xlane.f32.xlu0 %v3593
    %v3595 = vpop.xlane.xlu0 %3594
    %v3596 = vmul.f32 %v3592, %v1768
    %v3597 = vmul.f32 %v3595, %v1768
    %v3598 = vadd.f32 %v3596, 1e-05
    %v3599 = vadd.f32 %v3597, 1e-05
    %v3600 = vrsqrt.pop %v3598
    %v3601 = vrsqrt.pop %v3599
    %v3602 = vmul.f32 %v3586, %v3600
    %v3603 = vmul.f32 %v3587, %v3601
    %v3605 = vlaneseq
    %v3606 = vshrl.u32 %v3605, 7
    %v3607 = vsub.s32 0, %v3606
    %v3608 = vrot.slane %v3576, %v3607
    %v3610 = vmul.f32 %v3602, %v3608
    %v3611 = vmul.f32 %v3603, %v3608
    %v3613 = vlaneseq
    %v3614 = vshrl.u32 %v3613, 7
    %v3615 = vsub.s32 0, %v3614
    %v3616 = vrot.slane %v3577, %v3615
    %v3618 = vadd.f32 %v3610, %v3616
    %v3619 = vadd.f32 %v3611, %v3616
    %v3620 = vld [vmem:[%s49] sm:$0xff]
    %v3621 = vld [vmem:[%s49 + $0x8] sm:$0xff]
    %v3622 = vld [vmem:[%s49 + $0x10] sm:$0xff]
    %v3623 = vld [vmem:[%s49 + $0x18] sm:$0xff]
    %v3624 = vld [vmem:[%s51] sm:$0x1]
    %v3626 = vlaneseq
    %v3627 = vshrl.u32 %v3626, 7
    %v3628 = vsub.s32 0, %v3627
    %v3629 = vrot.slane %v3624, %v3628
    %v3632 = vsel %vm234, %v3618, 0
    %v3635 = vsel %vm234, %v3619, 0
    %3637 = vmatprep.subr.mxu0 0.0
    %3638 = vmatpush1.msra.mxu0 0.0
    %3639 = vmatprep.subr.mxu0 0.0
    %3640 = vmatpush1.msra.mxu0 0.0
    %3641 = vmatprep.subr.mxu0 0.0
    %3642 = vmatpush1.msra.mxu0 0.0
    %3643 = vmatprep.subr.mxu0 0.0
    %3644 = vmatpush1.msra.mxu0 0.0
    %3645 = vmatprep.subr.mxu0 0.0
    %3646 = vmatpush1.msra.mxu0 0.0
    %3647 = vmatprep.subr.mxu0 0.0
    %3648 = vmatpush1.msra.mxu0 0.0
    %3649 = vmatprep.subr.mxu0 0.0
    %3650 = vmatpush1.msra.mxu0 0.0
    %3651 = vmatprep.subr.mxu0 0.0
    %3652 = vmatpush1.msra.mxu0 0.0
    %3653 = vmatprep.subr.mxu0 0.0
    %3654 = vmatpush1.msra.mxu0 0.0
    %3655 = vmatprep.subr.mxu0 0.0
    %3656 = vmatpush1.msra.mxu0 0.0
    %3657 = vmatprep.subr.mxu0 0.0
    %3658 = vmatpush1.msra.mxu0 0.0
    %3659 = vmatprep.subr.mxu0 0.0
    %3660 = vmatpush1.msra.mxu0 0.0
    %3661 = vmatprep.subr.mxu0 0.0
    %3662 = vmatpush1.msra.mxu0 %v3623
    %3663 = vmatprep.subr.mxu0 0.0
    %3664 = vmatpush1.msra.mxu0 %v3622
    %3665 = vmatprep.subr.mxu0 0.0
    %3666 = vmatpush1.msra.mxu0 %v3621
    %3667 = vmatprep.subr.mxu0 0.0
    %3668 = vmatpush1.msra.mxu0 %v3620
    %3669 = vmatprep.subr.mxu0 0.0
    %3670 = vmatpush2.msra.mxu0 0.0
    %3671 = vmatprep.subr.mxu0 0.0
    %3672 = vmatpush2.msra.mxu0 0.0
    %3673 = vmatprep.subr.mxu0 0.0
    %3674 = vmatpush2.msra.mxu0 0.0
    %3675 = vmatprep.subr.mxu0 0.0
    %3676 = vmatpush2.msra.mxu0 0.0
    %3677 = vmatprep.subr.mxu0 0.0
    %3678 = vmatpush2.msra.mxu0 0.0
    %3679 = vmatprep.subr.mxu0 0.0
    %3680 = vmatpush2.msra.mxu0 0.0
    %3681 = vmatprep.subr.mxu0 0.0
    %3682 = vmatpush2.msra.mxu0 0.0
    %3683 = vmatprep.subr.mxu0 0.0
    %3684 = vmatpush2.msra.mxu0 0.0
    %3685 = vmatprep.subr.mxu0 0.0
    %3686 = vmatpush2.msra.mxu0 0.0
    %3687 = vmatprep.subr.mxu0 0.0
    %3688 = vmatpush2.msra.mxu0 0.0
    %3689 = vmatprep.subr.mxu0 0.0
    %3690 = vmatpush2.msra.mxu0 0.0
    %3691 = vmatprep.subr.mxu0 0.0
    %3692 = vmatpush2.msra.mxu0 0.0
    %3693 = vmatprep.subr.mxu0 0.0
    %3694 = vmatpush2.msra.mxu0 0.0
    %3695 = vmatprep.subr.mxu0 0.0
    %3696 = vmatpush2.msra.mxu0 0.0
    %3697 = vmatprep.subr.mxu0 0.0
    %3698 = vmatpush2.msra.mxu0 0.0
    %3699 = vmatprep.subr.mxu0 0.0
    %3700 = vmatpush2.msra.mxu0 0.0
    %3701 = vmatprep.mubr.f32.mxu0 0.0
    %3702 = vmatmul.mubr.f32.gmra.mxu0 %v3632
    %v3703 = vpop.f32.mrf.mxu0
    %v3704 = vadd.f32 %v3629, %v3703
    %v3705 = vpop.f32.mrf.mxu0
    %3706 = vmatprep.mubr.f32.mxu0 0.0
    %3707 = vmatmul.mubr.f32.gmra.mxu0 %v3635
    %v3708 = vpop.f32.mrf.mxu0
    %v3709 = vadd.f32 %v3629, %v3708
    %v3710 = vpop.f32.mrf.mxu0
    %3711 = vdwg.mxu0
    %v3712 = vmax.f32 %v3704, 0.0
    %v3713 = vmax.f32 %v3709, 0.0
    %v3714 = vld [vmem:[%s53] sm:$0xff]
    %v3715 = vld [vmem:[%s53 + $0x8] sm:$0xff]
    %v3716 = vld [vmem:[%s53 + $0x10] sm:$0xff]
    %v3717 = vld [vmem:[%s53 + $0x18] sm:$0xff]
    %v3718 = vld [vmem:[%s53 + $0x20] sm:$0xff]
    %v3719 = vld [vmem:[%s53 + $0x28] sm:$0xff]
    %v3720 = vld [vmem:[%s53 + $0x30] sm:$0xff]
    %v3721 = vld [vmem:[%s53 + $0x38] sm:$0xff]
    %v3722 = vld [vmem:[%s55] sm:$0x1]
    %v3724 = vlaneseq
    %v3725 = vshrl.u32 %v3724, 7
    %v3726 = vsub.s32 0, %v3725
    %v3727 = vrot.slane %v3722, %v3726
    %v3730 = vsel %vm1914, %v3712, 0
    %v3733 = vsel %vm1914, %v3713, 0
    %3735 = vmatprep.subr.mxu0 0.0
    %3736 = vmatpush1.msra.mxu0 0.0
    %3737 = vmatprep.subr.mxu0 0.0
    %3738 = vmatpush1.msra.mxu0 0.0
    %3739 = vmatprep.subr.mxu0 0.0
    %3740 = vmatpush1.msra.mxu0 0.0
    %3741 = vmatprep.subr.mxu0 0.0
    %3742 = vmatpush1.msra.mxu0 0.0
    %3743 = vmatprep.subr.mxu0 0.0
    %3744 = vmatpush1.msra.mxu0 0.0
    %3745 = vmatprep.subr.mxu0 0.0
    %3746 = vmatpush1.msra.mxu0 0.0
    %3747 = vmatprep.subr.mxu0 0.0
    %3748 = vmatpush1.msra.mxu0 0.0
    %3749 = vmatprep.subr.mxu0 0.0
    %3750 = vmatpush1.msra.mxu0 0.0
    %3751 = vmatprep.subr.mxu0 0.0
    %3752 = vmatpush1.msra.mxu0 %v3721
    %3753 = vmatprep.subr.mxu0 0.0
    %3754 = vmatpush1.msra.mxu0 %v3720
    %3755 = vmatprep.subr.mxu0 0.0
    %3756 = vmatpush1.msra.mxu0 %v3719
    %3757 = vmatprep.subr.mxu0 0.0
    %3758 = vmatpush1.msra.mxu0 %v3718
    %3759 = vmatprep.subr.mxu0 0.0
    %3760 = vmatpush1.msra.mxu0 %v3717
    %3761 = vmatprep.subr.mxu0 0.0
    %3762 = vmatpush1.msra.mxu0 %v3716
    %3763 = vmatprep.subr.mxu0 0.0
    %3764 = vmatpush1.msra.mxu0 %v3715
    %3765 = vmatprep.subr.mxu0 0.0
    %3766 = vmatpush1.msra.mxu0 %v3714
    %3767 = vmatprep.subr.mxu0 0.0
    %3768 = vmatpush2.msra.mxu0 0.0
    %3769 = vmatprep.subr.mxu0 0.0
    %3770 = vmatpush2.msra.mxu0 0.0
    %3771 = vmatprep.subr.mxu0 0.0
    %3772 = vmatpush2.msra.mxu0 0.0
    %3773 = vmatprep.subr.mxu0 0.0
    %3774 = vmatpush2.msra.mxu0 0.0
    %3775 = vmatprep.subr.mxu0 0.0
    %3776 = vmatpush2.msra.mxu0 0.0
    %3777 = vmatprep.subr.mxu0 0.0
    %3778 = vmatpush2.msra.mxu0 0.0
    %3779 = vmatprep.subr.mxu0 0.0
    %3780 = vmatpush2.msra.mxu0 0.0
    %3781 = vmatprep.subr.mxu0 0.0
    %3782 = vmatpush2.msra.mxu0 0.0
    %3783 = vmatprep.subr.mxu0 0.0
    %3784 = vmatpush2.msra.mxu0 0.0
    %3785 = vmatprep.subr.mxu0 0.0
    %3786 = vmatpush2.msra.mxu0 0.0
    %3787 = vmatprep.subr.mxu0 0.0
    %3788 = vmatpush2.msra.mxu0 0.0
    %3789 = vmatprep.subr.mxu0 0.0
    %3790 = vmatpush2.msra.mxu0 0.0
    %3791 = vmatprep.subr.mxu0 0.0
    %3792 = vmatpush2.msra.mxu0 0.0
    %3793 = vmatprep.subr.mxu0 0.0
    %3794 = vmatpush2.msra.mxu0 0.0
    %3795 = vmatprep.subr.mxu0 0.0
    %3796 = vmatpush2.msra.mxu0 0.0
    %3797 = vmatprep.subr.mxu0 0.0
    %3798 = vmatpush2.msra.mxu0 0.0
    %3799 = vmatprep.mubr.f32.mxu0 0.0
    %3800 = vmatmul.mubr.f32.gmra.mxu0 %v3730
    %v3801 = vpop.f32.mrf.mxu0
    %v3802 = vadd.f32 %v3727, %v3801
    %v3803 = vpop.f32.mrf.mxu0
    %3804 = vmatprep.mubr.f32.mxu0 0.0
    %3805 = vmatmul.mubr.f32.gmra.mxu0 %v3733
    %v3806 = vpop.f32.mrf.mxu0
    %v3807 = vadd.f32 %v3727, %v3806
    %v3808 = vpop.f32.mrf.mxu0
    %3809 = vdwg.mxu0
    %v3810 = vadd.f32 %v3618, %v3802
    %v3811 = vadd.f32 %v3619, %v3807
    %v3812 = vld [vmem:[%s57] sm:$0x1]
    %v3813 = vld [vmem:[%s59] sm:$0x1]
    %v3814 = vsel %vm234, %v3810, 0.0
    %3815 = vadd.xlane.f32.xlu0 %v3814
    %v3816 = vpop.xlane.xlu0 %3815
    %v3817 = vsel %vm234, %v3811, 0.0
    %3818 = vadd.xlane.f32.xlu0 %v3817
    %v3819 = vpop.xlane.xlu0 %3818
    %v3820 = vmul.f32 %v3816, %v1768
    %v3821 = vmul.f32 %v3819, %v1768
    %v3822 = vsub.f32 %v3810, %v3820
    %v3823 = vsub.f32 %v3811, %v3821
    %v3824 = vmul.f32 %v3822, %v3822
    %v3825 = vmul.f32 %v3823, %v3823
    %v3826 = vsel %vm234, %v3824, 0.0
    %3827 = vadd.xlane.f32.xlu0 %v3826
    %v3828 = vpop.xlane.xlu0 %3827
    %v3829 = vsel %vm234, %v3825, 0.0
    %3830 = vadd.xlane.f32.xlu0 %v3829
    %v3831 = vpop.xlane.xlu0 %3830
    %v3832 = vmul.f32 %v3828, %v1768
    %v3833 = vmul.f32 %v3831, %v1768
    %v3834 = vadd.f32 %v3832, 1e-05
    %v3835 = vadd.f32 %v3833, 1e-05
    %v3836 = vrsqrt.pop %v3834
    %v3837 = vrsqrt.pop %v3835
    %v3838 = vmul.f32 %v3822, %v3836
    %v3839 = vmul.f32 %v3823, %v3837
    %v3841 = vlaneseq
    %v3842 = vshrl.u32 %v3841, 7
    %v3843 = vsub.s32 0, %v3842
    %v3844 = vrot.slane %v3812, %v3843
    %v3846 = vmul.f32 %v3838, %v3844
    %v3847 = vmul.f32 %v3839, %v3844
    %v3849 = vlaneseq
    %v3850 = vshrl.u32 %v3849, 7
    %v3851 = vsub.s32 0, %v3850
    %v3852 = vrot.slane %v3813, %v3851
    %v3854 = vadd.f32 %v3846, %v3852
    %v3855 = vadd.f32 %v3847, %v3852
    %v3856 = vld [vmem:[%s9] sm:$0xff]
    %v3857 = vld [vmem:[%s9 + $0x8] sm:$0xff]
    %v3858 = vld [vmem:[%s9 + $0x10] sm:$0xff]
    %v3859 = vld [vmem:[%s9 + $0x18] sm:$0xff]
    %v3860 = vld [vmem:[%s11] sm:$0x1]
    %v3862 = vlaneseq
    %v3863 = vshrl.u32 %v3862, 7
    %v3864 = vsub.s32 0, %v3863
    %v3865 = vrot.slane %v3860, %v3864
    %v3868 = vsel %vm234, %v3854, 0
    %v3871 = vsel %vm234, %v3855, 0
    %3873 = vmatprep.subr.mxu0 0.0
    %3874 = vmatpush1.msra.mxu0 0.0
    %3875 = vmatprep.subr.mxu0 0.0
    %3876 = vmatpush1.msra.mxu0 0.0
    %3877 = vmatprep.subr.mxu0 0.0
    %3878 = vmatpush1.msra.mxu0 0.0
    %3879 = vmatprep.subr.mxu0 0.0
    %3880 = vmatpush1.msra.mxu0 0.0
    %3881 = vmatprep.subr.mxu0 0.0
    %3882 = vmatpush1.msra.mxu0 0.0
    %3883 = vmatprep.subr.mxu0 0.0
    %3884 = vmatpush1.msra.mxu0 0.0
    %3885 = vmatprep.subr.mxu0 0.0
    %3886 = vmatpush1.msra.mxu0 0.0
    %3887 = vmatprep.subr.mxu0 0.0
    %3888 = vmatpush1.msra.mxu0 0.0
    %3889 = vmatprep.subr.mxu0 0.0
    %3890 = vmatpush1.msra.mxu0 0.0
    %3891 = vmatprep.subr.mxu0 0.0
    %3892 = vmatpush1.msra.mxu0 0.0
    %3893 = vmatprep.subr.mxu0 0.0
    %3894 = vmatpush1.msra.mxu0 0.0
    %3895 = vmatprep.subr.mxu0 0.0
    %3896 = vmatpush1.msra.mxu0 0.0
    %3897 = vmatprep.subr.mxu0 0.0
    %3898 = vmatpush1.msra.mxu0 %v3859
    %3899 = vmatprep.subr.mxu0 0.0
    %3900 = vmatpush1.msra.mxu0 %v3858
    %3901 = vmatprep.subr.mxu0 0.0
    %3902 = vmatpush1.msra.mxu0 %v3857
    %3903 = vmatprep.subr.mxu0 0.0
    %3904 = vmatpush1.msra.mxu0 %v3856
    %3905 = vmatprep.subr.mxu0 0.0
    %3906 = vmatpush2.msra.mxu0 0.0
    %3907 = vmatprep.subr.mxu0 0.0
    %3908 = vmatpush2.msra.mxu0 0.0
    %3909 = vmatprep.subr.mxu0 0.0
    %3910 = vmatpush2.msra.mxu0 0.0
    %3911 = vmatprep.subr.mxu0 0.0
    %3912 = vmatpush2.msra.mxu0 0.0
    %3913 = vmatprep.subr.mxu0 0.0
    %3914 = vmatpush2.msra.mxu0 0.0
    %3915 = vmatprep.subr.mxu0 0.0
    %3916 = vmatpush2.msra.mxu0 0.0
    %3917 = vmatprep.subr.mxu0 0.0
    %3918 = vmatpush2.msra.mxu0 0.0
    %3919 = vmatprep.subr.mxu0 0.0
    %3920 = vmatpush2.msra.mxu0 0.0
    %3921 = vmatprep.subr.mxu0 0.0
    %3922 = vmatpush2.msra.mxu0 0.0
    %3923 = vmatprep.subr.mxu0 0.0
    %3924 = vmatpush2.msra.mxu0 0.0
    %3925 = vmatprep.subr.mxu0 0.0
    %3926 = vmatpush2.msra.mxu0 0.0
    %3927 = vmatprep.subr.mxu0 0.0
    %3928 = vmatpush2.msra.mxu0 0.0
    %3929 = vmatprep.subr.mxu0 0.0
    %3930 = vmatpush2.msra.mxu0 0.0
    %3931 = vmatprep.subr.mxu0 0.0
    %3932 = vmatpush2.msra.mxu0 0.0
    %3933 = vmatprep.subr.mxu0 0.0
    %3934 = vmatpush2.msra.mxu0 0.0
    %3935 = vmatprep.subr.mxu0 0.0
    %3936 = vmatpush2.msra.mxu0 0.0
    %3937 = vmatprep.mubr.f32.mxu0 0.0
    %3938 = vmatmul.mubr.f32.gmra.mxu0 %v3868
    %v3939 = vpop.f32.mrf.mxu0
    %v3940 = vadd.f32 %v3865, %v3939
    %v3941 = vpop.f32.mrf.mxu0
    %3942 = vmatprep.mubr.f32.mxu0 0.0
    %3943 = vmatmul.mubr.f32.gmra.mxu0 %v3871
    %v3944 = vpop.f32.mrf.mxu0
    %v3945 = vadd.f32 %v3865, %v3944
    %v3946 = vpop.f32.mrf.mxu0
    %3947 = vdwg.mxu0
    %3948 = vst.msk [vmem:[#allocation2] sm:$0xff] %vm234, %v3940
    %3949 = vst.msk [vmem:[#allocation2 + $0x8] sm:$0xff] %vm234, %v3945
    // Predicated region
    $region122: #{encoder_forward.1} parent=1 // pred_check
      _
    $region123: #{encoder_forward.1} parent=1 // pred_check_branch
      %3951 = sbr.rel (0) target = $region125
    $region124: #{encoder_forward.1} parent=1 // pred_region
      %s3953 = ssub.s32 256, 256
      %3954 = vsyncadd [#allocation3], %s3953
      %s3955 = sshll.u32 [#allocation2], 4
      %s3956 = int_to_ptr.vmem [resolvable:$true] %s3955
      %3961 = dma.vmem_to_hbm [thread:$0]  %s3956, 256, %s61, [#allocation3], 128, 128, 8
    $region125: #{encoder_forward.1} parent=1 // pred_fallthru
      _
    // Predicated region
    $region126: #{encoder_forward.1} parent=1 // pred_check
      _
    $region127: #{encoder_forward.1} parent=1 // pred_check_branch
      %3963 = sbr.rel (0) target = $region129
    $region128: #{encoder_forward.1} parent=1 // pred_region
      %3964 = dma.done [#allocation3], 256
    $region129: #{encoder_forward.1} parent=1 // pred_fallthru
      _
    %3965 = vsyncpa [#allocation3], 1

</llo_original>
